<compile_context>
chip_gen: v6e
topology: v6e:2x2x1
jax: 0.10.0
libtpu: 0.0.40
codegen_flags: <defaults>
</compile_context>

<pallas_src>
import functools

import jax
import jax.numpy as jnp
from jax.experimental import pallas as pl
from jax.experimental.pallas import tpu as pltpu

EPS = 1e-5  # nn.InstanceNorm2d default eps


def _resblock_kernel(x_ref, w_ref, b_ref, out_ref, pad_ref, asm_ref, *,
                     nr_blocks, C, H, W, PB, PACK):
    """Entire ResBlock for PB packed batch-pairs.

    x_ref   : (PB, PACK*C, H*W)      VMEM   activations, sublane = pair*C + ci
    w_ref   : (n_conv, PACK*C, C*9)  VMEM   weights, [conv, p*C+ci, co*9 + dy*3+dx]
    b_ref   : (n_conv, PACK*C, 1)    VMEM   biases,  [conv, p*C+co, 0]
    out_ref : (PB, PACK*C, H*W)      VMEM   output
    pad_ref : (PACK*C, H*W + 2*(W+1)) VMEM  halo'd flattened activation
    asm_ref : (PACK*C, H*W)          VMEM   per-conv output assembly buffer
    """
    HW = H * W
    S = PACK * C                     # sublanes per slab
    PADL = W + 1                     # halo on each side of the flattened row
    inv_hw = 1.0 / float(HW)

    # --- reflection-boundary masks on the flattened lane axis (hoisted once) ---
    lane = jax.lax.broadcasted_iota(jnp.int32, (S, HW), 1)
    if (W & (W - 1)) == 0:
        xcol = jnp.bitwise_and(lane, W - 1)
    else:
        xcol = lane % W
    mx0 = xcol == 0                   # x == 0
    mxW = xcol == (W - 1)             # x == W-1
    my0 = lane < W                    # y == 0
    myH = lane >= (H - 1) * W         # y == H-1

    # Clear the scratch once so the (never-selected) halo lanes are not NaN bits.
    pad_ref[...] = jnp.zeros(pad_ref.shape, jnp.float32)

    offs = [(dy - 1, dx - 1) for dy in range(3) for dx in range(3)]

    def conv_norm(x, conv_idx, relu):
        """reflect-pad -> conv3x3 -> InstanceNorm2d(affine=False) -> [ReLU]."""
        # 1) one halo'd copy of the activation, then 9 flat-offset raw windows.
        pad_ref[:, PADL:PADL + HW] = x
        raw = {}
        for (oy, ox) in offs:
            o = PADL + oy * W + ox
            raw[(oy, ox)] = pad_ref[:, o:o + HW]

        def xfix(a, ox):              # x-reflection fixup for row-offset a
            if ox == -1:
                return jnp.where(mx0, raw[(a, 1)], raw[(a, -1)])
            if ox == 1:
                return jnp.where(mxW, raw[(a, -1)], raw[(a, 1)])
            return raw[(a, 0)]

        taps = []
        for (oy, ox) in offs:
            t = xfix(oy, ox)
            if oy == -1:
                t = jnp.where(my0, xfix(1, ox), t)
            elif oy == 1:
                t = jnp.where(myH, xfix(-1, ox), t)
            taps.append(t)            # (S, HW), correct incl. reflected borders

        # 2) conv: per output channel, one mul+add per tap over the whole slab
        #    (all Cin of both packed images at once), then reduce each image's
        #    Cin sublane group.
        for co in range(C):
            col = co * 9
            acc = w_ref[conv_idx, :, col:col + 1] * taps[0]
            for t in range(1, 9):
                acc = acc + w_ref[conv_idx, :, col + t:col + t + 1] * taps[t]
            for p in range(PACK):
                asm_ref[p * C + co:p * C + co + 1, :] = jnp.sum(
                    acc[p * C:(p + 1) * C], axis=0, keepdims=True)

        # 3) bias (cancels under InstanceNorm but kept for faithfulness) +
        #    two-pass InstanceNorm per (image, channel) sublane + optional ReLU.
        y = asm_ref[...] + b_ref[conv_idx]
        mean = jnp.sum(y, axis=1, keepdims=True) * inv_hw
        cen = y - mean
        var = jnp.sum(cen * cen, axis=1, keepdims=True) * inv_hw
        y = cen * jax.lax.rsqrt(var + EPS)
        if relu:
            y = jnp.maximum(y, 0.0)
        return y

    for j in range(PB):                          # batch pairs in this grid step
        x = x_ref[j].astype(jnp.float32)         # (S, HW)
        for lyr in range(nr_blocks):             # ResLayers are sequential
            h = conv_norm(x, 2 * lyr, relu=True)
            x = conv_norm(h, 2 * lyr + 1, relu=False) + x   # + residual
        out_ref[j] = x.astype(out_ref.dtype)


def resblock_pallas(x_nchw, w_pack, b_pack, *, pairs_per_block=None):
    """Fused ResBlock forward.  x_nchw: (N, C, H, W), PyTorch layout."""
    N, C, H, W = x_nchw.shape
    HW = H * W
    PACK = 2                                   # batch elements packed per slab
    n_conv = w_pack.shape[0]
    nr_blocks = n_conv // 2
    S = PACK * C
    assert w_pack.shape == (n_conv, S, C * 9)
    assert b_pack.shape == (n_conv, S, 1)

    # pad the batch so it splits into an integral number of packed pairs
    n_pad = (-N) % PACK
    if n_pad:
        x_nchw = jnp.concatenate(
            [x_nchw, jnp.zeros((n_pad, C, H, W), x_nchw.dtype)], axis=0)
    G = x_nchw.shape[0] // PACK
    PB = pairs_per_block if pairs_per_block is not None else min(G, 8)
    g_pad = (-G) % PB
    if g_pad:
        x_nchw = jnp.concatenate(
            [x_nchw, jnp.zeros((g_pad * PACK, C, H, W), x_nchw.dtype)], axis=0)
        G += g_pad

    # lane-dense packed layout: (pairs, pair*C -> sublane, H*W -> lane)
    x_packed = x_nchw.reshape(G, S, HW)

    kernel = functools.partial(
        _resblock_kernel, nr_blocks=nr_blocks, C=C, H=H, W=W, PB=PB, PACK=PACK)

    out = pl.pallas_call(
        kernel,
        out_shape=jax.ShapeDtypeStruct((G, S, HW), x_nchw.dtype),
        grid_spec=pltpu.PrefetchScalarGridSpec(
            num_scalar_prefetch=0,
            # TODO(synk): on v7x with N <= 2 also split H across the 2 cores.
            grid=(G // PB,),
            in_specs=[
                pl.BlockSpec((PB, S, HW), lambda i: (i, 0, 0)),
                pl.BlockSpec(w_pack.shape, lambda i: (0, 0, 0)),
                pl.BlockSpec(b_pack.shape, lambda i: (0, 0, 0)),
            ],
            out_specs=pl.BlockSpec((PB, S, HW), lambda i: (i, 0, 0)),
            scratch_shapes=[
                pltpu.VMEM((S, HW + 2 * (W + 1)), jnp.float32),  # halo'd slab
                pltpu.VMEM((S, HW), jnp.float32),                # conv-out assembly
            ],
        ),
        compiler_params=pltpu.CompilerParams(
            dimension_semantics=("parallel",)),
    )(x_packed, w_pack, b_pack)

    out = out.reshape(G * PACK, C, H, W)
    return out[:N]


# ----------------------------- parameters -----------------------------------
def init_resblock_params(key, nr_blocks, channels):
    """2 conv layers per ResLayer; weights stored HWIO, Kaiming-uniform-ish."""
    params = []
    for _ in range(nr_blocks):
        layer = []
        for _ in range(2):
            key, k_w, k_b = jax.random.split(key, 3)
            fan_in = channels * 9
            bound = 1.0 / jnp.sqrt(fan_in)
            w = jax.random.uniform(k_w, (3, 3, channels, channels),
                                   jnp.float32, -bound, bound)
            b = jax.random.uniform(k_b, (channels,), jnp.float32, -bound, bound)
            layer.append((w, b))
        params.append(layer)
    return params


def pack_params_for_kernel(params, pack=2):
    """HWIO weights -> (n_conv, pack*Cin, Cout*9) sublane-vector layout
       where [conv, p*C+ci, co*9 + dy*3+dx] = w[co, ci, dy, dx]; bias tiled
       per packed image: (n_conv, pack*Cout, 1)."""
    w_rows, b_rows = [], []
    for layer in params:
        for (w_hwio, b) in layer:
            cout, cin = w_hwio.shape[3], w_hwio.shape[2]
            w_oihw = jnp.transpose(w_hwio, (3, 2, 0, 1))           # (Co, Ci, 3, 3)
            m = jnp.transpose(w_oihw.reshape(cout, cin, 9), (1, 0, 2))
            m = m.reshape(cin, cout * 9)                           # [ci, co*9+t]
            w_rows.append(jnp.tile(m, (pack, 1)))                  # (pack*Ci, Co*9)
            b_rows.append(jnp.tile(b, pack)[:, None])              # (pack*Co, 1)
    return (jnp.stack(w_rows).astype(jnp.float32),
            jnp.stack(b_rows).astype(jnp.float32))


# ---------------- pure-JAX reference (for correctness check) ----------------
def _conv_block_ref(x, w, b, apply_relu):
    xpad = jnp.pad(x, ((0, 0), (1, 1), (1, 1), (0, 0)), mode="reflect")
    y = jax.lax.conv_general_dilated(
        xpad, w, window_strides=(1, 1), padding="VALID",
        dimension_numbers=("NHWC", "HWIO", "NHWC")) + b
    mean = jnp.mean(y, axis=(1, 2), keepdims=True)
    var = jnp.mean((y - mean) ** 2, axis=(1, 2), keepdims=True)
    y = (y - mean) * jax.lax.rsqrt(var + EPS)
    if apply_relu:
        y = jnp.maximum(y, 0.0)
    return y


def _resblock_ref(x_nhwc, params):
    for (w1, b1), (w2, b2) in params:
        residual = x_nhwc
        h = _conv_block_ref(x_nhwc, w1, b1, apply_relu=True)
        x_nhwc = _conv_block_ref(h, w2, b2, apply_relu=False) + residual
    return x_nhwc


if __name__ == "__main__":
    # ResBlock(nr_blocks=2, out_channels=4, 'relu', 'instance', 'reflection')
    NR_BLOCKS, N, C, S = 2, 2, 4, 16

    key = jax.random.PRNGKey(0)
    key, k_x = jax.random.split(key)
    x_nchw = jax.random.normal(k_x, (N, C, S, S), jnp.float32)  # PyTorch NCHW
    params = init_resblock_params(key, NR_BLOCKS, C)
    w_pack, b_pack = pack_params_for_kernel(params, pack=2)

    out_nchw = resblock_pallas(x_nchw, w_pack, b_pack)
    jax.block_until_ready(out_nchw)

    x_nhwc = jnp.transpose(x_nchw, (0, 2, 3, 1))
    ref_nchw = jnp.transpose(_resblock_ref(x_nhwc, params), (0, 3, 1, 2))
    assert out_nchw.shape == (N, C, S, S)
    max_err = float(jnp.max(jnp.abs(out_nchw - ref_nchw)))
    assert jnp.allclose(out_nchw, ref_nchw, atol=1e-4, rtol=1e-4), max_err

    print("KERNEL_OK")
</pallas_src>

<mosaic_0001>
module attributes {stable_mosaic.version = 11 : i64} {
  func.func @_resblock_kernel(%arg0: i32, %arg1: memref<1x8x256xf32, #tpu.memory_space<vmem>>, %arg2: memref<4x8x36xf32, #tpu.memory_space<vmem>>, %arg3: memref<4x8x1xf32, #tpu.memory_space<vmem>>, %arg4: memref<1x8x256xf32, #tpu.memory_space<vmem>>, %arg5: memref<8x290xf32, #tpu.memory_space<vmem>>, %arg6: memref<8x256xf32, #tpu.memory_space<vmem>>) attributes {dimension_semantics = [#tpu.dimension_semantics<parallel>], iteration_bounds = array<i64: 1>, scalar_prefetch = 0 : i64, scratch_operands = 2 : i64, tpu.core_type = #tpu.core_type<tc>, window_params = [{transform_indices = @transform_0, window_bounds = array<i64: 1, 8, 256>}, {pipeline_mode = #tpu.pipeline_mode<synchronous>, transform_indices = @transform_1, window_bounds = array<i64: 4, 8, 36>}, {pipeline_mode = #tpu.pipeline_mode<synchronous>, transform_indices = @transform_2, window_bounds = array<i64: 4, 8, 1>}, {transform_indices = @transform_3, window_bounds = array<i64: 1, 8, 256>}]} {
    %0 = tpu.iota {dimensions = array<i32: 1>} : vector<8x256xi32>
    %c15_i32 = arith.constant 15 : i32
    %1 = vector.broadcast %c15_i32 : i32 to vector<8x256xi32>
    %2 = arith.andi %0, %1 : vector<8x256xi32>
    %c0_i32 = arith.constant 0 : i32
    %3 = vector.broadcast %c0_i32 : i32 to vector<8x256xi32>
    %4 = arith.cmpi eq, %2, %3 : vector<8x256xi32>
    %c15_i32_0 = arith.constant 15 : i32
    %5 = vector.broadcast %c15_i32_0 : i32 to vector<8x256xi32>
    %6 = arith.cmpi eq, %2, %5 : vector<8x256xi32>
    %c16_i32 = arith.constant 16 : i32
    %7 = vector.broadcast %c16_i32 : i32 to vector<8x256xi32>
    %8 = arith.cmpi slt, %0, %7 : vector<8x256xi32>
    %c240_i32 = arith.constant 240 : i32
    %9 = vector.broadcast %c240_i32 : i32 to vector<8x256xi32>
    %10 = arith.cmpi sge, %0, %9 : vector<8x256xi32>
    %cst = arith.constant 0.000000e+00 : f32
    %11 = vector.broadcast %cst : f32 to vector<8x290xf32>
    %c0 = arith.constant 0 : index
    %c0_1 = arith.constant 0 : index
    %12 = vector.load %arg5[%c0, %c0_1] : memref<8x290xf32, #tpu.memory_space<vmem>>, vector<8x290xf32>
    tpu.vector_store %arg5[%c0, %c0_1], %11 {strides = array<i32>} : memref<8x290xf32, #tpu.memory_space<vmem>>, vector<8x290xf32>,
    %c0_2 = arith.constant 0 : index
    %c0_3 = arith.constant 0 : index
    %c0_4 = arith.constant 0 : index
    %13 = vector.load %arg1[%c0_2, %c0_3, %c0_4] : memref<1x8x256xf32, #tpu.memory_space<vmem>>, vector<1x8x256xf32>
    %14 = vector.shape_cast %13 : vector<1x8x256xf32> to vector<8x256xf32>
    %c0_5 = arith.constant 0 : index
    %c17 = arith.constant 17 : index
    %15 = vector.load %arg5[%c0_5, %c17] : memref<8x290xf32, #tpu.memory_space<vmem>>, vector<8x256xf32>
    tpu.vector_store %arg5[%c0_5, %c17], %14 {strides = array<i32>} : memref<8x290xf32, #tpu.memory_space<vmem>>, vector<8x256xf32>,
    %c0_6 = arith.constant 0 : index
    %c0_7 = arith.constant 0 : index
    %16 = vector.load %arg5[%c0_6, %c0_7] : memref<8x290xf32, #tpu.memory_space<vmem>>, vector<8x256xf32>
    %c0_8 = arith.constant 0 : index
    %c1 = arith.constant 1 : index
    %17 = vector.load %arg5[%c0_8, %c1] : memref<8x290xf32, #tpu.memory_space<vmem>>, vector<8x256xf32>
    %c0_9 = arith.constant 0 : index
    %c2 = arith.constant 2 : index
    %18 = vector.load %arg5[%c0_9, %c2] : memref<8x290xf32, #tpu.memory_space<vmem>>, vector<8x256xf32>
    %c0_10 = arith.constant 0 : index
    %c16 = arith.constant 16 : index
    %19 = vector.load %arg5[%c0_10, %c16] : memref<8x290xf32, #tpu.memory_space<vmem>>, vector<8x256xf32>
    %c0_11 = arith.constant 0 : index
    %c17_12 = arith.constant 17 : index
    %20 = vector.load %arg5[%c0_11, %c17_12] : memref<8x290xf32, #tpu.memory_space<vmem>>, vector<8x256xf32>
    %c0_13 = arith.constant 0 : index
    %c18 = arith.constant 18 : index
    %21 = vector.load %arg5[%c0_13, %c18] : memref<8x290xf32, #tpu.memory_space<vmem>>, vector<8x256xf32>
    %c0_14 = arith.constant 0 : index
    %c32 = arith.constant 32 : index
    %22 = vector.load %arg5[%c0_14, %c32] : memref<8x290xf32, #tpu.memory_space<vmem>>, vector<8x256xf32>
    %c0_15 = arith.constant 0 : index
    %c33 = arith.constant 33 : index
    %23 = vector.load %arg5[%c0_15, %c33] : memref<8x290xf32, #tpu.memory_space<vmem>>, vector<8x256xf32>
    %c0_16 = arith.constant 0 : index
    %c34 = arith.constant 34 : index
    %24 = vector.load %arg5[%c0_16, %c34] : memref<8x290xf32, #tpu.memory_space<vmem>>, vector<8x256xf32>
    %25 = arith.select %4, %18, %16 : vector<8x256xi1>, vector<8x256xf32>
    %26 = arith.select %4, %24, %22 : vector<8x256xi1>, vector<8x256xf32>
    %27 = arith.select %8, %26, %25 : vector<8x256xi1>, vector<8x256xf32>
    %28 = arith.select %8, %23, %17 : vector<8x256xi1>, vector<8x256xf32>
    %29 = arith.select %6, %16, %18 : vector<8x256xi1>, vector<8x256xf32>
    %30 = arith.select %6, %22, %24 : vector<8x256xi1>, vector<8x256xf32>
    %31 = arith.select %8, %30, %29 : vector<8x256xi1>, vector<8x256xf32>
    %32 = arith.select %4, %21, %19 : vector<8x256xi1>, vector<8x256xf32>
    %33 = arith.select %6, %19, %21 : vector<8x256xi1>, vector<8x256xf32>
    %34 = arith.select %4, %24, %22 : vector<8x256xi1>, vector<8x256xf32>
    %35 = arith.select %4, %18, %16 : vector<8x256xi1>, vector<8x256xf32>
    %36 = arith.select %10, %35, %34 : vector<8x256xi1>, vector<8x256xf32>
    %37 = arith.select %10, %17, %23 : vector<8x256xi1>, vector<8x256xf32>
    %38 = arith.select %6, %22, %24 : vector<8x256xi1>, vector<8x256xf32>
    %39 = arith.select %6, %16, %18 : vector<8x256xi1>, vector<8x256xf32>
    %40 = arith.select %10, %39, %38 : vector<8x256xi1>, vector<8x256xf32>
    %c0_17 = arith.constant 0 : index
    %c0_18 = arith.constant 0 : index
    %c0_19 = arith.constant 0 : index
    %41 = vector.load %arg2[%c0_17, %c0_18, %c0_19] : memref<4x8x36xf32, #tpu.memory_space<vmem>>, vector<1x8x1xf32>
    %42 = vector.shape_cast %41 : vector<1x8x1xf32> to vector<8x1xf32>
    %43 = vector.broadcast %42 : vector<8x1xf32> to vector<8x256xf32>
    %44 = arith.mulf %43, %27 : vector<8x256xf32>
    %c0_20 = arith.constant 0 : index
    %c0_21 = arith.constant 0 : index
    %c1_22 = arith.constant 1 : index
    %45 = vector.load %arg2[%c0_20, %c0_21, %c1_22] : memref<4x8x36xf32, #tpu.memory_space<vmem>>, vector<1x8x1xf32>
    %46 = vector.shape_cast %45 : vector<1x8x1xf32> to vector<8x1xf32>
    %47 = vector.broadcast %46 : vector<8x1xf32> to vector<8x256xf32>
    %48 = arith.mulf %47, %28 : vector<8x256xf32>
    %49 = arith.addf %44, %48 : vector<8x256xf32>
    %c0_23 = arith.constant 0 : index
    %c0_24 = arith.constant 0 : index
    %c2_25 = arith.constant 2 : index
    %50 = vector.load %arg2[%c0_23, %c0_24, %c2_25] : memref<4x8x36xf32, #tpu.memory_space<vmem>>, vector<1x8x1xf32>
    %51 = vector.shape_cast %50 : vector<1x8x1xf32> to vector<8x1xf32>
    %52 = vector.broadcast %51 : vector<8x1xf32> to vector<8x256xf32>
    %53 = arith.mulf %52, %31 : vector<8x256xf32>
    %54 = arith.addf %49, %53 : vector<8x256xf32>
    %c0_26 = arith.constant 0 : index
    %c0_27 = arith.constant 0 : index
    %c3 = arith.constant 3 : index
    %55 = vector.load %arg2[%c0_26, %c0_27, %c3] : memref<4x8x36xf32, #tpu.memory_space<vmem>>, vector<1x8x1xf32>
    %56 = vector.shape_cast %55 : vector<1x8x1xf32> to vector<8x1xf32>
    %57 = vector.broadcast %56 : vector<8x1xf32> to vector<8x256xf32>
    %58 = arith.mulf %57, %32 : vector<8x256xf32>
    %59 = arith.addf %54, %58 : vector<8x256xf32>
    %c0_28 = arith.constant 0 : index
    %c0_29 = arith.constant 0 : index
    %c4 = arith.constant 4 : index
    %60 = vector.load %arg2[%c0_28, %c0_29, %c4] : memref<4x8x36xf32, #tpu.memory_space<vmem>>, vector<1x8x1xf32>
    %61 = vector.shape_cast %60 : vector<1x8x1xf32> to vector<8x1xf32>
    %62 = vector.broadcast %61 : vector<8x1xf32> to vector<8x256xf32>
    %63 = arith.mulf %62, %20 : vector<8x256xf32>
    %64 = arith.addf %59, %63 : vector<8x256xf32>
    %c0_30 = arith.constant 0 : index
    %c0_31 = arith.constant 0 : index
    %c5 = arith.constant 5 : index
    %65 = vector.load %arg2[%c0_30, %c0_31, %c5] : memref<4x8x36xf32, #tpu.memory_space<vmem>>, vector<1x8x1xf32>
    %66 = vector.shape_cast %65 : vector<1x8x1xf32> to vector<8x1xf32>
    %67 = vector.broadcast %66 : vector<8x1xf32> to vector<8x256xf32>
    %68 = arith.mulf %67, %33 : vector<8x256xf32>
    %69 = arith.addf %64, %68 : vector<8x256xf32>
    %c0_32 = arith.constant 0 : index
    %c0_33 = arith.constant 0 : index
    %c6 = arith.constant 6 : index
    %70 = vector.load %arg2[%c0_32, %c0_33, %c6] : memref<4x8x36xf32, #tpu.memory_space<vmem>>, vector<1x8x1xf32>
    %71 = vector.shape_cast %70 : vector<1x8x1xf32> to vector<8x1xf32>
    %72 = vector.broadcast %71 : vector<8x1xf32> to vector<8x256xf32>
    %73 = arith.mulf %72, %36 : vector<8x256xf32>
    %74 = arith.addf %69, %73 : vector<8x256xf32>
    %c0_34 = arith.constant 0 : index
    %c0_35 = arith.constant 0 : index
    %c7 = arith.constant 7 : index
    %75 = vector.load %arg2[%c0_34, %c0_35, %c7] : memref<4x8x36xf32, #tpu.memory_space<vmem>>, vector<1x8x1xf32>
    %76 = vector.shape_cast %75 : vector<1x8x1xf32> to vector<8x1xf32>
    %77 = vector.broadcast %76 : vector<8x1xf32> to vector<8x256xf32>
    %78 = arith.mulf %77, %37 : vector<8x256xf32>
    %79 = arith.addf %74, %78 : vector<8x256xf32>
    %c0_36 = arith.constant 0 : index
    %c0_37 = arith.constant 0 : index
    %c8 = arith.constant 8 : index
    %80 = vector.load %arg2[%c0_36, %c0_37, %c8] : memref<4x8x36xf32, #tpu.memory_space<vmem>>, vector<1x8x1xf32>
    %81 = vector.shape_cast %80 : vector<1x8x1xf32> to vector<8x1xf32>
    %82 = vector.broadcast %81 : vector<8x1xf32> to vector<8x256xf32>
    %83 = arith.mulf %82, %40 : vector<8x256xf32>
    %84 = arith.addf %79, %83 : vector<8x256xf32>
    %85 = vector.extract_strided_slice %84 {offsets = [0, 0], sizes = [4, 256], strides = [1, 1]} : vector<8x256xf32> to vector<4x256xf32>
    %cst_38 = arith.constant dense<0.000000e+00> : vector<256xf32>
    %86 = vector.multi_reduction <add>, %85, %cst_38 [0] : vector<4x256xf32> to vector<256xf32>
    %87 = vector.shape_cast %86 : vector<256xf32> to vector<1x256xf32>
    %c0_39 = arith.constant 0 : index
    %c0_40 = arith.constant 0 : index
    %88 = vector.load %arg6[%c0_39, %c0_40] : memref<8x256xf32, #tpu.memory_space<vmem>>, vector<1x256xf32>
    tpu.vector_store %arg6[%c0_39, %c0_40], %87 {strides = array<i32>} : memref<8x256xf32, #tpu.memory_space<vmem>>, vector<1x256xf32>,
    %89 = vector.extract_strided_slice %84 {offsets = [4, 0], sizes = [4, 256], strides = [1, 1]} : vector<8x256xf32> to vector<4x256xf32>
    %cst_41 = arith.constant dense<0.000000e+00> : vector<256xf32>
    %90 = vector.multi_reduction <add>, %89, %cst_41 [0] : vector<4x256xf32> to vector<256xf32>
    %91 = vector.shape_cast %90 : vector<256xf32> to vector<1x256xf32>
    %c4_42 = arith.constant 4 : index
    %c0_43 = arith.constant 0 : index
    %92 = vector.load %arg6[%c4_42, %c0_43] : memref<8x256xf32, #tpu.memory_space<vmem>>, vector<1x256xf32>
    tpu.vector_store %arg6[%c4_42, %c0_43], %91 {strides = array<i32>} : memref<8x256xf32, #tpu.memory_space<vmem>>, vector<1x256xf32>,
    %c0_44 = arith.constant 0 : index
    %c0_45 = arith.constant 0 : index
    %c9 = arith.constant 9 : index
    %93 = vector.load %arg2[%c0_44, %c0_45, %c9] : memref<4x8x36xf32, #tpu.memory_space<vmem>>, vector<1x8x1xf32>
    %94 = vector.shape_cast %93 : vector<1x8x1xf32> to vector<8x1xf32>
    %95 = vector.broadcast %94 : vector<8x1xf32> to vector<8x256xf32>
    %96 = arith.mulf %95, %27 : vector<8x256xf32>
    %c0_46 = arith.constant 0 : index
    %c0_47 = arith.constant 0 : index
    %c10 = arith.constant 10 : index
    %97 = vector.load %arg2[%c0_46, %c0_47, %c10] : memref<4x8x36xf32, #tpu.memory_space<vmem>>, vector<1x8x1xf32>
    %98 = vector.shape_cast %97 : vector<1x8x1xf32> to vector<8x1xf32>
    %99 = vector.broadcast %98 : vector<8x1xf32> to vector<8x256xf32>
    %100 = arith.mulf %99, %28 : vector<8x256xf32>
    %101 = arith.addf %96, %100 : vector<8x256xf32>
    %c0_48 = arith.constant 0 : index
    %c0_49 = arith.constant 0 : index
    %c11 = arith.constant 11 : index
    %102 = vector.load %arg2[%c0_48, %c0_49, %c11] : memref<4x8x36xf32, #tpu.memory_space<vmem>>, vector<1x8x1xf32>
    %103 = vector.shape_cast %102 : vector<1x8x1xf32> to vector<8x1xf32>
    %104 = vector.broadcast %103 : vector<8x1xf32> to vector<8x256xf32>
    %105 = arith.mulf %104, %31 : vector<8x256xf32>
    %106 = arith.addf %101, %105 : vector<8x256xf32>
    %c0_50 = arith.constant 0 : index
    %c0_51 = arith.constant 0 : index
    %c12 = arith.constant 12 : index
    %107 = vector.load %arg2[%c0_50, %c0_51, %c12] : memref<4x8x36xf32, #tpu.memory_space<vmem>>, vector<1x8x1xf32>
    %108 = vector.shape_cast %107 : vector<1x8x1xf32> to vector<8x1xf32>
    %109 = vector.broadcast %108 : vector<8x1xf32> to vector<8x256xf32>
    %110 = arith.mulf %109, %32 : vector<8x256xf32>
    %111 = arith.addf %106, %110 : vector<8x256xf32>
    %c0_52 = arith.constant 0 : index
    %c0_53 = arith.constant 0 : index
    %c13 = arith.constant 13 : index
    %112 = vector.load %arg2[%c0_52, %c0_53, %c13] : memref<4x8x36xf32, #tpu.memory_space<vmem>>, vector<1x8x1xf32>
    %113 = vector.shape_cast %112 : vector<1x8x1xf32> to vector<8x1xf32>
    %114 = vector.broadcast %113 : vector<8x1xf32> to vector<8x256xf32>
    %115 = arith.mulf %114, %20 : vector<8x256xf32>
    %116 = arith.addf %111, %115 : vector<8x256xf32>
    %c0_54 = arith.constant 0 : index
    %c0_55 = arith.constant 0 : index
    %c14 = arith.constant 14 : index
    %117 = vector.load %arg2[%c0_54, %c0_55, %c14] : memref<4x8x36xf32, #tpu.memory_space<vmem>>, vector<1x8x1xf32>
    %118 = vector.shape_cast %117 : vector<1x8x1xf32> to vector<8x1xf32>
    %119 = vector.broadcast %118 : vector<8x1xf32> to vector<8x256xf32>
    %120 = arith.mulf %119, %33 : vector<8x256xf32>
    %121 = arith.addf %116, %120 : vector<8x256xf32>
    %c0_56 = arith.constant 0 : index
    %c0_57 = arith.constant 0 : index
    %c15 = arith.constant 15 : index
    %122 = vector.load %arg2[%c0_56, %c0_57, %c15] : memref<4x8x36xf32, #tpu.memory_space<vmem>>, vector<1x8x1xf32>
    %123 = vector.shape_cast %122 : vector<1x8x1xf32> to vector<8x1xf32>
    %124 = vector.broadcast %123 : vector<8x1xf32> to vector<8x256xf32>
    %125 = arith.mulf %124, %36 : vector<8x256xf32>
    %126 = arith.addf %121, %125 : vector<8x256xf32>
    %c0_58 = arith.constant 0 : index
    %c0_59 = arith.constant 0 : index
    %c16_60 = arith.constant 16 : index
    %127 = vector.load %arg2[%c0_58, %c0_59, %c16_60] : memref<4x8x36xf32, #tpu.memory_space<vmem>>, vector<1x8x1xf32>
    %128 = vector.shape_cast %127 : vector<1x8x1xf32> to vector<8x1xf32>
    %129 = vector.broadcast %128 : vector<8x1xf32> to vector<8x256xf32>
    %130 = arith.mulf %129, %37 : vector<8x256xf32>
    %131 = arith.addf %126, %130 : vector<8x256xf32>
    %c0_61 = arith.constant 0 : index
    %c0_62 = arith.constant 0 : index
    %c17_63 = arith.constant 17 : index
    %132 = vector.load %arg2[%c0_61, %c0_62, %c17_63] : memref<4x8x36xf32, #tpu.memory_space<vmem>>, vector<1x8x1xf32>
    %133 = vector.shape_cast %132 : vector<1x8x1xf32> to vector<8x1xf32>
    %134 = vector.broadcast %133 : vector<8x1xf32> to vector<8x256xf32>
    %135 = arith.mulf %134, %40 : vector<8x256xf32>
    %136 = arith.addf %131, %135 : vector<8x256xf32>
    %137 = vector.extract_strided_slice %136 {offsets = [0, 0], sizes = [4, 256], strides = [1, 1]} : vector<8x256xf32> to vector<4x256xf32>
    %cst_64 = arith.constant dense<0.000000e+00> : vector<256xf32>
    %138 = vector.multi_reduction <add>, %137, %cst_64 [0] : vector<4x256xf32> to vector<256xf32>
    %139 = vector.shape_cast %138 : vector<256xf32> to vector<1x256xf32>
    %c1_65 = arith.constant 1 : index
    %c0_66 = arith.constant 0 : index
    %140 = vector.load %arg6[%c1_65, %c0_66] : memref<8x256xf32, #tpu.memory_space<vmem>>, vector<1x256xf32>
    tpu.vector_store %arg6[%c1_65, %c0_66], %139 {strides = array<i32>} : memref<8x256xf32, #tpu.memory_space<vmem>>, vector<1x256xf32>,
    %141 = vector.extract_strided_slice %136 {offsets = [4, 0], sizes = [4, 256], strides = [1, 1]} : vector<8x256xf32> to vector<4x256xf32>
    %cst_67 = arith.constant dense<0.000000e+00> : vector<256xf32>
    %142 = vector.multi_reduction <add>, %141, %cst_67 [0] : vector<4x256xf32> to vector<256xf32>
    %143 = vector.shape_cast %142 : vector<256xf32> to vector<1x256xf32>
    %c5_68 = arith.constant 5 : index
    %c0_69 = arith.constant 0 : index
    %144 = vector.load %arg6[%c5_68, %c0_69] : memref<8x256xf32, #tpu.memory_space<vmem>>, vector<1x256xf32>
    tpu.vector_store %arg6[%c5_68, %c0_69], %143 {strides = array<i32>} : memref<8x256xf32, #tpu.memory_space<vmem>>, vector<1x256xf32>,
    %c0_70 = arith.constant 0 : index
    %c0_71 = arith.constant 0 : index
    %c18_72 = arith.constant 18 : index
    %145 = vector.load %arg2[%c0_70, %c0_71, %c18_72] : memref<4x8x36xf32, #tpu.memory_space<vmem>>, vector<1x8x1xf32>
    %146 = vector.shape_cast %145 : vector<1x8x1xf32> to vector<8x1xf32>
    %147 = vector.broadcast %146 : vector<8x1xf32> to vector<8x256xf32>
    %148 = arith.mulf %147, %27 : vector<8x256xf32>
    %c0_73 = arith.constant 0 : index
    %c0_74 = arith.constant 0 : index
    %c19 = arith.constant 19 : index
    %149 = vector.load %arg2[%c0_73, %c0_74, %c19] : memref<4x8x36xf32, #tpu.memory_space<vmem>>, vector<1x8x1xf32>
    %150 = vector.shape_cast %149 : vector<1x8x1xf32> to vector<8x1xf32>
    %151 = vector.broadcast %150 : vector<8x1xf32> to vector<8x256xf32>
    %152 = arith.mulf %151, %28 : vector<8x256xf32>
    %153 = arith.addf %148, %152 : vector<8x256xf32>
    %c0_75 = arith.constant 0 : index
    %c0_76 = arith.constant 0 : index
    %c20 = arith.constant 20 : index
    %154 = vector.load %arg2[%c0_75, %c0_76, %c20] : memref<4x8x36xf32, #tpu.memory_space<vmem>>, vector<1x8x1xf32>
    %155 = vector.shape_cast %154 : vector<1x8x1xf32> to vector<8x1xf32>
    %156 = vector.broadcast %155 : vector<8x1xf32> to vector<8x256xf32>
    %157 = arith.mulf %156, %31 : vector<8x256xf32>
    %158 = arith.addf %153, %157 : vector<8x256xf32>
    %c0_77 = arith.constant 0 : index
    %c0_78 = arith.constant 0 : index
    %c21 = arith.constant 21 : index
    %159 = vector.load %arg2[%c0_77, %c0_78, %c21] : memref<4x8x36xf32, #tpu.memory_space<vmem>>, vector<1x8x1xf32>
    %160 = vector.shape_cast %159 : vector<1x8x1xf32> to vector<8x1xf32>
    %161 = vector.broadcast %160 : vector<8x1xf32> to vector<8x256xf32>
    %162 = arith.mulf %161, %32 : vector<8x256xf32>
    %163 = arith.addf %158, %162 : vector<8x256xf32>
    %c0_79 = arith.constant 0 : index
    %c0_80 = arith.constant 0 : index
    %c22 = arith.constant 22 : index
    %164 = vector.load %arg2[%c0_79, %c0_80, %c22] : memref<4x8x36xf32, #tpu.memory_space<vmem>>, vector<1x8x1xf32>
    %165 = vector.shape_cast %164 : vector<1x8x1xf32> to vector<8x1xf32>
    %166 = vector.broadcast %165 : vector<8x1xf32> to vector<8x256xf32>
    %167 = arith.mulf %166, %20 : vector<8x256xf32>
    %168 = arith.addf %163, %167 : vector<8x256xf32>
    %c0_81 = arith.constant 0 : index
    %c0_82 = arith.constant 0 : index
    %c23 = arith.constant 23 : index
    %169 = vector.load %arg2[%c0_81, %c0_82, %c23] : memref<4x8x36xf32, #tpu.memory_space<vmem>>, vector<1x8x1xf32>
    %170 = vector.shape_cast %169 : vector<1x8x1xf32> to vector<8x1xf32>
    %171 = vector.broadcast %170 : vector<8x1xf32> to vector<8x256xf32>
    %172 = arith.mulf %171, %33 : vector<8x256xf32>
    %173 = arith.addf %168, %172 : vector<8x256xf32>
    %c0_83 = arith.constant 0 : index
    %c0_84 = arith.constant 0 : index
    %c24 = arith.constant 24 : index
    %174 = vector.load %arg2[%c0_83, %c0_84, %c24] : memref<4x8x36xf32, #tpu.memory_space<vmem>>, vector<1x8x1xf32>
    %175 = vector.shape_cast %174 : vector<1x8x1xf32> to vector<8x1xf32>
    %176 = vector.broadcast %175 : vector<8x1xf32> to vector<8x256xf32>
    %177 = arith.mulf %176, %36 : vector<8x256xf32>
    %178 = arith.addf %173, %177 : vector<8x256xf32>
    %c0_85 = arith.constant 0 : index
    %c0_86 = arith.constant 0 : index
    %c25 = arith.constant 25 : index
    %179 = vector.load %arg2[%c0_85, %c0_86, %c25] : memref<4x8x36xf32, #tpu.memory_space<vmem>>, vector<1x8x1xf32>
    %180 = vector.shape_cast %179 : vector<1x8x1xf32> to vector<8x1xf32>
    %181 = vector.broadcast %180 : vector<8x1xf32> to vector<8x256xf32>
    %182 = arith.mulf %181, %37 : vector<8x256xf32>
    %183 = arith.addf %178, %182 : vector<8x256xf32>
    %c0_87 = arith.constant 0 : index
    %c0_88 = arith.constant 0 : index
    %c26 = arith.constant 26 : index
    %184 = vector.load %arg2[%c0_87, %c0_88, %c26] : memref<4x8x36xf32, #tpu.memory_space<vmem>>, vector<1x8x1xf32>
    %185 = vector.shape_cast %184 : vector<1x8x1xf32> to vector<8x1xf32>
    %186 = vector.broadcast %185 : vector<8x1xf32> to vector<8x256xf32>
    %187 = arith.mulf %186, %40 : vector<8x256xf32>
    %188 = arith.addf %183, %187 : vector<8x256xf32>
    %189 = vector.extract_strided_slice %188 {offsets = [0, 0], sizes = [4, 256], strides = [1, 1]} : vector<8x256xf32> to vector<4x256xf32>
    %cst_89 = arith.constant dense<0.000000e+00> : vector<256xf32>
    %190 = vector.multi_reduction <add>, %189, %cst_89 [0] : vector<4x256xf32> to vector<256xf32>
    %191 = vector.shape_cast %190 : vector<256xf32> to vector<1x256xf32>
    %c2_90 = arith.constant 2 : index
    %c0_91 = arith.constant 0 : index
    %192 = vector.load %arg6[%c2_90, %c0_91] : memref<8x256xf32, #tpu.memory_space<vmem>>, vector<1x256xf32>
    tpu.vector_store %arg6[%c2_90, %c0_91], %191 {strides = array<i32>} : memref<8x256xf32, #tpu.memory_space<vmem>>, vector<1x256xf32>,
    %193 = vector.extract_strided_slice %188 {offsets = [4, 0], sizes = [4, 256], strides = [1, 1]} : vector<8x256xf32> to vector<4x256xf32>
    %cst_92 = arith.constant dense<0.000000e+00> : vector<256xf32>
    %194 = vector.multi_reduction <add>, %193, %cst_92 [0] : vector<4x256xf32> to vector<256xf32>
    %195 = vector.shape_cast %194 : vector<256xf32> to vector<1x256xf32>
    %c6_93 = arith.constant 6 : index
    %c0_94 = arith.constant 0 : index
    %196 = vector.load %arg6[%c6_93, %c0_94] : memref<8x256xf32, #tpu.memory_space<vmem>>, vector<1x256xf32>
    tpu.vector_store %arg6[%c6_93, %c0_94], %195 {strides = array<i32>} : memref<8x256xf32, #tpu.memory_space<vmem>>, vector<1x256xf32>,
    %c0_95 = arith.constant 0 : index
    %c0_96 = arith.constant 0 : index
    %c27 = arith.constant 27 : index
    %197 = vector.load %arg2[%c0_95, %c0_96, %c27] : memref<4x8x36xf32, #tpu.memory_space<vmem>>, vector<1x8x1xf32>
    %198 = vector.shape_cast %197 : vector<1x8x1xf32> to vector<8x1xf32>
    %199 = vector.broadcast %198 : vector<8x1xf32> to vector<8x256xf32>
    %200 = arith.mulf %199, %27 : vector<8x256xf32>
    %c0_97 = arith.constant 0 : index
    %c0_98 = arith.constant 0 : index
    %c28 = arith.constant 28 : index
    %201 = vector.load %arg2[%c0_97, %c0_98, %c28] : memref<4x8x36xf32, #tpu.memory_space<vmem>>, vector<1x8x1xf32>
    %202 = vector.shape_cast %201 : vector<1x8x1xf32> to vector<8x1xf32>
    %203 = vector.broadcast %202 : vector<8x1xf32> to vector<8x256xf32>
    %204 = arith.mulf %203, %28 : vector<8x256xf32>
    %205 = arith.addf %200, %204 : vector<8x256xf32>
    %c0_99 = arith.constant 0 : index
    %c0_100 = arith.constant 0 : index
    %c29 = arith.constant 29 : index
    %206 = vector.load %arg2[%c0_99, %c0_100, %c29] : memref<4x8x36xf32, #tpu.memory_space<vmem>>, vector<1x8x1xf32>
    %207 = vector.shape_cast %206 : vector<1x8x1xf32> to vector<8x1xf32>
    %208 = vector.broadcast %207 : vector<8x1xf32> to vector<8x256xf32>
    %209 = arith.mulf %208, %31 : vector<8x256xf32>
    %210 = arith.addf %205, %209 : vector<8x256xf32>
    %c0_101 = arith.constant 0 : index
    %c0_102 = arith.constant 0 : index
    %c30 = arith.constant 30 : index
    %211 = vector.load %arg2[%c0_101, %c0_102, %c30] : memref<4x8x36xf32, #tpu.memory_space<vmem>>, vector<1x8x1xf32>
    %212 = vector.shape_cast %211 : vector<1x8x1xf32> to vector<8x1xf32>
    %213 = vector.broadcast %212 : vector<8x1xf32> to vector<8x256xf32>
    %214 = arith.mulf %213, %32 : vector<8x256xf32>
    %215 = arith.addf %210, %214 : vector<8x256xf32>
    %c0_103 = arith.constant 0 : index
    %c0_104 = arith.constant 0 : index
    %c31 = arith.constant 31 : index
    %216 = vector.load %arg2[%c0_103, %c0_104, %c31] : memref<4x8x36xf32, #tpu.memory_space<vmem>>, vector<1x8x1xf32>
    %217 = vector.shape_cast %216 : vector<1x8x1xf32> to vector<8x1xf32>
    %218 = vector.broadcast %217 : vector<8x1xf32> to vector<8x256xf32>
    %219 = arith.mulf %218, %20 : vector<8x256xf32>
    %220 = arith.addf %215, %219 : vector<8x256xf32>
    %c0_105 = arith.constant 0 : index
    %c0_106 = arith.constant 0 : index
    %c32_107 = arith.constant 32 : index
    %221 = vector.load %arg2[%c0_105, %c0_106, %c32_107] : memref<4x8x36xf32, #tpu.memory_space<vmem>>, vector<1x8x1xf32>
    %222 = vector.shape_cast %221 : vector<1x8x1xf32> to vector<8x1xf32>
    %223 = vector.broadcast %222 : vector<8x1xf32> to vector<8x256xf32>
    %224 = arith.mulf %223, %33 : vector<8x256xf32>
    %225 = arith.addf %220, %224 : vector<8x256xf32>
    %c0_108 = arith.constant 0 : index
    %c0_109 = arith.constant 0 : index
    %c33_110 = arith.constant 33 : index
    %226 = vector.load %arg2[%c0_108, %c0_109, %c33_110] : memref<4x8x36xf32, #tpu.memory_space<vmem>>, vector<1x8x1xf32>
    %227 = vector.shape_cast %226 : vector<1x8x1xf32> to vector<8x1xf32>
    %228 = vector.broadcast %227 : vector<8x1xf32> to vector<8x256xf32>
    %229 = arith.mulf %228, %36 : vector<8x256xf32>
    %230 = arith.addf %225, %229 : vector<8x256xf32>
    %c0_111 = arith.constant 0 : index
    %c0_112 = arith.constant 0 : index
    %c34_113 = arith.constant 34 : index
    %231 = vector.load %arg2[%c0_111, %c0_112, %c34_113] : memref<4x8x36xf32, #tpu.memory_space<vmem>>, vector<1x8x1xf32>
    %232 = vector.shape_cast %231 : vector<1x8x1xf32> to vector<8x1xf32>
    %233 = vector.broadcast %232 : vector<8x1xf32> to vector<8x256xf32>
    %234 = arith.mulf %233, %37 : vector<8x256xf32>
    %235 = arith.addf %230, %234 : vector<8x256xf32>
    %c0_114 = arith.constant 0 : index
    %c0_115 = arith.constant 0 : index
    %c35 = arith.constant 35 : index
    %236 = vector.load %arg2[%c0_114, %c0_115, %c35] : memref<4x8x36xf32, #tpu.memory_space<vmem>>, vector<1x8x1xf32>
    %237 = vector.shape_cast %236 : vector<1x8x1xf32> to vector<8x1xf32>
    %238 = vector.broadcast %237 : vector<8x1xf32> to vector<8x256xf32>
    %239 = arith.mulf %238, %40 : vector<8x256xf32>
    %240 = arith.addf %235, %239 : vector<8x256xf32>
    %241 = vector.extract_strided_slice %240 {offsets = [0, 0], sizes = [4, 256], strides = [1, 1]} : vector<8x256xf32> to vector<4x256xf32>
    %cst_116 = arith.constant dense<0.000000e+00> : vector<256xf32>
    %242 = vector.multi_reduction <add>, %241, %cst_116 [0] : vector<4x256xf32> to vector<256xf32>
    %243 = vector.shape_cast %242 : vector<256xf32> to vector<1x256xf32>
    %c3_117 = arith.constant 3 : index
    %c0_118 = arith.constant 0 : index
    %244 = vector.load %arg6[%c3_117, %c0_118] : memref<8x256xf32, #tpu.memory_space<vmem>>, vector<1x256xf32>
    tpu.vector_store %arg6[%c3_117, %c0_118], %243 {strides = array<i32>} : memref<8x256xf32, #tpu.memory_space<vmem>>, vector<1x256xf32>,
    %245 = vector.extract_strided_slice %240 {offsets = [4, 0], sizes = [4, 256], strides = [1, 1]} : vector<8x256xf32> to vector<4x256xf32>
    %cst_119 = arith.constant dense<0.000000e+00> : vector<256xf32>
    %246 = vector.multi_reduction <add>, %245, %cst_119 [0] : vector<4x256xf32> to vector<256xf32>
    %247 = vector.shape_cast %246 : vector<256xf32> to vector<1x256xf32>
    %c7_120 = arith.constant 7 : index
    %c0_121 = arith.constant 0 : index
    %248 = vector.load %arg6[%c7_120, %c0_121] : memref<8x256xf32, #tpu.memory_space<vmem>>, vector<1x256xf32>
    tpu.vector_store %arg6[%c7_120, %c0_121], %247 {strides = array<i32>} : memref<8x256xf32, #tpu.memory_space<vmem>>, vector<1x256xf32>,
    %c0_122 = arith.constant 0 : index
    %c0_123 = arith.constant 0 : index
    %249 = vector.load %arg6[%c0_122, %c0_123] : memref<8x256xf32, #tpu.memory_space<vmem>>, vector<8x256xf32>
    %c0_124 = arith.constant 0 : index
    %c0_125 = arith.constant 0 : index
    %c0_126 = arith.constant 0 : index
    %250 = vector.load %arg3[%c0_124, %c0_125, %c0_126] : memref<4x8x1xf32, #tpu.memory_space<vmem>>, vector<1x8x1xf32>
    %251 = vector.shape_cast %250 : vector<1x8x1xf32> to vector<8x1xf32>
    %252 = vector.broadcast %251 : vector<8x1xf32> to vector<8x256xf32>
    %253 = arith.addf %249, %252 : vector<8x256xf32>
    %cst_127 = arith.constant dense<0.000000e+00> : vector<8xf32>
    %254 = vector.multi_reduction <add>, %253, %cst_127 [1] : vector<8x256xf32> to vector<8xf32>
    %255 = vector.shape_cast %254 : vector<8xf32> to vector<8x1xf32>
    %cst_128 = arith.constant 3.906250e-03 : f32
    %256 = vector.broadcast %cst_128 : f32 to vector<8x1xf32>
    %257 = arith.mulf %255, %256 : vector<8x1xf32>
    %258 = vector.broadcast %257 : vector<8x1xf32> to vector<8x256xf32>
    %259 = arith.subf %253, %258 : vector<8x256xf32>
    %260 = arith.mulf %259, %259 : vector<8x256xf32>
    %cst_129 = arith.constant dense<0.000000e+00> : vector<8xf32>
    %261 = vector.multi_reduction <add>, %260, %cst_129 [1] : vector<8x256xf32> to vector<8xf32>
    %262 = vector.shape_cast %261 : vector<8xf32> to vector<8x1xf32>
    %cst_130 = arith.constant 3.906250e-03 : f32
    %263 = vector.broadcast %cst_130 : f32 to vector<8x1xf32>
    %264 = arith.mulf %262, %263 : vector<8x1xf32>
    %cst_131 = arith.constant 9.99999974E-6 : f32
    %265 = vector.broadcast %cst_131 : f32 to vector<8x1xf32>
    %266 = arith.addf %264, %265 : vector<8x1xf32>
    %267 = math.rsqrt %266 : vector<8x1xf32>
    %268 = vector.broadcast %267 : vector<8x1xf32> to vector<8x256xf32>
    %269 = arith.mulf %259, %268 : vector<8x256xf32>
    %cst_132 = arith.constant 0.000000e+00 : f32
    %270 = vector.broadcast %cst_132 : f32 to vector<8x256xf32>
    %271 = arith.maximumf %269, %270 : vector<8x256xf32>
    %c0_133 = arith.constant 0 : index
    %c17_134 = arith.constant 17 : index
    %272 = vector.load %arg5[%c0_133, %c17_134] : memref<8x290xf32, #tpu.memory_space<vmem>>, vector<8x256xf32>
    tpu.vector_store %arg5[%c0_133, %c17_134], %271 {strides = array<i32>} : memref<8x290xf32, #tpu.memory_space<vmem>>, vector<8x256xf32>,
    %c0_135 = arith.constant 0 : index
    %c0_136 = arith.constant 0 : index
    %273 = vector.load %arg5[%c0_135, %c0_136] : memref<8x290xf32, #tpu.memory_space<vmem>>, vector<8x256xf32>
    %c0_137 = arith.constant 0 : index
    %c1_138 = arith.constant 1 : index
    %274 = vector.load %arg5[%c0_137, %c1_138] : memref<8x290xf32, #tpu.memory_space<vmem>>, vector<8x256xf32>
    %c0_139 = arith.constant 0 : index
    %c2_140 = arith.constant 2 : index
    %275 = vector.load %arg5[%c0_139, %c2_140] : memref<8x290xf32, #tpu.memory_space<vmem>>, vector<8x256xf32>
    %c0_141 = arith.constant 0 : index
    %c16_142 = arith.constant 16 : index
    %276 = vector.load %arg5[%c0_141, %c16_142] : memref<8x290xf32, #tpu.memory_space<vmem>>, vector<8x256xf32>
    %c0_143 = arith.constant 0 : index
    %c17_144 = arith.constant 17 : index
    %277 = vector.load %arg5[%c0_143, %c17_144] : memref<8x290xf32, #tpu.memory_space<vmem>>, vector<8x256xf32>
    %c0_145 = arith.constant 0 : index
    %c18_146 = arith.constant 18 : index
    %278 = vector.load %arg5[%c0_145, %c18_146] : memref<8x290xf32, #tpu.memory_space<vmem>>, vector<8x256xf32>
    %c0_147 = arith.constant 0 : index
    %c32_148 = arith.constant 32 : index
    %279 = vector.load %arg5[%c0_147, %c32_148] : memref<8x290xf32, #tpu.memory_space<vmem>>, vector<8x256xf32>
    %c0_149 = arith.constant 0 : index
    %c33_150 = arith.constant 33 : index
    %280 = vector.load %arg5[%c0_149, %c33_150] : memref<8x290xf32, #tpu.memory_space<vmem>>, vector<8x256xf32>
    %c0_151 = arith.constant 0 : index
    %c34_152 = arith.constant 34 : index
    %281 = vector.load %arg5[%c0_151, %c34_152] : memref<8x290xf32, #tpu.memory_space<vmem>>, vector<8x256xf32>
    %282 = arith.select %4, %275, %273 : vector<8x256xi1>, vector<8x256xf32>
    %283 = arith.select %4, %281, %279 : vector<8x256xi1>, vector<8x256xf32>
    %284 = arith.select %8, %283, %282 : vector<8x256xi1>, vector<8x256xf32>
    %285 = arith.select %8, %280, %274 : vector<8x256xi1>, vector<8x256xf32>
    %286 = arith.select %6, %273, %275 : vector<8x256xi1>, vector<8x256xf32>
    %287 = arith.select %6, %279, %281 : vector<8x256xi1>, vector<8x256xf32>
    %288 = arith.select %8, %287, %286 : vector<8x256xi1>, vector<8x256xf32>
    %289 = arith.select %4, %278, %276 : vector<8x256xi1>, vector<8x256xf32>
    %290 = arith.select %6, %276, %278 : vector<8x256xi1>, vector<8x256xf32>
    %291 = arith.select %4, %281, %279 : vector<8x256xi1>, vector<8x256xf32>
    %292 = arith.select %4, %275, %273 : vector<8x256xi1>, vector<8x256xf32>
    %293 = arith.select %10, %292, %291 : vector<8x256xi1>, vector<8x256xf32>
    %294 = arith.select %10, %274, %280 : vector<8x256xi1>, vector<8x256xf32>
    %295 = arith.select %6, %279, %281 : vector<8x256xi1>, vector<8x256xf32>
    %296 = arith.select %6, %273, %275 : vector<8x256xi1>, vector<8x256xf32>
    %297 = arith.select %10, %296, %295 : vector<8x256xi1>, vector<8x256xf32>
    %c1_153 = arith.constant 1 : index
    %c0_154 = arith.constant 0 : index
    %c0_155 = arith.constant 0 : index
    %298 = vector.load %arg2[%c1_153, %c0_154, %c0_155] : memref<4x8x36xf32, #tpu.memory_space<vmem>>, vector<1x8x1xf32>
    %299 = vector.shape_cast %298 : vector<1x8x1xf32> to vector<8x1xf32>
    %300 = vector.broadcast %299 : vector<8x1xf32> to vector<8x256xf32>
    %301 = arith.mulf %300, %284 : vector<8x256xf32>
    %c1_156 = arith.constant 1 : index
    %c0_157 = arith.constant 0 : index
    %c1_158 = arith.constant 1 : index
    %302 = vector.load %arg2[%c1_156, %c0_157, %c1_158] : memref<4x8x36xf32, #tpu.memory_space<vmem>>, vector<1x8x1xf32>
    %303 = vector.shape_cast %302 : vector<1x8x1xf32> to vector<8x1xf32>
    %304 = vector.broadcast %303 : vector<8x1xf32> to vector<8x256xf32>
    %305 = arith.mulf %304, %285 : vector<8x256xf32>
    %306 = arith.addf %301, %305 : vector<8x256xf32>
    %c1_159 = arith.constant 1 : index
    %c0_160 = arith.constant 0 : index
    %c2_161 = arith.constant 2 : index
    %307 = vector.load %arg2[%c1_159, %c0_160, %c2_161] : memref<4x8x36xf32, #tpu.memory_space<vmem>>, vector<1x8x1xf32>
    %308 = vector.shape_cast %307 : vector<1x8x1xf32> to vector<8x1xf32>
    %309 = vector.broadcast %308 : vector<8x1xf32> to vector<8x256xf32>
    %310 = arith.mulf %309, %288 : vector<8x256xf32>
    %311 = arith.addf %306, %310 : vector<8x256xf32>
    %c1_162 = arith.constant 1 : index
    %c0_163 = arith.constant 0 : index
    %c3_164 = arith.constant 3 : index
    %312 = vector.load %arg2[%c1_162, %c0_163, %c3_164] : memref<4x8x36xf32, #tpu.memory_space<vmem>>, vector<1x8x1xf32>
    %313 = vector.shape_cast %312 : vector<1x8x1xf32> to vector<8x1xf32>
    %314 = vector.broadcast %313 : vector<8x1xf32> to vector<8x256xf32>
    %315 = arith.mulf %314, %289 : vector<8x256xf32>
    %316 = arith.addf %311, %315 : vector<8x256xf32>
    %c1_165 = arith.constant 1 : index
    %c0_166 = arith.constant 0 : index
    %c4_167 = arith.constant 4 : index
    %317 = vector.load %arg2[%c1_165, %c0_166, %c4_167] : memref<4x8x36xf32, #tpu.memory_space<vmem>>, vector<1x8x1xf32>
    %318 = vector.shape_cast %317 : vector<1x8x1xf32> to vector<8x1xf32>
    %319 = vector.broadcast %318 : vector<8x1xf32> to vector<8x256xf32>
    %320 = arith.mulf %319, %277 : vector<8x256xf32>
    %321 = arith.addf %316, %320 : vector<8x256xf32>
    %c1_168 = arith.constant 1 : index
    %c0_169 = arith.constant 0 : index
    %c5_170 = arith.constant 5 : index
    %322 = vector.load %arg2[%c1_168, %c0_169, %c5_170] : memref<4x8x36xf32, #tpu.memory_space<vmem>>, vector<1x8x1xf32>
    %323 = vector.shape_cast %322 : vector<1x8x1xf32> to vector<8x1xf32>
    %324 = vector.broadcast %323 : vector<8x1xf32> to vector<8x256xf32>
    %325 = arith.mulf %324, %290 : vector<8x256xf32>
    %326 = arith.addf %321, %325 : vector<8x256xf32>
    %c1_171 = arith.constant 1 : index
    %c0_172 = arith.constant 0 : index
    %c6_173 = arith.constant 6 : index
    %327 = vector.load %arg2[%c1_171, %c0_172, %c6_173] : memref<4x8x36xf32, #tpu.memory_space<vmem>>, vector<1x8x1xf32>
    %328 = vector.shape_cast %327 : vector<1x8x1xf32> to vector<8x1xf32>
    %329 = vector.broadcast %328 : vector<8x1xf32> to vector<8x256xf32>
    %330 = arith.mulf %329, %293 : vector<8x256xf32>
    %331 = arith.addf %326, %330 : vector<8x256xf32>
    %c1_174 = arith.constant 1 : index
    %c0_175 = arith.constant 0 : index
    %c7_176 = arith.constant 7 : index
    %332 = vector.load %arg2[%c1_174, %c0_175, %c7_176] : memref<4x8x36xf32, #tpu.memory_space<vmem>>, vector<1x8x1xf32>
    %333 = vector.shape_cast %332 : vector<1x8x1xf32> to vector<8x1xf32>
    %334 = vector.broadcast %333 : vector<8x1xf32> to vector<8x256xf32>
    %335 = arith.mulf %334, %294 : vector<8x256xf32>
    %336 = arith.addf %331, %335 : vector<8x256xf32>
    %c1_177 = arith.constant 1 : index
    %c0_178 = arith.constant 0 : index
    %c8_179 = arith.constant 8 : index
    %337 = vector.load %arg2[%c1_177, %c0_178, %c8_179] : memref<4x8x36xf32, #tpu.memory_space<vmem>>, vector<1x8x1xf32>
    %338 = vector.shape_cast %337 : vector<1x8x1xf32> to vector<8x1xf32>
    %339 = vector.broadcast %338 : vector<8x1xf32> to vector<8x256xf32>
    %340 = arith.mulf %339, %297 : vector<8x256xf32>
    %341 = arith.addf %336, %340 : vector<8x256xf32>
    %342 = vector.extract_strided_slice %341 {offsets = [0, 0], sizes = [4, 256], strides = [1, 1]} : vector<8x256xf32> to vector<4x256xf32>
    %cst_180 = arith.constant dense<0.000000e+00> : vector<256xf32>
    %343 = vector.multi_reduction <add>, %342, %cst_180 [0] : vector<4x256xf32> to vector<256xf32>
    %344 = vector.shape_cast %343 : vector<256xf32> to vector<1x256xf32>
    %c0_181 = arith.constant 0 : index
    %c0_182 = arith.constant 0 : index
    %345 = vector.load %arg6[%c0_181, %c0_182] : memref<8x256xf32, #tpu.memory_space<vmem>>, vector<1x256xf32>
    tpu.vector_store %arg6[%c0_181, %c0_182], %344 {strides = array<i32>} : memref<8x256xf32, #tpu.memory_space<vmem>>, vector<1x256xf32>,
    %346 = vector.extract_strided_slice %341 {offsets = [4, 0], sizes = [4, 256], strides = [1, 1]} : vector<8x256xf32> to vector<4x256xf32>
    %cst_183 = arith.constant dense<0.000000e+00> : vector<256xf32>
    %347 = vector.multi_reduction <add>, %346, %cst_183 [0] : vector<4x256xf32> to vector<256xf32>
    %348 = vector.shape_cast %347 : vector<256xf32> to vector<1x256xf32>
    %c4_184 = arith.constant 4 : index
    %c0_185 = arith.constant 0 : index
    %349 = vector.load %arg6[%c4_184, %c0_185] : memref<8x256xf32, #tpu.memory_space<vmem>>, vector<1x256xf32>
    tpu.vector_store %arg6[%c4_184, %c0_185], %348 {strides = array<i32>} : memref<8x256xf32, #tpu.memory_space<vmem>>, vector<1x256xf32>,
    %c1_186 = arith.constant 1 : index
    %c0_187 = arith.constant 0 : index
    %c9_188 = arith.constant 9 : index
    %350 = vector.load %arg2[%c1_186, %c0_187, %c9_188] : memref<4x8x36xf32, #tpu.memory_space<vmem>>, vector<1x8x1xf32>
    %351 = vector.shape_cast %350 : vector<1x8x1xf32> to vector<8x1xf32>
    %352 = vector.broadcast %351 : vector<8x1xf32> to vector<8x256xf32>
    %353 = arith.mulf %352, %284 : vector<8x256xf32>
    %c1_189 = arith.constant 1 : index
    %c0_190 = arith.constant 0 : index
    %c10_191 = arith.constant 10 : index
    %354 = vector.load %arg2[%c1_189, %c0_190, %c10_191] : memref<4x8x36xf32, #tpu.memory_space<vmem>>, vector<1x8x1xf32>
    %355 = vector.shape_cast %354 : vector<1x8x1xf32> to vector<8x1xf32>
    %356 = vector.broadcast %355 : vector<8x1xf32> to vector<8x256xf32>
    %357 = arith.mulf %356, %285 : vector<8x256xf32>
    %358 = arith.addf %353, %357 : vector<8x256xf32>
    %c1_192 = arith.constant 1 : index
    %c0_193 = arith.constant 0 : index
    %c11_194 = arith.constant 11 : index
    %359 = vector.load %arg2[%c1_192, %c0_193, %c11_194] : memref<4x8x36xf32, #tpu.memory_space<vmem>>, vector<1x8x1xf32>
    %360 = vector.shape_cast %359 : vector<1x8x1xf32> to vector<8x1xf32>
    %361 = vector.broadcast %360 : vector<8x1xf32> to vector<8x256xf32>
    %362 = arith.mulf %361, %288 : vector<8x256xf32>
    %363 = arith.addf %358, %362 : vector<8x256xf32>
    %c1_195 = arith.constant 1 : index
    %c0_196 = arith.constant 0 : index
    %c12_197 = arith.constant 12 : index
    %364 = vector.load %arg2[%c1_195, %c0_196, %c12_197] : memref<4x8x36xf32, #tpu.memory_space<vmem>>, vector<1x8x1xf32>
    %365 = vector.shape_cast %364 : vector<1x8x1xf32> to vector<8x1xf32>
    %366 = vector.broadcast %365 : vector<8x1xf32> to vector<8x256xf32>
    %367 = arith.mulf %366, %289 : vector<8x256xf32>
    %368 = arith.addf %363, %367 : vector<8x256xf32>
    %c1_198 = arith.constant 1 : index
    %c0_199 = arith.constant 0 : index
    %c13_200 = arith.constant 13 : index
    %369 = vector.load %arg2[%c1_198, %c0_199, %c13_200] : memref<4x8x36xf32, #tpu.memory_space<vmem>>, vector<1x8x1xf32>
    %370 = vector.shape_cast %369 : vector<1x8x1xf32> to vector<8x1xf32>
    %371 = vector.broadcast %370 : vector<8x1xf32> to vector<8x256xf32>
    %372 = arith.mulf %371, %277 : vector<8x256xf32>
    %373 = arith.addf %368, %372 : vector<8x256xf32>
    %c1_201 = arith.constant 1 : index
    %c0_202 = arith.constant 0 : index
    %c14_203 = arith.constant 14 : index
    %374 = vector.load %arg2[%c1_201, %c0_202, %c14_203] : memref<4x8x36xf32, #tpu.memory_space<vmem>>, vector<1x8x1xf32>
    %375 = vector.shape_cast %374 : vector<1x8x1xf32> to vector<8x1xf32>
    %376 = vector.broadcast %375 : vector<8x1xf32> to vector<8x256xf32>
    %377 = arith.mulf %376, %290 : vector<8x256xf32>
    %378 = arith.addf %373, %377 : vector<8x256xf32>
    %c1_204 = arith.constant 1 : index
    %c0_205 = arith.constant 0 : index
    %c15_206 = arith.constant 15 : index
    %379 = vector.load %arg2[%c1_204, %c0_205, %c15_206] : memref<4x8x36xf32, #tpu.memory_space<vmem>>, vector<1x8x1xf32>
    %380 = vector.shape_cast %379 : vector<1x8x1xf32> to vector<8x1xf32>
    %381 = vector.broadcast %380 : vector<8x1xf32> to vector<8x256xf32>
    %382 = arith.mulf %381, %293 : vector<8x256xf32>
    %383 = arith.addf %378, %382 : vector<8x256xf32>
    %c1_207 = arith.constant 1 : index
    %c0_208 = arith.constant 0 : index
    %c16_209 = arith.constant 16 : index
    %384 = vector.load %arg2[%c1_207, %c0_208, %c16_209] : memref<4x8x36xf32, #tpu.memory_space<vmem>>, vector<1x8x1xf32>
    %385 = vector.shape_cast %384 : vector<1x8x1xf32> to vector<8x1xf32>
    %386 = vector.broadcast %385 : vector<8x1xf32> to vector<8x256xf32>
    %387 = arith.mulf %386, %294 : vector<8x256xf32>
    %388 = arith.addf %383, %387 : vector<8x256xf32>
    %c1_210 = arith.constant 1 : index
    %c0_211 = arith.constant 0 : index
    %c17_212 = arith.constant 17 : index
    %389 = vector.load %arg2[%c1_210, %c0_211, %c17_212] : memref<4x8x36xf32, #tpu.memory_space<vmem>>, vector<1x8x1xf32>
    %390 = vector.shape_cast %389 : vector<1x8x1xf32> to vector<8x1xf32>
    %391 = vector.broadcast %390 : vector<8x1xf32> to vector<8x256xf32>
    %392 = arith.mulf %391, %297 : vector<8x256xf32>
    %393 = arith.addf %388, %392 : vector<8x256xf32>
    %394 = vector.extract_strided_slice %393 {offsets = [0, 0], sizes = [4, 256], strides = [1, 1]} : vector<8x256xf32> to vector<4x256xf32>
    %cst_213 = arith.constant dense<0.000000e+00> : vector<256xf32>
    %395 = vector.multi_reduction <add>, %394, %cst_213 [0] : vector<4x256xf32> to vector<256xf32>
    %396 = vector.shape_cast %395 : vector<256xf32> to vector<1x256xf32>
    %c1_214 = arith.constant 1 : index
    %c0_215 = arith.constant 0 : index
    %397 = vector.load %arg6[%c1_214, %c0_215] : memref<8x256xf32, #tpu.memory_space<vmem>>, vector<1x256xf32>
    tpu.vector_store %arg6[%c1_214, %c0_215], %396 {strides = array<i32>} : memref<8x256xf32, #tpu.memory_space<vmem>>, vector<1x256xf32>,
    %398 = vector.extract_strided_slice %393 {offsets = [4, 0], sizes = [4, 256], strides = [1, 1]} : vector<8x256xf32> to vector<4x256xf32>
    %cst_216 = arith.constant dense<0.000000e+00> : vector<256xf32>
    %399 = vector.multi_reduction <add>, %398, %cst_216 [0] : vector<4x256xf32> to vector<256xf32>
    %400 = vector.shape_cast %399 : vector<256xf32> to vector<1x256xf32>
    %c5_217 = arith.constant 5 : index
    %c0_218 = arith.constant 0 : index
    %401 = vector.load %arg6[%c5_217, %c0_218] : memref<8x256xf32, #tpu.memory_space<vmem>>, vector<1x256xf32>
    tpu.vector_store %arg6[%c5_217, %c0_218], %400 {strides = array<i32>} : memref<8x256xf32, #tpu.memory_space<vmem>>, vector<1x256xf32>,
    %c1_219 = arith.constant 1 : index
    %c0_220 = arith.constant 0 : index
    %c18_221 = arith.constant 18 : index
    %402 = vector.load %arg2[%c1_219, %c0_220, %c18_221] : memref<4x8x36xf32, #tpu.memory_space<vmem>>, vector<1x8x1xf32>
    %403 = vector.shape_cast %402 : vector<1x8x1xf32> to vector<8x1xf32>
    %404 = vector.broadcast %403 : vector<8x1xf32> to vector<8x256xf32>
    %405 = arith.mulf %404, %284 : vector<8x256xf32>
    %c1_222 = arith.constant 1 : index
    %c0_223 = arith.constant 0 : index
    %c19_224 = arith.constant 19 : index
    %406 = vector.load %arg2[%c1_222, %c0_223, %c19_224] : memref<4x8x36xf32, #tpu.memory_space<vmem>>, vector<1x8x1xf32>
    %407 = vector.shape_cast %406 : vector<1x8x1xf32> to vector<8x1xf32>
    %408 = vector.broadcast %407 : vector<8x1xf32> to vector<8x256xf32>
    %409 = arith.mulf %408, %285 : vector<8x256xf32>
    %410 = arith.addf %405, %409 : vector<8x256xf32>
    %c1_225 = arith.constant 1 : index
    %c0_226 = arith.constant 0 : index
    %c20_227 = arith.constant 20 : index
    %411 = vector.load %arg2[%c1_225, %c0_226, %c20_227] : memref<4x8x36xf32, #tpu.memory_space<vmem>>, vector<1x8x1xf32>
    %412 = vector.shape_cast %411 : vector<1x8x1xf32> to vector<8x1xf32>
    %413 = vector.broadcast %412 : vector<8x1xf32> to vector<8x256xf32>
    %414 = arith.mulf %413, %288 : vector<8x256xf32>
    %415 = arith.addf %410, %414 : vector<8x256xf32>
    %c1_228 = arith.constant 1 : index
    %c0_229 = arith.constant 0 : index
    %c21_230 = arith.constant 21 : index
    %416 = vector.load %arg2[%c1_228, %c0_229, %c21_230] : memref<4x8x36xf32, #tpu.memory_space<vmem>>, vector<1x8x1xf32>
    %417 = vector.shape_cast %416 : vector<1x8x1xf32> to vector<8x1xf32>
    %418 = vector.broadcast %417 : vector<8x1xf32> to vector<8x256xf32>
    %419 = arith.mulf %418, %289 : vector<8x256xf32>
    %420 = arith.addf %415, %419 : vector<8x256xf32>
    %c1_231 = arith.constant 1 : index
    %c0_232 = arith.constant 0 : index
    %c22_233 = arith.constant 22 : index
    %421 = vector.load %arg2[%c1_231, %c0_232, %c22_233] : memref<4x8x36xf32, #tpu.memory_space<vmem>>, vector<1x8x1xf32>
    %422 = vector.shape_cast %421 : vector<1x8x1xf32> to vector<8x1xf32>
    %423 = vector.broadcast %422 : vector<8x1xf32> to vector<8x256xf32>
    %424 = arith.mulf %423, %277 : vector<8x256xf32>
    %425 = arith.addf %420, %424 : vector<8x256xf32>
    %c1_234 = arith.constant 1 : index
    %c0_235 = arith.constant 0 : index
    %c23_236 = arith.constant 23 : index
    %426 = vector.load %arg2[%c1_234, %c0_235, %c23_236] : memref<4x8x36xf32, #tpu.memory_space<vmem>>, vector<1x8x1xf32>
    %427 = vector.shape_cast %426 : vector<1x8x1xf32> to vector<8x1xf32>
    %428 = vector.broadcast %427 : vector<8x1xf32> to vector<8x256xf32>
    %429 = arith.mulf %428, %290 : vector<8x256xf32>
    %430 = arith.addf %425, %429 : vector<8x256xf32>
    %c1_237 = arith.constant 1 : index
    %c0_238 = arith.constant 0 : index
    %c24_239 = arith.constant 24 : index
    %431 = vector.load %arg2[%c1_237, %c0_238, %c24_239] : memref<4x8x36xf32, #tpu.memory_space<vmem>>, vector<1x8x1xf32>
    %432 = vector.shape_cast %431 : vector<1x8x1xf32> to vector<8x1xf32>
    %433 = vector.broadcast %432 : vector<8x1xf32> to vector<8x256xf32>
    %434 = arith.mulf %433, %293 : vector<8x256xf32>
    %435 = arith.addf %430, %434 : vector<8x256xf32>
    %c1_240 = arith.constant 1 : index
    %c0_241 = arith.constant 0 : index
    %c25_242 = arith.constant 25 : index
    %436 = vector.load %arg2[%c1_240, %c0_241, %c25_242] : memref<4x8x36xf32, #tpu.memory_space<vmem>>, vector<1x8x1xf32>
    %437 = vector.shape_cast %436 : vector<1x8x1xf32> to vector<8x1xf32>
    %438 = vector.broadcast %437 : vector<8x1xf32> to vector<8x256xf32>
    %439 = arith.mulf %438, %294 : vector<8x256xf32>
    %440 = arith.addf %435, %439 : vector<8x256xf32>
    %c1_243 = arith.constant 1 : index
    %c0_244 = arith.constant 0 : index
    %c26_245 = arith.constant 26 : index
    %441 = vector.load %arg2[%c1_243, %c0_244, %c26_245] : memref<4x8x36xf32, #tpu.memory_space<vmem>>, vector<1x8x1xf32>
    %442 = vector.shape_cast %441 : vector<1x8x1xf32> to vector<8x1xf32>
    %443 = vector.broadcast %442 : vector<8x1xf32> to vector<8x256xf32>
    %444 = arith.mulf %443, %297 : vector<8x256xf32>
    %445 = arith.addf %440, %444 : vector<8x256xf32>
    %446 = vector.extract_strided_slice %445 {offsets = [0, 0], sizes = [4, 256], strides = [1, 1]} : vector<8x256xf32> to vector<4x256xf32>
    %cst_246 = arith.constant dense<0.000000e+00> : vector<256xf32>
    %447 = vector.multi_reduction <add>, %446, %cst_246 [0] : vector<4x256xf32> to vector<256xf32>
    %448 = vector.shape_cast %447 : vector<256xf32> to vector<1x256xf32>
    %c2_247 = arith.constant 2 : index
    %c0_248 = arith.constant 0 : index
    %449 = vector.load %arg6[%c2_247, %c0_248] : memref<8x256xf32, #tpu.memory_space<vmem>>, vector<1x256xf32>
    tpu.vector_store %arg6[%c2_247, %c0_248], %448 {strides = array<i32>} : memref<8x256xf32, #tpu.memory_space<vmem>>, vector<1x256xf32>,
    %450 = vector.extract_strided_slice %445 {offsets = [4, 0], sizes = [4, 256], strides = [1, 1]} : vector<8x256xf32> to vector<4x256xf32>
    %cst_249 = arith.constant dense<0.000000e+00> : vector<256xf32>
    %451 = vector.multi_reduction <add>, %450, %cst_249 [0] : vector<4x256xf32> to vector<256xf32>
    %452 = vector.shape_cast %451 : vector<256xf32> to vector<1x256xf32>
    %c6_250 = arith.constant 6 : index
    %c0_251 = arith.constant 0 : index
    %453 = vector.load %arg6[%c6_250, %c0_251] : memref<8x256xf32, #tpu.memory_space<vmem>>, vector<1x256xf32>
    tpu.vector_store %arg6[%c6_250, %c0_251], %452 {strides = array<i32>} : memref<8x256xf32, #tpu.memory_space<vmem>>, vector<1x256xf32>,
    %c1_252 = arith.constant 1 : index
    %c0_253 = arith.constant 0 : index
    %c27_254 = arith.constant 27 : index
    %454 = vector.load %arg2[%c1_252, %c0_253, %c27_254] : memref<4x8x36xf32, #tpu.memory_space<vmem>>, vector<1x8x1xf32>
    %455 = vector.shape_cast %454 : vector<1x8x1xf32> to vector<8x1xf32>
    %456 = vector.broadcast %455 : vector<8x1xf32> to vector<8x256xf32>
    %457 = arith.mulf %456, %284 : vector<8x256xf32>
    %c1_255 = arith.constant 1 : index
    %c0_256 = arith.constant 0 : index
    %c28_257 = arith.constant 28 : index
    %458 = vector.load %arg2[%c1_255, %c0_256, %c28_257] : memref<4x8x36xf32, #tpu.memory_space<vmem>>, vector<1x8x1xf32>
    %459 = vector.shape_cast %458 : vector<1x8x1xf32> to vector<8x1xf32>
    %460 = vector.broadcast %459 : vector<8x1xf32> to vector<8x256xf32>
    %461 = arith.mulf %460, %285 : vector<8x256xf32>
    %462 = arith.addf %457, %461 : vector<8x256xf32>
    %c1_258 = arith.constant 1 : index
    %c0_259 = arith.constant 0 : index
    %c29_260 = arith.constant 29 : index
    %463 = vector.load %arg2[%c1_258, %c0_259, %c29_260] : memref<4x8x36xf32, #tpu.memory_space<vmem>>, vector<1x8x1xf32>
    %464 = vector.shape_cast %463 : vector<1x8x1xf32> to vector<8x1xf32>
    %465 = vector.broadcast %464 : vector<8x1xf32> to vector<8x256xf32>
    %466 = arith.mulf %465, %288 : vector<8x256xf32>
    %467 = arith.addf %462, %466 : vector<8x256xf32>
    %c1_261 = arith.constant 1 : index
    %c0_262 = arith.constant 0 : index
    %c30_263 = arith.constant 30 : index
    %468 = vector.load %arg2[%c1_261, %c0_262, %c30_263] : memref<4x8x36xf32, #tpu.memory_space<vmem>>, vector<1x8x1xf32>
    %469 = vector.shape_cast %468 : vector<1x8x1xf32> to vector<8x1xf32>
    %470 = vector.broadcast %469 : vector<8x1xf32> to vector<8x256xf32>
    %471 = arith.mulf %470, %289 : vector<8x256xf32>
    %472 = arith.addf %467, %471 : vector<8x256xf32>
    %c1_264 = arith.constant 1 : index
    %c0_265 = arith.constant 0 : index
    %c31_266 = arith.constant 31 : index
    %473 = vector.load %arg2[%c1_264, %c0_265, %c31_266] : memref<4x8x36xf32, #tpu.memory_space<vmem>>, vector<1x8x1xf32>
    %474 = vector.shape_cast %473 : vector<1x8x1xf32> to vector<8x1xf32>
    %475 = vector.broadcast %474 : vector<8x1xf32> to vector<8x256xf32>
    %476 = arith.mulf %475, %277 : vector<8x256xf32>
    %477 = arith.addf %472, %476 : vector<8x256xf32>
    %c1_267 = arith.constant 1 : index
    %c0_268 = arith.constant 0 : index
    %c32_269 = arith.constant 32 : index
    %478 = vector.load %arg2[%c1_267, %c0_268, %c32_269] : memref<4x8x36xf32, #tpu.memory_space<vmem>>, vector<1x8x1xf32>
    %479 = vector.shape_cast %478 : vector<1x8x1xf32> to vector<8x1xf32>
    %480 = vector.broadcast %479 : vector<8x1xf32> to vector<8x256xf32>
    %481 = arith.mulf %480, %290 : vector<8x256xf32>
    %482 = arith.addf %477, %481 : vector<8x256xf32>
    %c1_270 = arith.constant 1 : index
    %c0_271 = arith.constant 0 : index
    %c33_272 = arith.constant 33 : index
    %483 = vector.load %arg2[%c1_270, %c0_271, %c33_272] : memref<4x8x36xf32, #tpu.memory_space<vmem>>, vector<1x8x1xf32>
    %484 = vector.shape_cast %483 : vector<1x8x1xf32> to vector<8x1xf32>
    %485 = vector.broadcast %484 : vector<8x1xf32> to vector<8x256xf32>
    %486 = arith.mulf %485, %293 : vector<8x256xf32>
    %487 = arith.addf %482, %486 : vector<8x256xf32>
    %c1_273 = arith.constant 1 : index
    %c0_274 = arith.constant 0 : index
    %c34_275 = arith.constant 34 : index
    %488 = vector.load %arg2[%c1_273, %c0_274, %c34_275] : memref<4x8x36xf32, #tpu.memory_space<vmem>>, vector<1x8x1xf32>
    %489 = vector.shape_cast %488 : vector<1x8x1xf32> to vector<8x1xf32>
    %490 = vector.broadcast %489 : vector<8x1xf32> to vector<8x256xf32>
    %491 = arith.mulf %490, %294 : vector<8x256xf32>
    %492 = arith.addf %487, %491 : vector<8x256xf32>
    %c1_276 = arith.constant 1 : index
    %c0_277 = arith.constant 0 : index
    %c35_278 = arith.constant 35 : index
    %493 = vector.load %arg2[%c1_276, %c0_277, %c35_278] : memref<4x8x36xf32, #tpu.memory_space<vmem>>, vector<1x8x1xf32>
    %494 = vector.shape_cast %493 : vector<1x8x1xf32> to vector<8x1xf32>
    %495 = vector.broadcast %494 : vector<8x1xf32> to vector<8x256xf32>
    %496 = arith.mulf %495, %297 : vector<8x256xf32>
    %497 = arith.addf %492, %496 : vector<8x256xf32>
    %498 = vector.extract_strided_slice %497 {offsets = [0, 0], sizes = [4, 256], strides = [1, 1]} : vector<8x256xf32> to vector<4x256xf32>
    %cst_279 = arith.constant dense<0.000000e+00> : vector<256xf32>
    %499 = vector.multi_reduction <add>, %498, %cst_279 [0] : vector<4x256xf32> to vector<256xf32>
    %500 = vector.shape_cast %499 : vector<256xf32> to vector<1x256xf32>
    %c3_280 = arith.constant 3 : index
    %c0_281 = arith.constant 0 : index
    %501 = vector.load %arg6[%c3_280, %c0_281] : memref<8x256xf32, #tpu.memory_space<vmem>>, vector<1x256xf32>
    tpu.vector_store %arg6[%c3_280, %c0_281], %500 {strides = array<i32>} : memref<8x256xf32, #tpu.memory_space<vmem>>, vector<1x256xf32>,
    %502 = vector.extract_strided_slice %497 {offsets = [4, 0], sizes = [4, 256], strides = [1, 1]} : vector<8x256xf32> to vector<4x256xf32>
    %cst_282 = arith.constant dense<0.000000e+00> : vector<256xf32>
    %503 = vector.multi_reduction <add>, %502, %cst_282 [0] : vector<4x256xf32> to vector<256xf32>
    %504 = vector.shape_cast %503 : vector<256xf32> to vector<1x256xf32>
    %c7_283 = arith.constant 7 : index
    %c0_284 = arith.constant 0 : index
    %505 = vector.load %arg6[%c7_283, %c0_284] : memref<8x256xf32, #tpu.memory_space<vmem>>, vector<1x256xf32>
    tpu.vector_store %arg6[%c7_283, %c0_284], %504 {strides = array<i32>} : memref<8x256xf32, #tpu.memory_space<vmem>>, vector<1x256xf32>,
    %c0_285 = arith.constant 0 : index
    %c0_286 = arith.constant 0 : index
    %506 = vector.load %arg6[%c0_285, %c0_286] : memref<8x256xf32, #tpu.memory_space<vmem>>, vector<8x256xf32>
    %c1_287 = arith.constant 1 : index
    %c0_288 = arith.constant 0 : index
    %c0_289 = arith.constant 0 : index
    %507 = vector.load %arg3[%c1_287, %c0_288, %c0_289] : memref<4x8x1xf32, #tpu.memory_space<vmem>>, vector<1x8x1xf32>
    %508 = vector.shape_cast %507 : vector<1x8x1xf32> to vector<8x1xf32>
    %509 = vector.broadcast %508 : vector<8x1xf32> to vector<8x256xf32>
    %510 = arith.addf %506, %509 : vector<8x256xf32>
    %cst_290 = arith.constant dense<0.000000e+00> : vector<8xf32>
    %511 = vector.multi_reduction <add>, %510, %cst_290 [1] : vector<8x256xf32> to vector<8xf32>
    %512 = vector.shape_cast %511 : vector<8xf32> to vector<8x1xf32>
    %cst_291 = arith.constant 3.906250e-03 : f32
    %513 = vector.broadcast %cst_291 : f32 to vector<8x1xf32>
    %514 = arith.mulf %512, %513 : vector<8x1xf32>
    %515 = vector.broadcast %514 : vector<8x1xf32> to vector<8x256xf32>
    %516 = arith.subf %510, %515 : vector<8x256xf32>
    %517 = arith.mulf %516, %516 : vector<8x256xf32>
    %cst_292 = arith.constant dense<0.000000e+00> : vector<8xf32>
    %518 = vector.multi_reduction <add>, %517, %cst_292 [1] : vector<8x256xf32> to vector<8xf32>
    %519 = vector.shape_cast %518 : vector<8xf32> to vector<8x1xf32>
    %cst_293 = arith.constant 3.906250e-03 : f32
    %520 = vector.broadcast %cst_293 : f32 to vector<8x1xf32>
    %521 = arith.mulf %519, %520 : vector<8x1xf32>
    %cst_294 = arith.constant 9.99999974E-6 : f32
    %522 = vector.broadcast %cst_294 : f32 to vector<8x1xf32>
    %523 = arith.addf %521, %522 : vector<8x1xf32>
    %524 = math.rsqrt %523 : vector<8x1xf32>
    %525 = vector.broadcast %524 : vector<8x1xf32> to vector<8x256xf32>
    %526 = arith.mulf %516, %525 : vector<8x256xf32>
    %527 = arith.addf %526, %14 : vector<8x256xf32>
    %c0_295 = arith.constant 0 : index
    %c17_296 = arith.constant 17 : index
    %528 = vector.load %arg5[%c0_295, %c17_296] : memref<8x290xf32, #tpu.memory_space<vmem>>, vector<8x256xf32>
    tpu.vector_store %arg5[%c0_295, %c17_296], %527 {strides = array<i32>} : memref<8x290xf32, #tpu.memory_space<vmem>>, vector<8x256xf32>,
    %c0_297 = arith.constant 0 : index
    %c0_298 = arith.constant 0 : index
    %529 = vector.load %arg5[%c0_297, %c0_298] : memref<8x290xf32, #tpu.memory_space<vmem>>, vector<8x256xf32>
    %c0_299 = arith.constant 0 : index
    %c1_300 = arith.constant 1 : index
    %530 = vector.load %arg5[%c0_299, %c1_300] : memref<8x290xf32, #tpu.memory_space<vmem>>, vector<8x256xf32>
    %c0_301 = arith.constant 0 : index
    %c2_302 = arith.constant 2 : index
    %531 = vector.load %arg5[%c0_301, %c2_302] : memref<8x290xf32, #tpu.memory_space<vmem>>, vector<8x256xf32>
    %c0_303 = arith.constant 0 : index
    %c16_304 = arith.constant 16 : index
    %532 = vector.load %arg5[%c0_303, %c16_304] : memref<8x290xf32, #tpu.memory_space<vmem>>, vector<8x256xf32>
    %c0_305 = arith.constant 0 : index
    %c17_306 = arith.constant 17 : index
    %533 = vector.load %arg5[%c0_305, %c17_306] : memref<8x290xf32, #tpu.memory_space<vmem>>, vector<8x256xf32>
    %c0_307 = arith.constant 0 : index
    %c18_308 = arith.constant 18 : index
    %534 = vector.load %arg5[%c0_307, %c18_308] : memref<8x290xf32, #tpu.memory_space<vmem>>, vector<8x256xf32>
    %c0_309 = arith.constant 0 : index
    %c32_310 = arith.constant 32 : index
    %535 = vector.load %arg5[%c0_309, %c32_310] : memref<8x290xf32, #tpu.memory_space<vmem>>, vector<8x256xf32>
    %c0_311 = arith.constant 0 : index
    %c33_312 = arith.constant 33 : index
    %536 = vector.load %arg5[%c0_311, %c33_312] : memref<8x290xf32, #tpu.memory_space<vmem>>, vector<8x256xf32>
    %c0_313 = arith.constant 0 : index
    %c34_314 = arith.constant 34 : index
    %537 = vector.load %arg5[%c0_313, %c34_314] : memref<8x290xf32, #tpu.memory_space<vmem>>, vector<8x256xf32>
    %538 = arith.select %4, %531, %529 : vector<8x256xi1>, vector<8x256xf32>
    %539 = arith.select %4, %537, %535 : vector<8x256xi1>, vector<8x256xf32>
    %540 = arith.select %8, %539, %538 : vector<8x256xi1>, vector<8x256xf32>
    %541 = arith.select %8, %536, %530 : vector<8x256xi1>, vector<8x256xf32>
    %542 = arith.select %6, %529, %531 : vector<8x256xi1>, vector<8x256xf32>
    %543 = arith.select %6, %535, %537 : vector<8x256xi1>, vector<8x256xf32>
    %544 = arith.select %8, %543, %542 : vector<8x256xi1>, vector<8x256xf32>
    %545 = arith.select %4, %534, %532 : vector<8x256xi1>, vector<8x256xf32>
    %546 = arith.select %6, %532, %534 : vector<8x256xi1>, vector<8x256xf32>
    %547 = arith.select %4, %537, %535 : vector<8x256xi1>, vector<8x256xf32>
    %548 = arith.select %4, %531, %529 : vector<8x256xi1>, vector<8x256xf32>
    %549 = arith.select %10, %548, %547 : vector<8x256xi1>, vector<8x256xf32>
    %550 = arith.select %10, %530, %536 : vector<8x256xi1>, vector<8x256xf32>
    %551 = arith.select %6, %535, %537 : vector<8x256xi1>, vector<8x256xf32>
    %552 = arith.select %6, %529, %531 : vector<8x256xi1>, vector<8x256xf32>
    %553 = arith.select %10, %552, %551 : vector<8x256xi1>, vector<8x256xf32>
    %c2_315 = arith.constant 2 : index
    %c0_316 = arith.constant 0 : index
    %c0_317 = arith.constant 0 : index
    %554 = vector.load %arg2[%c2_315, %c0_316, %c0_317] : memref<4x8x36xf32, #tpu.memory_space<vmem>>, vector<1x8x1xf32>
    %555 = vector.shape_cast %554 : vector<1x8x1xf32> to vector<8x1xf32>
    %556 = vector.broadcast %555 : vector<8x1xf32> to vector<8x256xf32>
    %557 = arith.mulf %556, %540 : vector<8x256xf32>
    %c2_318 = arith.constant 2 : index
    %c0_319 = arith.constant 0 : index
    %c1_320 = arith.constant 1 : index
    %558 = vector.load %arg2[%c2_318, %c0_319, %c1_320] : memref<4x8x36xf32, #tpu.memory_space<vmem>>, vector<1x8x1xf32>
    %559 = vector.shape_cast %558 : vector<1x8x1xf32> to vector<8x1xf32>
    %560 = vector.broadcast %559 : vector<8x1xf32> to vector<8x256xf32>
    %561 = arith.mulf %560, %541 : vector<8x256xf32>
    %562 = arith.addf %557, %561 : vector<8x256xf32>
    %c2_321 = arith.constant 2 : index
    %c0_322 = arith.constant 0 : index
    %c2_323 = arith.constant 2 : index
    %563 = vector.load %arg2[%c2_321, %c0_322, %c2_323] : memref<4x8x36xf32, #tpu.memory_space<vmem>>, vector<1x8x1xf32>
    %564 = vector.shape_cast %563 : vector<1x8x1xf32> to vector<8x1xf32>
    %565 = vector.broadcast %564 : vector<8x1xf32> to vector<8x256xf32>
    %566 = arith.mulf %565, %544 : vector<8x256xf32>
    %567 = arith.addf %562, %566 : vector<8x256xf32>
    %c2_324 = arith.constant 2 : index
    %c0_325 = arith.constant 0 : index
    %c3_326 = arith.constant 3 : index
    %568 = vector.load %arg2[%c2_324, %c0_325, %c3_326] : memref<4x8x36xf32, #tpu.memory_space<vmem>>, vector<1x8x1xf32>
    %569 = vector.shape_cast %568 : vector<1x8x1xf32> to vector<8x1xf32>
    %570 = vector.broadcast %569 : vector<8x1xf32> to vector<8x256xf32>
    %571 = arith.mulf %570, %545 : vector<8x256xf32>
    %572 = arith.addf %567, %571 : vector<8x256xf32>
    %c2_327 = arith.constant 2 : index
    %c0_328 = arith.constant 0 : index
    %c4_329 = arith.constant 4 : index
    %573 = vector.load %arg2[%c2_327, %c0_328, %c4_329] : memref<4x8x36xf32, #tpu.memory_space<vmem>>, vector<1x8x1xf32>
    %574 = vector.shape_cast %573 : vector<1x8x1xf32> to vector<8x1xf32>
    %575 = vector.broadcast %574 : vector<8x1xf32> to vector<8x256xf32>
    %576 = arith.mulf %575, %533 : vector<8x256xf32>
    %577 = arith.addf %572, %576 : vector<8x256xf32>
    %c2_330 = arith.constant 2 : index
    %c0_331 = arith.constant 0 : index
    %c5_332 = arith.constant 5 : index
    %578 = vector.load %arg2[%c2_330, %c0_331, %c5_332] : memref<4x8x36xf32, #tpu.memory_space<vmem>>, vector<1x8x1xf32>
    %579 = vector.shape_cast %578 : vector<1x8x1xf32> to vector<8x1xf32>
    %580 = vector.broadcast %579 : vector<8x1xf32> to vector<8x256xf32>
    %581 = arith.mulf %580, %546 : vector<8x256xf32>
    %582 = arith.addf %577, %581 : vector<8x256xf32>
    %c2_333 = arith.constant 2 : index
    %c0_334 = arith.constant 0 : index
    %c6_335 = arith.constant 6 : index
    %583 = vector.load %arg2[%c2_333, %c0_334, %c6_335] : memref<4x8x36xf32, #tpu.memory_space<vmem>>, vector<1x8x1xf32>
    %584 = vector.shape_cast %583 : vector<1x8x1xf32> to vector<8x1xf32>
    %585 = vector.broadcast %584 : vector<8x1xf32> to vector<8x256xf32>
    %586 = arith.mulf %585, %549 : vector<8x256xf32>
    %587 = arith.addf %582, %586 : vector<8x256xf32>
    %c2_336 = arith.constant 2 : index
    %c0_337 = arith.constant 0 : index
    %c7_338 = arith.constant 7 : index
    %588 = vector.load %arg2[%c2_336, %c0_337, %c7_338] : memref<4x8x36xf32, #tpu.memory_space<vmem>>, vector<1x8x1xf32>
    %589 = vector.shape_cast %588 : vector<1x8x1xf32> to vector<8x1xf32>
    %590 = vector.broadcast %589 : vector<8x1xf32> to vector<8x256xf32>
    %591 = arith.mulf %590, %550 : vector<8x256xf32>
    %592 = arith.addf %587, %591 : vector<8x256xf32>
    %c2_339 = arith.constant 2 : index
    %c0_340 = arith.constant 0 : index
    %c8_341 = arith.constant 8 : index
    %593 = vector.load %arg2[%c2_339, %c0_340, %c8_341] : memref<4x8x36xf32, #tpu.memory_space<vmem>>, vector<1x8x1xf32>
    %594 = vector.shape_cast %593 : vector<1x8x1xf32> to vector<8x1xf32>
    %595 = vector.broadcast %594 : vector<8x1xf32> to vector<8x256xf32>
    %596 = arith.mulf %595, %553 : vector<8x256xf32>
    %597 = arith.addf %592, %596 : vector<8x256xf32>
    %598 = vector.extract_strided_slice %597 {offsets = [0, 0], sizes = [4, 256], strides = [1, 1]} : vector<8x256xf32> to vector<4x256xf32>
    %cst_342 = arith.constant dense<0.000000e+00> : vector<256xf32>
    %599 = vector.multi_reduction <add>, %598, %cst_342 [0] : vector<4x256xf32> to vector<256xf32>
    %600 = vector.shape_cast %599 : vector<256xf32> to vector<1x256xf32>
    %c0_343 = arith.constant 0 : index
    %c0_344 = arith.constant 0 : index
    %601 = vector.load %arg6[%c0_343, %c0_344] : memref<8x256xf32, #tpu.memory_space<vmem>>, vector<1x256xf32>
    tpu.vector_store %arg6[%c0_343, %c0_344], %600 {strides = array<i32>} : memref<8x256xf32, #tpu.memory_space<vmem>>, vector<1x256xf32>,
    %602 = vector.extract_strided_slice %597 {offsets = [4, 0], sizes = [4, 256], strides = [1, 1]} : vector<8x256xf32> to vector<4x256xf32>
    %cst_345 = arith.constant dense<0.000000e+00> : vector<256xf32>
    %603 = vector.multi_reduction <add>, %602, %cst_345 [0] : vector<4x256xf32> to vector<256xf32>
    %604 = vector.shape_cast %603 : vector<256xf32> to vector<1x256xf32>
    %c4_346 = arith.constant 4 : index
    %c0_347 = arith.constant 0 : index
    %605 = vector.load %arg6[%c4_346, %c0_347] : memref<8x256xf32, #tpu.memory_space<vmem>>, vector<1x256xf32>
    tpu.vector_store %arg6[%c4_346, %c0_347], %604 {strides = array<i32>} : memref<8x256xf32, #tpu.memory_space<vmem>>, vector<1x256xf32>,
    %c2_348 = arith.constant 2 : index
    %c0_349 = arith.constant 0 : index
    %c9_350 = arith.constant 9 : index
    %606 = vector.load %arg2[%c2_348, %c0_349, %c9_350] : memref<4x8x36xf32, #tpu.memory_space<vmem>>, vector<1x8x1xf32>
    %607 = vector.shape_cast %606 : vector<1x8x1xf32> to vector<8x1xf32>
    %608 = vector.broadcast %607 : vector<8x1xf32> to vector<8x256xf32>
    %609 = arith.mulf %608, %540 : vector<8x256xf32>
    %c2_351 = arith.constant 2 : index
    %c0_352 = arith.constant 0 : index
    %c10_353 = arith.constant 10 : index
    %610 = vector.load %arg2[%c2_351, %c0_352, %c10_353] : memref<4x8x36xf32, #tpu.memory_space<vmem>>, vector<1x8x1xf32>
    %611 = vector.shape_cast %610 : vector<1x8x1xf32> to vector<8x1xf32>
    %612 = vector.broadcast %611 : vector<8x1xf32> to vector<8x256xf32>
    %613 = arith.mulf %612, %541 : vector<8x256xf32>
    %614 = arith.addf %609, %613 : vector<8x256xf32>
    %c2_354 = arith.constant 2 : index
    %c0_355 = arith.constant 0 : index
    %c11_356 = arith.constant 11 : index
    %615 = vector.load %arg2[%c2_354, %c0_355, %c11_356] : memref<4x8x36xf32, #tpu.memory_space<vmem>>, vector<1x8x1xf32>
    %616 = vector.shape_cast %615 : vector<1x8x1xf32> to vector<8x1xf32>
    %617 = vector.broadcast %616 : vector<8x1xf32> to vector<8x256xf32>
    %618 = arith.mulf %617, %544 : vector<8x256xf32>
    %619 = arith.addf %614, %618 : vector<8x256xf32>
    %c2_357 = arith.constant 2 : index
    %c0_358 = arith.constant 0 : index
    %c12_359 = arith.constant 12 : index
    %620 = vector.load %arg2[%c2_357, %c0_358, %c12_359] : memref<4x8x36xf32, #tpu.memory_space<vmem>>, vector<1x8x1xf32>
    %621 = vector.shape_cast %620 : vector<1x8x1xf32> to vector<8x1xf32>
    %622 = vector.broadcast %621 : vector<8x1xf32> to vector<8x256xf32>
    %623 = arith.mulf %622, %545 : vector<8x256xf32>
    %624 = arith.addf %619, %623 : vector<8x256xf32>
    %c2_360 = arith.constant 2 : index
    %c0_361 = arith.constant 0 : index
    %c13_362 = arith.constant 13 : index
    %625 = vector.load %arg2[%c2_360, %c0_361, %c13_362] : memref<4x8x36xf32, #tpu.memory_space<vmem>>, vector<1x8x1xf32>
    %626 = vector.shape_cast %625 : vector<1x8x1xf32> to vector<8x1xf32>
    %627 = vector.broadcast %626 : vector<8x1xf32> to vector<8x256xf32>
    %628 = arith.mulf %627, %533 : vector<8x256xf32>
    %629 = arith.addf %624, %628 : vector<8x256xf32>
    %c2_363 = arith.constant 2 : index
    %c0_364 = arith.constant 0 : index
    %c14_365 = arith.constant 14 : index
    %630 = vector.load %arg2[%c2_363, %c0_364, %c14_365] : memref<4x8x36xf32, #tpu.memory_space<vmem>>, vector<1x8x1xf32>
    %631 = vector.shape_cast %630 : vector<1x8x1xf32> to vector<8x1xf32>
    %632 = vector.broadcast %631 : vector<8x1xf32> to vector<8x256xf32>
    %633 = arith.mulf %632, %546 : vector<8x256xf32>
    %634 = arith.addf %629, %633 : vector<8x256xf32>
    %c2_366 = arith.constant 2 : index
    %c0_367 = arith.constant 0 : index
    %c15_368 = arith.constant 15 : index
    %635 = vector.load %arg2[%c2_366, %c0_367, %c15_368] : memref<4x8x36xf32, #tpu.memory_space<vmem>>, vector<1x8x1xf32>
    %636 = vector.shape_cast %635 : vector<1x8x1xf32> to vector<8x1xf32>
    %637 = vector.broadcast %636 : vector<8x1xf32> to vector<8x256xf32>
    %638 = arith.mulf %637, %549 : vector<8x256xf32>
    %639 = arith.addf %634, %638 : vector<8x256xf32>
    %c2_369 = arith.constant 2 : index
    %c0_370 = arith.constant 0 : index
    %c16_371 = arith.constant 16 : index
    %640 = vector.load %arg2[%c2_369, %c0_370, %c16_371] : memref<4x8x36xf32, #tpu.memory_space<vmem>>, vector<1x8x1xf32>
    %641 = vector.shape_cast %640 : vector<1x8x1xf32> to vector<8x1xf32>
    %642 = vector.broadcast %641 : vector<8x1xf32> to vector<8x256xf32>
    %643 = arith.mulf %642, %550 : vector<8x256xf32>
    %644 = arith.addf %639, %643 : vector<8x256xf32>
    %c2_372 = arith.constant 2 : index
    %c0_373 = arith.constant 0 : index
    %c17_374 = arith.constant 17 : index
    %645 = vector.load %arg2[%c2_372, %c0_373, %c17_374] : memref<4x8x36xf32, #tpu.memory_space<vmem>>, vector<1x8x1xf32>
    %646 = vector.shape_cast %645 : vector<1x8x1xf32> to vector<8x1xf32>
    %647 = vector.broadcast %646 : vector<8x1xf32> to vector<8x256xf32>
    %648 = arith.mulf %647, %553 : vector<8x256xf32>
    %649 = arith.addf %644, %648 : vector<8x256xf32>
    %650 = vector.extract_strided_slice %649 {offsets = [0, 0], sizes = [4, 256], strides = [1, 1]} : vector<8x256xf32> to vector<4x256xf32>
    %cst_375 = arith.constant dense<0.000000e+00> : vector<256xf32>
    %651 = vector.multi_reduction <add>, %650, %cst_375 [0] : vector<4x256xf32> to vector<256xf32>
    %652 = vector.shape_cast %651 : vector<256xf32> to vector<1x256xf32>
    %c1_376 = arith.constant 1 : index
    %c0_377 = arith.constant 0 : index
    %653 = vector.load %arg6[%c1_376, %c0_377] : memref<8x256xf32, #tpu.memory_space<vmem>>, vector<1x256xf32>
    tpu.vector_store %arg6[%c1_376, %c0_377], %652 {strides = array<i32>} : memref<8x256xf32, #tpu.memory_space<vmem>>, vector<1x256xf32>,
    %654 = vector.extract_strided_slice %649 {offsets = [4, 0], sizes = [4, 256], strides = [1, 1]} : vector<8x256xf32> to vector<4x256xf32>
    %cst_378 = arith.constant dense<0.000000e+00> : vector<256xf32>
    %655 = vector.multi_reduction <add>, %654, %cst_378 [0] : vector<4x256xf32> to vector<256xf32>
    %656 = vector.shape_cast %655 : vector<256xf32> to vector<1x256xf32>
    %c5_379 = arith.constant 5 : index
    %c0_380 = arith.constant 0 : index
    %657 = vector.load %arg6[%c5_379, %c0_380] : memref<8x256xf32, #tpu.memory_space<vmem>>, vector<1x256xf32>
    tpu.vector_store %arg6[%c5_379, %c0_380], %656 {strides = array<i32>} : memref<8x256xf32, #tpu.memory_space<vmem>>, vector<1x256xf32>,
    %c2_381 = arith.constant 2 : index
    %c0_382 = arith.constant 0 : index
    %c18_383 = arith.constant 18 : index
    %658 = vector.load %arg2[%c2_381, %c0_382, %c18_383] : memref<4x8x36xf32, #tpu.memory_space<vmem>>, vector<1x8x1xf32>
    %659 = vector.shape_cast %658 : vector<1x8x1xf32> to vector<8x1xf32>
    %660 = vector.broadcast %659 : vector<8x1xf32> to vector<8x256xf32>
    %661 = arith.mulf %660, %540 : vector<8x256xf32>
    %c2_384 = arith.constant 2 : index
    %c0_385 = arith.constant 0 : index
    %c19_386 = arith.constant 19 : index
    %662 = vector.load %arg2[%c2_384, %c0_385, %c19_386] : memref<4x8x36xf32, #tpu.memory_space<vmem>>, vector<1x8x1xf32>
    %663 = vector.shape_cast %662 : vector<1x8x1xf32> to vector<8x1xf32>
    %664 = vector.broadcast %663 : vector<8x1xf32> to vector<8x256xf32>
    %665 = arith.mulf %664, %541 : vector<8x256xf32>
    %666 = arith.addf %661, %665 : vector<8x256xf32>
    %c2_387 = arith.constant 2 : index
    %c0_388 = arith.constant 0 : index
    %c20_389 = arith.constant 20 : index
    %667 = vector.load %arg2[%c2_387, %c0_388, %c20_389] : memref<4x8x36xf32, #tpu.memory_space<vmem>>, vector<1x8x1xf32>
    %668 = vector.shape_cast %667 : vector<1x8x1xf32> to vector<8x1xf32>
    %669 = vector.broadcast %668 : vector<8x1xf32> to vector<8x256xf32>
    %670 = arith.mulf %669, %544 : vector<8x256xf32>
    %671 = arith.addf %666, %670 : vector<8x256xf32>
    %c2_390 = arith.constant 2 : index
    %c0_391 = arith.constant 0 : index
    %c21_392 = arith.constant 21 : index
    %672 = vector.load %arg2[%c2_390, %c0_391, %c21_392] : memref<4x8x36xf32, #tpu.memory_space<vmem>>, vector<1x8x1xf32>
    %673 = vector.shape_cast %672 : vector<1x8x1xf32> to vector<8x1xf32>
    %674 = vector.broadcast %673 : vector<8x1xf32> to vector<8x256xf32>
    %675 = arith.mulf %674, %545 : vector<8x256xf32>
    %676 = arith.addf %671, %675 : vector<8x256xf32>
    %c2_393 = arith.constant 2 : index
    %c0_394 = arith.constant 0 : index
    %c22_395 = arith.constant 22 : index
    %677 = vector.load %arg2[%c2_393, %c0_394, %c22_395] : memref<4x8x36xf32, #tpu.memory_space<vmem>>, vector<1x8x1xf32>
    %678 = vector.shape_cast %677 : vector<1x8x1xf32> to vector<8x1xf32>
    %679 = vector.broadcast %678 : vector<8x1xf32> to vector<8x256xf32>
    %680 = arith.mulf %679, %533 : vector<8x256xf32>
    %681 = arith.addf %676, %680 : vector<8x256xf32>
    %c2_396 = arith.constant 2 : index
    %c0_397 = arith.constant 0 : index
    %c23_398 = arith.constant 23 : index
    %682 = vector.load %arg2[%c2_396, %c0_397, %c23_398] : memref<4x8x36xf32, #tpu.memory_space<vmem>>, vector<1x8x1xf32>
    %683 = vector.shape_cast %682 : vector<1x8x1xf32> to vector<8x1xf32>
    %684 = vector.broadcast %683 : vector<8x1xf32> to vector<8x256xf32>
    %685 = arith.mulf %684, %546 : vector<8x256xf32>
    %686 = arith.addf %681, %685 : vector<8x256xf32>
    %c2_399 = arith.constant 2 : index
    %c0_400 = arith.constant 0 : index
    %c24_401 = arith.constant 24 : index
    %687 = vector.load %arg2[%c2_399, %c0_400, %c24_401] : memref<4x8x36xf32, #tpu.memory_space<vmem>>, vector<1x8x1xf32>
    %688 = vector.shape_cast %687 : vector<1x8x1xf32> to vector<8x1xf32>
    %689 = vector.broadcast %688 : vector<8x1xf32> to vector<8x256xf32>
    %690 = arith.mulf %689, %549 : vector<8x256xf32>
    %691 = arith.addf %686, %690 : vector<8x256xf32>
    %c2_402 = arith.constant 2 : index
    %c0_403 = arith.constant 0 : index
    %c25_404 = arith.constant 25 : index
    %692 = vector.load %arg2[%c2_402, %c0_403, %c25_404] : memref<4x8x36xf32, #tpu.memory_space<vmem>>, vector<1x8x1xf32>
    %693 = vector.shape_cast %692 : vector<1x8x1xf32> to vector<8x1xf32>
    %694 = vector.broadcast %693 : vector<8x1xf32> to vector<8x256xf32>
    %695 = arith.mulf %694, %550 : vector<8x256xf32>
    %696 = arith.addf %691, %695 : vector<8x256xf32>
    %c2_405 = arith.constant 2 : index
    %c0_406 = arith.constant 0 : index
    %c26_407 = arith.constant 26 : index
    %697 = vector.load %arg2[%c2_405, %c0_406, %c26_407] : memref<4x8x36xf32, #tpu.memory_space<vmem>>, vector<1x8x1xf32>
    %698 = vector.shape_cast %697 : vector<1x8x1xf32> to vector<8x1xf32>
    %699 = vector.broadcast %698 : vector<8x1xf32> to vector<8x256xf32>
    %700 = arith.mulf %699, %553 : vector<8x256xf32>
    %701 = arith.addf %696, %700 : vector<8x256xf32>
    %702 = vector.extract_strided_slice %701 {offsets = [0, 0], sizes = [4, 256], strides = [1, 1]} : vector<8x256xf32> to vector<4x256xf32>
    %cst_408 = arith.constant dense<0.000000e+00> : vector<256xf32>
    %703 = vector.multi_reduction <add>, %702, %cst_408 [0] : vector<4x256xf32> to vector<256xf32>
    %704 = vector.shape_cast %703 : vector<256xf32> to vector<1x256xf32>
    %c2_409 = arith.constant 2 : index
    %c0_410 = arith.constant 0 : index
    %705 = vector.load %arg6[%c2_409, %c0_410] : memref<8x256xf32, #tpu.memory_space<vmem>>, vector<1x256xf32>
    tpu.vector_store %arg6[%c2_409, %c0_410], %704 {strides = array<i32>} : memref<8x256xf32, #tpu.memory_space<vmem>>, vector<1x256xf32>,
    %706 = vector.extract_strided_slice %701 {offsets = [4, 0], sizes = [4, 256], strides = [1, 1]} : vector<8x256xf32> to vector<4x256xf32>
    %cst_411 = arith.constant dense<0.000000e+00> : vector<256xf32>
    %707 = vector.multi_reduction <add>, %706, %cst_411 [0] : vector<4x256xf32> to vector<256xf32>
    %708 = vector.shape_cast %707 : vector<256xf32> to vector<1x256xf32>
    %c6_412 = arith.constant 6 : index
    %c0_413 = arith.constant 0 : index
    %709 = vector.load %arg6[%c6_412, %c0_413] : memref<8x256xf32, #tpu.memory_space<vmem>>, vector<1x256xf32>
    tpu.vector_store %arg6[%c6_412, %c0_413], %708 {strides = array<i32>} : memref<8x256xf32, #tpu.memory_space<vmem>>, vector<1x256xf32>,
    %c2_414 = arith.constant 2 : index
    %c0_415 = arith.constant 0 : index
    %c27_416 = arith.constant 27 : index
    %710 = vector.load %arg2[%c2_414, %c0_415, %c27_416] : memref<4x8x36xf32, #tpu.memory_space<vmem>>, vector<1x8x1xf32>
    %711 = vector.shape_cast %710 : vector<1x8x1xf32> to vector<8x1xf32>
    %712 = vector.broadcast %711 : vector<8x1xf32> to vector<8x256xf32>
    %713 = arith.mulf %712, %540 : vector<8x256xf32>
    %c2_417 = arith.constant 2 : index
    %c0_418 = arith.constant 0 : index
    %c28_419 = arith.constant 28 : index
    %714 = vector.load %arg2[%c2_417, %c0_418, %c28_419] : memref<4x8x36xf32, #tpu.memory_space<vmem>>, vector<1x8x1xf32>
    %715 = vector.shape_cast %714 : vector<1x8x1xf32> to vector<8x1xf32>
    %716 = vector.broadcast %715 : vector<8x1xf32> to vector<8x256xf32>
    %717 = arith.mulf %716, %541 : vector<8x256xf32>
    %718 = arith.addf %713, %717 : vector<8x256xf32>
    %c2_420 = arith.constant 2 : index
    %c0_421 = arith.constant 0 : index
    %c29_422 = arith.constant 29 : index
    %719 = vector.load %arg2[%c2_420, %c0_421, %c29_422] : memref<4x8x36xf32, #tpu.memory_space<vmem>>, vector<1x8x1xf32>
    %720 = vector.shape_cast %719 : vector<1x8x1xf32> to vector<8x1xf32>
    %721 = vector.broadcast %720 : vector<8x1xf32> to vector<8x256xf32>
    %722 = arith.mulf %721, %544 : vector<8x256xf32>
    %723 = arith.addf %718, %722 : vector<8x256xf32>
    %c2_423 = arith.constant 2 : index
    %c0_424 = arith.constant 0 : index
    %c30_425 = arith.constant 30 : index
    %724 = vector.load %arg2[%c2_423, %c0_424, %c30_425] : memref<4x8x36xf32, #tpu.memory_space<vmem>>, vector<1x8x1xf32>
    %725 = vector.shape_cast %724 : vector<1x8x1xf32> to vector<8x1xf32>
    %726 = vector.broadcast %725 : vector<8x1xf32> to vector<8x256xf32>
    %727 = arith.mulf %726, %545 : vector<8x256xf32>
    %728 = arith.addf %723, %727 : vector<8x256xf32>
    %c2_426 = arith.constant 2 : index
    %c0_427 = arith.constant 0 : index
    %c31_428 = arith.constant 31 : index
    %729 = vector.load %arg2[%c2_426, %c0_427, %c31_428] : memref<4x8x36xf32, #tpu.memory_space<vmem>>, vector<1x8x1xf32>
    %730 = vector.shape_cast %729 : vector<1x8x1xf32> to vector<8x1xf32>
    %731 = vector.broadcast %730 : vector<8x1xf32> to vector<8x256xf32>
    %732 = arith.mulf %731, %533 : vector<8x256xf32>
    %733 = arith.addf %728, %732 : vector<8x256xf32>
    %c2_429 = arith.constant 2 : index
    %c0_430 = arith.constant 0 : index
    %c32_431 = arith.constant 32 : index
    %734 = vector.load %arg2[%c2_429, %c0_430, %c32_431] : memref<4x8x36xf32, #tpu.memory_space<vmem>>, vector<1x8x1xf32>
    %735 = vector.shape_cast %734 : vector<1x8x1xf32> to vector<8x1xf32>
    %736 = vector.broadcast %735 : vector<8x1xf32> to vector<8x256xf32>
    %737 = arith.mulf %736, %546 : vector<8x256xf32>
    %738 = arith.addf %733, %737 : vector<8x256xf32>
    %c2_432 = arith.constant 2 : index
    %c0_433 = arith.constant 0 : index
    %c33_434 = arith.constant 33 : index
    %739 = vector.load %arg2[%c2_432, %c0_433, %c33_434] : memref<4x8x36xf32, #tpu.memory_space<vmem>>, vector<1x8x1xf32>
    %740 = vector.shape_cast %739 : vector<1x8x1xf32> to vector<8x1xf32>
    %741 = vector.broadcast %740 : vector<8x1xf32> to vector<8x256xf32>
    %742 = arith.mulf %741, %549 : vector<8x256xf32>
    %743 = arith.addf %738, %742 : vector<8x256xf32>
    %c2_435 = arith.constant 2 : index
    %c0_436 = arith.constant 0 : index
    %c34_437 = arith.constant 34 : index
    %744 = vector.load %arg2[%c2_435, %c0_436, %c34_437] : memref<4x8x36xf32, #tpu.memory_space<vmem>>, vector<1x8x1xf32>
    %745 = vector.shape_cast %744 : vector<1x8x1xf32> to vector<8x1xf32>
    %746 = vector.broadcast %745 : vector<8x1xf32> to vector<8x256xf32>
    %747 = arith.mulf %746, %550 : vector<8x256xf32>
    %748 = arith.addf %743, %747 : vector<8x256xf32>
    %c2_438 = arith.constant 2 : index
    %c0_439 = arith.constant 0 : index
    %c35_440 = arith.constant 35 : index
    %749 = vector.load %arg2[%c2_438, %c0_439, %c35_440] : memref<4x8x36xf32, #tpu.memory_space<vmem>>, vector<1x8x1xf32>
    %750 = vector.shape_cast %749 : vector<1x8x1xf32> to vector<8x1xf32>
    %751 = vector.broadcast %750 : vector<8x1xf32> to vector<8x256xf32>
    %752 = arith.mulf %751, %553 : vector<8x256xf32>
    %753 = arith.addf %748, %752 : vector<8x256xf32>
    %754 = vector.extract_strided_slice %753 {offsets = [0, 0], sizes = [4, 256], strides = [1, 1]} : vector<8x256xf32> to vector<4x256xf32>
    %cst_441 = arith.constant dense<0.000000e+00> : vector<256xf32>
    %755 = vector.multi_reduction <add>, %754, %cst_441 [0] : vector<4x256xf32> to vector<256xf32>
    %756 = vector.shape_cast %755 : vector<256xf32> to vector<1x256xf32>
    %c3_442 = arith.constant 3 : index
    %c0_443 = arith.constant 0 : index
    %757 = vector.load %arg6[%c3_442, %c0_443] : memref<8x256xf32, #tpu.memory_space<vmem>>, vector<1x256xf32>
    tpu.vector_store %arg6[%c3_442, %c0_443], %756 {strides = array<i32>} : memref<8x256xf32, #tpu.memory_space<vmem>>, vector<1x256xf32>,
    %758 = vector.extract_strided_slice %753 {offsets = [4, 0], sizes = [4, 256], strides = [1, 1]} : vector<8x256xf32> to vector<4x256xf32>
    %cst_444 = arith.constant dense<0.000000e+00> : vector<256xf32>
    %759 = vector.multi_reduction <add>, %758, %cst_444 [0] : vector<4x256xf32> to vector<256xf32>
    %760 = vector.shape_cast %759 : vector<256xf32> to vector<1x256xf32>
    %c7_445 = arith.constant 7 : index
    %c0_446 = arith.constant 0 : index
    %761 = vector.load %arg6[%c7_445, %c0_446] : memref<8x256xf32, #tpu.memory_space<vmem>>, vector<1x256xf32>
    tpu.vector_store %arg6[%c7_445, %c0_446], %760 {strides = array<i32>} : memref<8x256xf32, #tpu.memory_space<vmem>>, vector<1x256xf32>,
    %c0_447 = arith.constant 0 : index
    %c0_448 = arith.constant 0 : index
    %762 = vector.load %arg6[%c0_447, %c0_448] : memref<8x256xf32, #tpu.memory_space<vmem>>, vector<8x256xf32>
    %c2_449 = arith.constant 2 : index
    %c0_450 = arith.constant 0 : index
    %c0_451 = arith.constant 0 : index
    %763 = vector.load %arg3[%c2_449, %c0_450, %c0_451] : memref<4x8x1xf32, #tpu.memory_space<vmem>>, vector<1x8x1xf32>
    %764 = vector.shape_cast %763 : vector<1x8x1xf32> to vector<8x1xf32>
    %765 = vector.broadcast %764 : vector<8x1xf32> to vector<8x256xf32>
    %766 = arith.addf %762, %765 : vector<8x256xf32>
    %cst_452 = arith.constant dense<0.000000e+00> : vector<8xf32>
    %767 = vector.multi_reduction <add>, %766, %cst_452 [1] : vector<8x256xf32> to vector<8xf32>
    %768 = vector.shape_cast %767 : vector<8xf32> to vector<8x1xf32>
    %cst_453 = arith.constant 3.906250e-03 : f32
    %769 = vector.broadcast %cst_453 : f32 to vector<8x1xf32>
    %770 = arith.mulf %768, %769 : vector<8x1xf32>
    %771 = vector.broadcast %770 : vector<8x1xf32> to vector<8x256xf32>
    %772 = arith.subf %766, %771 : vector<8x256xf32>
    %773 = arith.mulf %772, %772 : vector<8x256xf32>
    %cst_454 = arith.constant dense<0.000000e+00> : vector<8xf32>
    %774 = vector.multi_reduction <add>, %773, %cst_454 [1] : vector<8x256xf32> to vector<8xf32>
    %775 = vector.shape_cast %774 : vector<8xf32> to vector<8x1xf32>
    %cst_455 = arith.constant 3.906250e-03 : f32
    %776 = vector.broadcast %cst_455 : f32 to vector<8x1xf32>
    %777 = arith.mulf %775, %776 : vector<8x1xf32>
    %cst_456 = arith.constant 9.99999974E-6 : f32
    %778 = vector.broadcast %cst_456 : f32 to vector<8x1xf32>
    %779 = arith.addf %777, %778 : vector<8x1xf32>
    %780 = math.rsqrt %779 : vector<8x1xf32>
    %781 = vector.broadcast %780 : vector<8x1xf32> to vector<8x256xf32>
    %782 = arith.mulf %772, %781 : vector<8x256xf32>
    %cst_457 = arith.constant 0.000000e+00 : f32
    %783 = vector.broadcast %cst_457 : f32 to vector<8x256xf32>
    %784 = arith.maximumf %782, %783 : vector<8x256xf32>
    %c0_458 = arith.constant 0 : index
    %c17_459 = arith.constant 17 : index
    %785 = vector.load %arg5[%c0_458, %c17_459] : memref<8x290xf32, #tpu.memory_space<vmem>>, vector<8x256xf32>
    tpu.vector_store %arg5[%c0_458, %c17_459], %784 {strides = array<i32>} : memref<8x290xf32, #tpu.memory_space<vmem>>, vector<8x256xf32>,
    %c0_460 = arith.constant 0 : index
    %c0_461 = arith.constant 0 : index
    %786 = vector.load %arg5[%c0_460, %c0_461] : memref<8x290xf32, #tpu.memory_space<vmem>>, vector<8x256xf32>
    %c0_462 = arith.constant 0 : index
    %c1_463 = arith.constant 1 : index
    %787 = vector.load %arg5[%c0_462, %c1_463] : memref<8x290xf32, #tpu.memory_space<vmem>>, vector<8x256xf32>
    %c0_464 = arith.constant 0 : index
    %c2_465 = arith.constant 2 : index
    %788 = vector.load %arg5[%c0_464, %c2_465] : memref<8x290xf32, #tpu.memory_space<vmem>>, vector<8x256xf32>
    %c0_466 = arith.constant 0 : index
    %c16_467 = arith.constant 16 : index
    %789 = vector.load %arg5[%c0_466, %c16_467] : memref<8x290xf32, #tpu.memory_space<vmem>>, vector<8x256xf32>
    %c0_468 = arith.constant 0 : index
    %c17_469 = arith.constant 17 : index
    %790 = vector.load %arg5[%c0_468, %c17_469] : memref<8x290xf32, #tpu.memory_space<vmem>>, vector<8x256xf32>
    %c0_470 = arith.constant 0 : index
    %c18_471 = arith.constant 18 : index
    %791 = vector.load %arg5[%c0_470, %c18_471] : memref<8x290xf32, #tpu.memory_space<vmem>>, vector<8x256xf32>
    %c0_472 = arith.constant 0 : index
    %c32_473 = arith.constant 32 : index
    %792 = vector.load %arg5[%c0_472, %c32_473] : memref<8x290xf32, #tpu.memory_space<vmem>>, vector<8x256xf32>
    %c0_474 = arith.constant 0 : index
    %c33_475 = arith.constant 33 : index
    %793 = vector.load %arg5[%c0_474, %c33_475] : memref<8x290xf32, #tpu.memory_space<vmem>>, vector<8x256xf32>
    %c0_476 = arith.constant 0 : index
    %c34_477 = arith.constant 34 : index
    %794 = vector.load %arg5[%c0_476, %c34_477] : memref<8x290xf32, #tpu.memory_space<vmem>>, vector<8x256xf32>
    %795 = arith.select %4, %788, %786 : vector<8x256xi1>, vector<8x256xf32>
    %796 = arith.select %4, %794, %792 : vector<8x256xi1>, vector<8x256xf32>
    %797 = arith.select %8, %796, %795 : vector<8x256xi1>, vector<8x256xf32>
    %798 = arith.select %8, %793, %787 : vector<8x256xi1>, vector<8x256xf32>
    %799 = arith.select %6, %786, %788 : vector<8x256xi1>, vector<8x256xf32>
    %800 = arith.select %6, %792, %794 : vector<8x256xi1>, vector<8x256xf32>
    %801 = arith.select %8, %800, %799 : vector<8x256xi1>, vector<8x256xf32>
    %802 = arith.select %4, %791, %789 : vector<8x256xi1>, vector<8x256xf32>
    %803 = arith.select %6, %789, %791 : vector<8x256xi1>, vector<8x256xf32>
    %804 = arith.select %4, %794, %792 : vector<8x256xi1>, vector<8x256xf32>
    %805 = arith.select %4, %788, %786 : vector<8x256xi1>, vector<8x256xf32>
    %806 = arith.select %10, %805, %804 : vector<8x256xi1>, vector<8x256xf32>
    %807 = arith.select %10, %787, %793 : vector<8x256xi1>, vector<8x256xf32>
    %808 = arith.select %6, %792, %794 : vector<8x256xi1>, vector<8x256xf32>
    %809 = arith.select %6, %786, %788 : vector<8x256xi1>, vector<8x256xf32>
    %810 = arith.select %10, %809, %808 : vector<8x256xi1>, vector<8x256xf32>
    %c3_478 = arith.constant 3 : index
    %c0_479 = arith.constant 0 : index
    %c0_480 = arith.constant 0 : index
    %811 = vector.load %arg2[%c3_478, %c0_479, %c0_480] : memref<4x8x36xf32, #tpu.memory_space<vmem>>, vector<1x8x1xf32>
    %812 = vector.shape_cast %811 : vector<1x8x1xf32> to vector<8x1xf32>
    %813 = vector.broadcast %812 : vector<8x1xf32> to vector<8x256xf32>
    %814 = arith.mulf %813, %797 : vector<8x256xf32>
    %c3_481 = arith.constant 3 : index
    %c0_482 = arith.constant 0 : index
    %c1_483 = arith.constant 1 : index
    %815 = vector.load %arg2[%c3_481, %c0_482, %c1_483] : memref<4x8x36xf32, #tpu.memory_space<vmem>>, vector<1x8x1xf32>
    %816 = vector.shape_cast %815 : vector<1x8x1xf32> to vector<8x1xf32>
    %817 = vector.broadcast %816 : vector<8x1xf32> to vector<8x256xf32>
    %818 = arith.mulf %817, %798 : vector<8x256xf32>
    %819 = arith.addf %814, %818 : vector<8x256xf32>
    %c3_484 = arith.constant 3 : index
    %c0_485 = arith.constant 0 : index
    %c2_486 = arith.constant 2 : index
    %820 = vector.load %arg2[%c3_484, %c0_485, %c2_486] : memref<4x8x36xf32, #tpu.memory_space<vmem>>, vector<1x8x1xf32>
    %821 = vector.shape_cast %820 : vector<1x8x1xf32> to vector<8x1xf32>
    %822 = vector.broadcast %821 : vector<8x1xf32> to vector<8x256xf32>
    %823 = arith.mulf %822, %801 : vector<8x256xf32>
    %824 = arith.addf %819, %823 : vector<8x256xf32>
    %c3_487 = arith.constant 3 : index
    %c0_488 = arith.constant 0 : index
    %c3_489 = arith.constant 3 : index
    %825 = vector.load %arg2[%c3_487, %c0_488, %c3_489] : memref<4x8x36xf32, #tpu.memory_space<vmem>>, vector<1x8x1xf32>
    %826 = vector.shape_cast %825 : vector<1x8x1xf32> to vector<8x1xf32>
    %827 = vector.broadcast %826 : vector<8x1xf32> to vector<8x256xf32>
    %828 = arith.mulf %827, %802 : vector<8x256xf32>
    %829 = arith.addf %824, %828 : vector<8x256xf32>
    %c3_490 = arith.constant 3 : index
    %c0_491 = arith.constant 0 : index
    %c4_492 = arith.constant 4 : index
    %830 = vector.load %arg2[%c3_490, %c0_491, %c4_492] : memref<4x8x36xf32, #tpu.memory_space<vmem>>, vector<1x8x1xf32>
    %831 = vector.shape_cast %830 : vector<1x8x1xf32> to vector<8x1xf32>
    %832 = vector.broadcast %831 : vector<8x1xf32> to vector<8x256xf32>
    %833 = arith.mulf %832, %790 : vector<8x256xf32>
    %834 = arith.addf %829, %833 : vector<8x256xf32>
    %c3_493 = arith.constant 3 : index
    %c0_494 = arith.constant 0 : index
    %c5_495 = arith.constant 5 : index
    %835 = vector.load %arg2[%c3_493, %c0_494, %c5_495] : memref<4x8x36xf32, #tpu.memory_space<vmem>>, vector<1x8x1xf32>
    %836 = vector.shape_cast %835 : vector<1x8x1xf32> to vector<8x1xf32>
    %837 = vector.broadcast %836 : vector<8x1xf32> to vector<8x256xf32>
    %838 = arith.mulf %837, %803 : vector<8x256xf32>
    %839 = arith.addf %834, %838 : vector<8x256xf32>
    %c3_496 = arith.constant 3 : index
    %c0_497 = arith.constant 0 : index
    %c6_498 = arith.constant 6 : index
    %840 = vector.load %arg2[%c3_496, %c0_497, %c6_498] : memref<4x8x36xf32, #tpu.memory_space<vmem>>, vector<1x8x1xf32>
    %841 = vector.shape_cast %840 : vector<1x8x1xf32> to vector<8x1xf32>
    %842 = vector.broadcast %841 : vector<8x1xf32> to vector<8x256xf32>
    %843 = arith.mulf %842, %806 : vector<8x256xf32>
    %844 = arith.addf %839, %843 : vector<8x256xf32>
    %c3_499 = arith.constant 3 : index
    %c0_500 = arith.constant 0 : index
    %c7_501 = arith.constant 7 : index
    %845 = vector.load %arg2[%c3_499, %c0_500, %c7_501] : memref<4x8x36xf32, #tpu.memory_space<vmem>>, vector<1x8x1xf32>
    %846 = vector.shape_cast %845 : vector<1x8x1xf32> to vector<8x1xf32>
    %847 = vector.broadcast %846 : vector<8x1xf32> to vector<8x256xf32>
    %848 = arith.mulf %847, %807 : vector<8x256xf32>
    %849 = arith.addf %844, %848 : vector<8x256xf32>
    %c3_502 = arith.constant 3 : index
    %c0_503 = arith.constant 0 : index
    %c8_504 = arith.constant 8 : index
    %850 = vector.load %arg2[%c3_502, %c0_503, %c8_504] : memref<4x8x36xf32, #tpu.memory_space<vmem>>, vector<1x8x1xf32>
    %851 = vector.shape_cast %850 : vector<1x8x1xf32> to vector<8x1xf32>
    %852 = vector.broadcast %851 : vector<8x1xf32> to vector<8x256xf32>
    %853 = arith.mulf %852, %810 : vector<8x256xf32>
    %854 = arith.addf %849, %853 : vector<8x256xf32>
    %855 = vector.extract_strided_slice %854 {offsets = [0, 0], sizes = [4, 256], strides = [1, 1]} : vector<8x256xf32> to vector<4x256xf32>
    %cst_505 = arith.constant dense<0.000000e+00> : vector<256xf32>
    %856 = vector.multi_reduction <add>, %855, %cst_505 [0] : vector<4x256xf32> to vector<256xf32>
    %857 = vector.shape_cast %856 : vector<256xf32> to vector<1x256xf32>
    %c0_506 = arith.constant 0 : index
    %c0_507 = arith.constant 0 : index
    %858 = vector.load %arg6[%c0_506, %c0_507] : memref<8x256xf32, #tpu.memory_space<vmem>>, vector<1x256xf32>
    tpu.vector_store %arg6[%c0_506, %c0_507], %857 {strides = array<i32>} : memref<8x256xf32, #tpu.memory_space<vmem>>, vector<1x256xf32>,
    %859 = vector.extract_strided_slice %854 {offsets = [4, 0], sizes = [4, 256], strides = [1, 1]} : vector<8x256xf32> to vector<4x256xf32>
    %cst_508 = arith.constant dense<0.000000e+00> : vector<256xf32>
    %860 = vector.multi_reduction <add>, %859, %cst_508 [0] : vector<4x256xf32> to vector<256xf32>
    %861 = vector.shape_cast %860 : vector<256xf32> to vector<1x256xf32>
    %c4_509 = arith.constant 4 : index
    %c0_510 = arith.constant 0 : index
    %862 = vector.load %arg6[%c4_509, %c0_510] : memref<8x256xf32, #tpu.memory_space<vmem>>, vector<1x256xf32>
    tpu.vector_store %arg6[%c4_509, %c0_510], %861 {strides = array<i32>} : memref<8x256xf32, #tpu.memory_space<vmem>>, vector<1x256xf32>,
    %c3_511 = arith.constant 3 : index
    %c0_512 = arith.constant 0 : index
    %c9_513 = arith.constant 9 : index
    %863 = vector.load %arg2[%c3_511, %c0_512, %c9_513] : memref<4x8x36xf32, #tpu.memory_space<vmem>>, vector<1x8x1xf32>
    %864 = vector.shape_cast %863 : vector<1x8x1xf32> to vector<8x1xf32>
    %865 = vector.broadcast %864 : vector<8x1xf32> to vector<8x256xf32>
    %866 = arith.mulf %865, %797 : vector<8x256xf32>
    %c3_514 = arith.constant 3 : index
    %c0_515 = arith.constant 0 : index
    %c10_516 = arith.constant 10 : index
    %867 = vector.load %arg2[%c3_514, %c0_515, %c10_516] : memref<4x8x36xf32, #tpu.memory_space<vmem>>, vector<1x8x1xf32>
    %868 = vector.shape_cast %867 : vector<1x8x1xf32> to vector<8x1xf32>
    %869 = vector.broadcast %868 : vector<8x1xf32> to vector<8x256xf32>
    %870 = arith.mulf %869, %798 : vector<8x256xf32>
    %871 = arith.addf %866, %870 : vector<8x256xf32>
    %c3_517 = arith.constant 3 : index
    %c0_518 = arith.constant 0 : index
    %c11_519 = arith.constant 11 : index
    %872 = vector.load %arg2[%c3_517, %c0_518, %c11_519] : memref<4x8x36xf32, #tpu.memory_space<vmem>>, vector<1x8x1xf32>
    %873 = vector.shape_cast %872 : vector<1x8x1xf32> to vector<8x1xf32>
    %874 = vector.broadcast %873 : vector<8x1xf32> to vector<8x256xf32>
    %875 = arith.mulf %874, %801 : vector<8x256xf32>
    %876 = arith.addf %871, %875 : vector<8x256xf32>
    %c3_520 = arith.constant 3 : index
    %c0_521 = arith.constant 0 : index
    %c12_522 = arith.constant 12 : index
    %877 = vector.load %arg2[%c3_520, %c0_521, %c12_522] : memref<4x8x36xf32, #tpu.memory_space<vmem>>, vector<1x8x1xf32>
    %878 = vector.shape_cast %877 : vector<1x8x1xf32> to vector<8x1xf32>
    %879 = vector.broadcast %878 : vector<8x1xf32> to vector<8x256xf32>
    %880 = arith.mulf %879, %802 : vector<8x256xf32>
    %881 = arith.addf %876, %880 : vector<8x256xf32>
    %c3_523 = arith.constant 3 : index
    %c0_524 = arith.constant 0 : index
    %c13_525 = arith.constant 13 : index
    %882 = vector.load %arg2[%c3_523, %c0_524, %c13_525] : memref<4x8x36xf32, #tpu.memory_space<vmem>>, vector<1x8x1xf32>
    %883 = vector.shape_cast %882 : vector<1x8x1xf32> to vector<8x1xf32>
    %884 = vector.broadcast %883 : vector<8x1xf32> to vector<8x256xf32>
    %885 = arith.mulf %884, %790 : vector<8x256xf32>
    %886 = arith.addf %881, %885 : vector<8x256xf32>
    %c3_526 = arith.constant 3 : index
    %c0_527 = arith.constant 0 : index
    %c14_528 = arith.constant 14 : index
    %887 = vector.load %arg2[%c3_526, %c0_527, %c14_528] : memref<4x8x36xf32, #tpu.memory_space<vmem>>, vector<1x8x1xf32>
    %888 = vector.shape_cast %887 : vector<1x8x1xf32> to vector<8x1xf32>
    %889 = vector.broadcast %888 : vector<8x1xf32> to vector<8x256xf32>
    %890 = arith.mulf %889, %803 : vector<8x256xf32>
    %891 = arith.addf %886, %890 : vector<8x256xf32>
    %c3_529 = arith.constant 3 : index
    %c0_530 = arith.constant 0 : index
    %c15_531 = arith.constant 15 : index
    %892 = vector.load %arg2[%c3_529, %c0_530, %c15_531] : memref<4x8x36xf32, #tpu.memory_space<vmem>>, vector<1x8x1xf32>
    %893 = vector.shape_cast %892 : vector<1x8x1xf32> to vector<8x1xf32>
    %894 = vector.broadcast %893 : vector<8x1xf32> to vector<8x256xf32>
    %895 = arith.mulf %894, %806 : vector<8x256xf32>
    %896 = arith.addf %891, %895 : vector<8x256xf32>
    %c3_532 = arith.constant 3 : index
    %c0_533 = arith.constant 0 : index
    %c16_534 = arith.constant 16 : index
    %897 = vector.load %arg2[%c3_532, %c0_533, %c16_534] : memref<4x8x36xf32, #tpu.memory_space<vmem>>, vector<1x8x1xf32>
    %898 = vector.shape_cast %897 : vector<1x8x1xf32> to vector<8x1xf32>
    %899 = vector.broadcast %898 : vector<8x1xf32> to vector<8x256xf32>
    %900 = arith.mulf %899, %807 : vector<8x256xf32>
    %901 = arith.addf %896, %900 : vector<8x256xf32>
    %c3_535 = arith.constant 3 : index
    %c0_536 = arith.constant 0 : index
    %c17_537 = arith.constant 17 : index
    %902 = vector.load %arg2[%c3_535, %c0_536, %c17_537] : memref<4x8x36xf32, #tpu.memory_space<vmem>>, vector<1x8x1xf32>
    %903 = vector.shape_cast %902 : vector<1x8x1xf32> to vector<8x1xf32>
    %904 = vector.broadcast %903 : vector<8x1xf32> to vector<8x256xf32>
    %905 = arith.mulf %904, %810 : vector<8x256xf32>
    %906 = arith.addf %901, %905 : vector<8x256xf32>
    %907 = vector.extract_strided_slice %906 {offsets = [0, 0], sizes = [4, 256], strides = [1, 1]} : vector<8x256xf32> to vector<4x256xf32>
    %cst_538 = arith.constant dense<0.000000e+00> : vector<256xf32>
    %908 = vector.multi_reduction <add>, %907, %cst_538 [0] : vector<4x256xf32> to vector<256xf32>
    %909 = vector.shape_cast %908 : vector<256xf32> to vector<1x256xf32>
    %c1_539 = arith.constant 1 : index
    %c0_540 = arith.constant 0 : index
    %910 = vector.load %arg6[%c1_539, %c0_540] : memref<8x256xf32, #tpu.memory_space<vmem>>, vector<1x256xf32>
    tpu.vector_store %arg6[%c1_539, %c0_540], %909 {strides = array<i32>} : memref<8x256xf32, #tpu.memory_space<vmem>>, vector<1x256xf32>,
    %911 = vector.extract_strided_slice %906 {offsets = [4, 0], sizes = [4, 256], strides = [1, 1]} : vector<8x256xf32> to vector<4x256xf32>
    %cst_541 = arith.constant dense<0.000000e+00> : vector<256xf32>
    %912 = vector.multi_reduction <add>, %911, %cst_541 [0] : vector<4x256xf32> to vector<256xf32>
    %913 = vector.shape_cast %912 : vector<256xf32> to vector<1x256xf32>
    %c5_542 = arith.constant 5 : index
    %c0_543 = arith.constant 0 : index
    %914 = vector.load %arg6[%c5_542, %c0_543] : memref<8x256xf32, #tpu.memory_space<vmem>>, vector<1x256xf32>
    tpu.vector_store %arg6[%c5_542, %c0_543], %913 {strides = array<i32>} : memref<8x256xf32, #tpu.memory_space<vmem>>, vector<1x256xf32>,
    %c3_544 = arith.constant 3 : index
    %c0_545 = arith.constant 0 : index
    %c18_546 = arith.constant 18 : index
    %915 = vector.load %arg2[%c3_544, %c0_545, %c18_546] : memref<4x8x36xf32, #tpu.memory_space<vmem>>, vector<1x8x1xf32>
    %916 = vector.shape_cast %915 : vector<1x8x1xf32> to vector<8x1xf32>
    %917 = vector.broadcast %916 : vector<8x1xf32> to vector<8x256xf32>
    %918 = arith.mulf %917, %797 : vector<8x256xf32>
    %c3_547 = arith.constant 3 : index
    %c0_548 = arith.constant 0 : index
    %c19_549 = arith.constant 19 : index
    %919 = vector.load %arg2[%c3_547, %c0_548, %c19_549] : memref<4x8x36xf32, #tpu.memory_space<vmem>>, vector<1x8x1xf32>
    %920 = vector.shape_cast %919 : vector<1x8x1xf32> to vector<8x1xf32>
    %921 = vector.broadcast %920 : vector<8x1xf32> to vector<8x256xf32>
    %922 = arith.mulf %921, %798 : vector<8x256xf32>
    %923 = arith.addf %918, %922 : vector<8x256xf32>
    %c3_550 = arith.constant 3 : index
    %c0_551 = arith.constant 0 : index
    %c20_552 = arith.constant 20 : index
    %924 = vector.load %arg2[%c3_550, %c0_551, %c20_552] : memref<4x8x36xf32, #tpu.memory_space<vmem>>, vector<1x8x1xf32>
    %925 = vector.shape_cast %924 : vector<1x8x1xf32> to vector<8x1xf32>
    %926 = vector.broadcast %925 : vector<8x1xf32> to vector<8x256xf32>
    %927 = arith.mulf %926, %801 : vector<8x256xf32>
    %928 = arith.addf %923, %927 : vector<8x256xf32>
    %c3_553 = arith.constant 3 : index
    %c0_554 = arith.constant 0 : index
    %c21_555 = arith.constant 21 : index
    %929 = vector.load %arg2[%c3_553, %c0_554, %c21_555] : memref<4x8x36xf32, #tpu.memory_space<vmem>>, vector<1x8x1xf32>
    %930 = vector.shape_cast %929 : vector<1x8x1xf32> to vector<8x1xf32>
    %931 = vector.broadcast %930 : vector<8x1xf32> to vector<8x256xf32>
    %932 = arith.mulf %931, %802 : vector<8x256xf32>
    %933 = arith.addf %928, %932 : vector<8x256xf32>
    %c3_556 = arith.constant 3 : index
    %c0_557 = arith.constant 0 : index
    %c22_558 = arith.constant 22 : index
    %934 = vector.load %arg2[%c3_556, %c0_557, %c22_558] : memref<4x8x36xf32, #tpu.memory_space<vmem>>, vector<1x8x1xf32>
    %935 = vector.shape_cast %934 : vector<1x8x1xf32> to vector<8x1xf32>
    %936 = vector.broadcast %935 : vector<8x1xf32> to vector<8x256xf32>
    %937 = arith.mulf %936, %790 : vector<8x256xf32>
    %938 = arith.addf %933, %937 : vector<8x256xf32>
    %c3_559 = arith.constant 3 : index
    %c0_560 = arith.constant 0 : index
    %c23_561 = arith.constant 23 : index
    %939 = vector.load %arg2[%c3_559, %c0_560, %c23_561] : memref<4x8x36xf32, #tpu.memory_space<vmem>>, vector<1x8x1xf32>
    %940 = vector.shape_cast %939 : vector<1x8x1xf32> to vector<8x1xf32>
    %941 = vector.broadcast %940 : vector<8x1xf32> to vector<8x256xf32>
    %942 = arith.mulf %941, %803 : vector<8x256xf32>
    %943 = arith.addf %938, %942 : vector<8x256xf32>
    %c3_562 = arith.constant 3 : index
    %c0_563 = arith.constant 0 : index
    %c24_564 = arith.constant 24 : index
    %944 = vector.load %arg2[%c3_562, %c0_563, %c24_564] : memref<4x8x36xf32, #tpu.memory_space<vmem>>, vector<1x8x1xf32>
    %945 = vector.shape_cast %944 : vector<1x8x1xf32> to vector<8x1xf32>
    %946 = vector.broadcast %945 : vector<8x1xf32> to vector<8x256xf32>
    %947 = arith.mulf %946, %806 : vector<8x256xf32>
    %948 = arith.addf %943, %947 : vector<8x256xf32>
    %c3_565 = arith.constant 3 : index
    %c0_566 = arith.constant 0 : index
    %c25_567 = arith.constant 25 : index
    %949 = vector.load %arg2[%c3_565, %c0_566, %c25_567] : memref<4x8x36xf32, #tpu.memory_space<vmem>>, vector<1x8x1xf32>
    %950 = vector.shape_cast %949 : vector<1x8x1xf32> to vector<8x1xf32>
    %951 = vector.broadcast %950 : vector<8x1xf32> to vector<8x256xf32>
    %952 = arith.mulf %951, %807 : vector<8x256xf32>
    %953 = arith.addf %948, %952 : vector<8x256xf32>
    %c3_568 = arith.constant 3 : index
    %c0_569 = arith.constant 0 : index
    %c26_570 = arith.constant 26 : index
    %954 = vector.load %arg2[%c3_568, %c0_569, %c26_570] : memref<4x8x36xf32, #tpu.memory_space<vmem>>, vector<1x8x1xf32>
    %955 = vector.shape_cast %954 : vector<1x8x1xf32> to vector<8x1xf32>
    %956 = vector.broadcast %955 : vector<8x1xf32> to vector<8x256xf32>
    %957 = arith.mulf %956, %810 : vector<8x256xf32>
    %958 = arith.addf %953, %957 : vector<8x256xf32>
    %959 = vector.extract_strided_slice %958 {offsets = [0, 0], sizes = [4, 256], strides = [1, 1]} : vector<8x256xf32> to vector<4x256xf32>
    %cst_571 = arith.constant dense<0.000000e+00> : vector<256xf32>
    %960 = vector.multi_reduction <add>, %959, %cst_571 [0] : vector<4x256xf32> to vector<256xf32>
    %961 = vector.shape_cast %960 : vector<256xf32> to vector<1x256xf32>
    %c2_572 = arith.constant 2 : index
    %c0_573 = arith.constant 0 : index
    %962 = vector.load %arg6[%c2_572, %c0_573] : memref<8x256xf32, #tpu.memory_space<vmem>>, vector<1x256xf32>
    tpu.vector_store %arg6[%c2_572, %c0_573], %961 {strides = array<i32>} : memref<8x256xf32, #tpu.memory_space<vmem>>, vector<1x256xf32>,
    %963 = vector.extract_strided_slice %958 {offsets = [4, 0], sizes = [4, 256], strides = [1, 1]} : vector<8x256xf32> to vector<4x256xf32>
    %cst_574 = arith.constant dense<0.000000e+00> : vector<256xf32>
    %964 = vector.multi_reduction <add>, %963, %cst_574 [0] : vector<4x256xf32> to vector<256xf32>
    %965 = vector.shape_cast %964 : vector<256xf32> to vector<1x256xf32>
    %c6_575 = arith.constant 6 : index
    %c0_576 = arith.constant 0 : index
    %966 = vector.load %arg6[%c6_575, %c0_576] : memref<8x256xf32, #tpu.memory_space<vmem>>, vector<1x256xf32>
    tpu.vector_store %arg6[%c6_575, %c0_576], %965 {strides = array<i32>} : memref<8x256xf32, #tpu.memory_space<vmem>>, vector<1x256xf32>,
    %c3_577 = arith.constant 3 : index
    %c0_578 = arith.constant 0 : index
    %c27_579 = arith.constant 27 : index
    %967 = vector.load %arg2[%c3_577, %c0_578, %c27_579] : memref<4x8x36xf32, #tpu.memory_space<vmem>>, vector<1x8x1xf32>
    %968 = vector.shape_cast %967 : vector<1x8x1xf32> to vector<8x1xf32>
    %969 = vector.broadcast %968 : vector<8x1xf32> to vector<8x256xf32>
    %970 = arith.mulf %969, %797 : vector<8x256xf32>
    %c3_580 = arith.constant 3 : index
    %c0_581 = arith.constant 0 : index
    %c28_582 = arith.constant 28 : index
    %971 = vector.load %arg2[%c3_580, %c0_581, %c28_582] : memref<4x8x36xf32, #tpu.memory_space<vmem>>, vector<1x8x1xf32>
    %972 = vector.shape_cast %971 : vector<1x8x1xf32> to vector<8x1xf32>
    %973 = vector.broadcast %972 : vector<8x1xf32> to vector<8x256xf32>
    %974 = arith.mulf %973, %798 : vector<8x256xf32>
    %975 = arith.addf %970, %974 : vector<8x256xf32>
    %c3_583 = arith.constant 3 : index
    %c0_584 = arith.constant 0 : index
    %c29_585 = arith.constant 29 : index
    %976 = vector.load %arg2[%c3_583, %c0_584, %c29_585] : memref<4x8x36xf32, #tpu.memory_space<vmem>>, vector<1x8x1xf32>
    %977 = vector.shape_cast %976 : vector<1x8x1xf32> to vector<8x1xf32>
    %978 = vector.broadcast %977 : vector<8x1xf32> to vector<8x256xf32>
    %979 = arith.mulf %978, %801 : vector<8x256xf32>
    %980 = arith.addf %975, %979 : vector<8x256xf32>
    %c3_586 = arith.constant 3 : index
    %c0_587 = arith.constant 0 : index
    %c30_588 = arith.constant 30 : index
    %981 = vector.load %arg2[%c3_586, %c0_587, %c30_588] : memref<4x8x36xf32, #tpu.memory_space<vmem>>, vector<1x8x1xf32>
    %982 = vector.shape_cast %981 : vector<1x8x1xf32> to vector<8x1xf32>
    %983 = vector.broadcast %982 : vector<8x1xf32> to vector<8x256xf32>
    %984 = arith.mulf %983, %802 : vector<8x256xf32>
    %985 = arith.addf %980, %984 : vector<8x256xf32>
    %c3_589 = arith.constant 3 : index
    %c0_590 = arith.constant 0 : index
    %c31_591 = arith.constant 31 : index
    %986 = vector.load %arg2[%c3_589, %c0_590, %c31_591] : memref<4x8x36xf32, #tpu.memory_space<vmem>>, vector<1x8x1xf32>
    %987 = vector.shape_cast %986 : vector<1x8x1xf32> to vector<8x1xf32>
    %988 = vector.broadcast %987 : vector<8x1xf32> to vector<8x256xf32>
    %989 = arith.mulf %988, %790 : vector<8x256xf32>
    %990 = arith.addf %985, %989 : vector<8x256xf32>
    %c3_592 = arith.constant 3 : index
    %c0_593 = arith.constant 0 : index
    %c32_594 = arith.constant 32 : index
    %991 = vector.load %arg2[%c3_592, %c0_593, %c32_594] : memref<4x8x36xf32, #tpu.memory_space<vmem>>, vector<1x8x1xf32>
    %992 = vector.shape_cast %991 : vector<1x8x1xf32> to vector<8x1xf32>
    %993 = vector.broadcast %992 : vector<8x1xf32> to vector<8x256xf32>
    %994 = arith.mulf %993, %803 : vector<8x256xf32>
    %995 = arith.addf %990, %994 : vector<8x256xf32>
    %c3_595 = arith.constant 3 : index
    %c0_596 = arith.constant 0 : index
    %c33_597 = arith.constant 33 : index
    %996 = vector.load %arg2[%c3_595, %c0_596, %c33_597] : memref<4x8x36xf32, #tpu.memory_space<vmem>>, vector<1x8x1xf32>
    %997 = vector.shape_cast %996 : vector<1x8x1xf32> to vector<8x1xf32>
    %998 = vector.broadcast %997 : vector<8x1xf32> to vector<8x256xf32>
    %999 = arith.mulf %998, %806 : vector<8x256xf32>
    %1000 = arith.addf %995, %999 : vector<8x256xf32>
    %c3_598 = arith.constant 3 : index
    %c0_599 = arith.constant 0 : index
    %c34_600 = arith.constant 34 : index
    %1001 = vector.load %arg2[%c3_598, %c0_599, %c34_600] : memref<4x8x36xf32, #tpu.memory_space<vmem>>, vector<1x8x1xf32>
    %1002 = vector.shape_cast %1001 : vector<1x8x1xf32> to vector<8x1xf32>
    %1003 = vector.broadcast %1002 : vector<8x1xf32> to vector<8x256xf32>
    %1004 = arith.mulf %1003, %807 : vector<8x256xf32>
    %1005 = arith.addf %1000, %1004 : vector<8x256xf32>
    %c3_601 = arith.constant 3 : index
    %c0_602 = arith.constant 0 : index
    %c35_603 = arith.constant 35 : index
    %1006 = vector.load %arg2[%c3_601, %c0_602, %c35_603] : memref<4x8x36xf32, #tpu.memory_space<vmem>>, vector<1x8x1xf32>
    %1007 = vector.shape_cast %1006 : vector<1x8x1xf32> to vector<8x1xf32>
    %1008 = vector.broadcast %1007 : vector<8x1xf32> to vector<8x256xf32>
    %1009 = arith.mulf %1008, %810 : vector<8x256xf32>
    %1010 = arith.addf %1005, %1009 : vector<8x256xf32>
    %1011 = vector.extract_strided_slice %1010 {offsets = [0, 0], sizes = [4, 256], strides = [1, 1]} : vector<8x256xf32> to vector<4x256xf32>
    %cst_604 = arith.constant dense<0.000000e+00> : vector<256xf32>
    %1012 = vector.multi_reduction <add>, %1011, %cst_604 [0] : vector<4x256xf32> to vector<256xf32>
    %1013 = vector.shape_cast %1012 : vector<256xf32> to vector<1x256xf32>
    %c3_605 = arith.constant 3 : index
    %c0_606 = arith.constant 0 : index
    %1014 = vector.load %arg6[%c3_605, %c0_606] : memref<8x256xf32, #tpu.memory_space<vmem>>, vector<1x256xf32>
    tpu.vector_store %arg6[%c3_605, %c0_606], %1013 {strides = array<i32>} : memref<8x256xf32, #tpu.memory_space<vmem>>, vector<1x256xf32>,
    %1015 = vector.extract_strided_slice %1010 {offsets = [4, 0], sizes = [4, 256], strides = [1, 1]} : vector<8x256xf32> to vector<4x256xf32>
    %cst_607 = arith.constant dense<0.000000e+00> : vector<256xf32>
    %1016 = vector.multi_reduction <add>, %1015, %cst_607 [0] : vector<4x256xf32> to vector<256xf32>
    %1017 = vector.shape_cast %1016 : vector<256xf32> to vector<1x256xf32>
    %c7_608 = arith.constant 7 : index
    %c0_609 = arith.constant 0 : index
    %1018 = vector.load %arg6[%c7_608, %c0_609] : memref<8x256xf32, #tpu.memory_space<vmem>>, vector<1x256xf32>
    tpu.vector_store %arg6[%c7_608, %c0_609], %1017 {strides = array<i32>} : memref<8x256xf32, #tpu.memory_space<vmem>>, vector<1x256xf32>,
    %c0_610 = arith.constant 0 : index
    %c0_611 = arith.constant 0 : index
    %1019 = vector.load %arg6[%c0_610, %c0_611] : memref<8x256xf32, #tpu.memory_space<vmem>>, vector<8x256xf32>
    %c3_612 = arith.constant 3 : index
    %c0_613 = arith.constant 0 : index
    %c0_614 = arith.constant 0 : index
    %1020 = vector.load %arg3[%c3_612, %c0_613, %c0_614] : memref<4x8x1xf32, #tpu.memory_space<vmem>>, vector<1x8x1xf32>
    %1021 = vector.shape_cast %1020 : vector<1x8x1xf32> to vector<8x1xf32>
    %1022 = vector.broadcast %1021 : vector<8x1xf32> to vector<8x256xf32>
    %1023 = arith.addf %1019, %1022 : vector<8x256xf32>
    %cst_615 = arith.constant dense<0.000000e+00> : vector<8xf32>
    %1024 = vector.multi_reduction <add>, %1023, %cst_615 [1] : vector<8x256xf32> to vector<8xf32>
    %1025 = vector.shape_cast %1024 : vector<8xf32> to vector<8x1xf32>
    %cst_616 = arith.constant 3.906250e-03 : f32
    %1026 = vector.broadcast %cst_616 : f32 to vector<8x1xf32>
    %1027 = arith.mulf %1025, %1026 : vector<8x1xf32>
    %1028 = vector.broadcast %1027 : vector<8x1xf32> to vector<8x256xf32>
    %1029 = arith.subf %1023, %1028 : vector<8x256xf32>
    %1030 = arith.mulf %1029, %1029 : vector<8x256xf32>
    %cst_617 = arith.constant dense<0.000000e+00> : vector<8xf32>
    %1031 = vector.multi_reduction <add>, %1030, %cst_617 [1] : vector<8x256xf32> to vector<8xf32>
    %1032 = vector.shape_cast %1031 : vector<8xf32> to vector<8x1xf32>
    %cst_618 = arith.constant 3.906250e-03 : f32
    %1033 = vector.broadcast %cst_618 : f32 to vector<8x1xf32>
    %1034 = arith.mulf %1032, %1033 : vector<8x1xf32>
    %cst_619 = arith.constant 9.99999974E-6 : f32
    %1035 = vector.broadcast %cst_619 : f32 to vector<8x1xf32>
    %1036 = arith.addf %1034, %1035 : vector<8x1xf32>
    %1037 = math.rsqrt %1036 : vector<8x1xf32>
    %1038 = vector.broadcast %1037 : vector<8x1xf32> to vector<8x256xf32>
    %1039 = arith.mulf %1029, %1038 : vector<8x256xf32>
    %1040 = arith.addf %1039, %527 : vector<8x256xf32>
    %c0_620 = arith.constant 0 : index
    %c0_621 = arith.constant 0 : index
    %c0_622 = arith.constant 0 : index
    %1041 = vector.load %arg4[%c0_620, %c0_621, %c0_622] : memref<1x8x256xf32, #tpu.memory_space<vmem>>, vector<1x8x256xf32>
    %1042 = vector.shape_cast %1041 : vector<1x8x256xf32> to vector<8x256xf32>
    %1043 = vector.shape_cast %1040 : vector<8x256xf32> to vector<1x8x256xf32>
    tpu.vector_store %arg4[%c0_620, %c0_621, %c0_622], %1043 {strides = array<i32>} : memref<1x8x256xf32, #tpu.memory_space<vmem>>, vector<1x8x256xf32>,
    return
  }
  func.func @transform_0(%arg0: i32) -> (i32, i32, i32) {
    %c0_i32 = arith.constant 0 : i32
    %c0_i32_0 = arith.constant 0 : i32
    %c0_i32_1 = arith.constant 0 : i32
    return %arg0, %c0_i32, %c0_i32_0 : i32, i32, i32
  }
  func.func @transform_1(%arg0: i32) -> (i32, i32, i32) {
    %c0_i32 = arith.constant 0 : i32
    %c0_i32_0 = arith.constant 0 : i32
    %c0_i32_1 = arith.constant 0 : i32
    %c0_i32_2 = arith.constant 0 : i32
    return %c0_i32, %c0_i32_0, %c0_i32_1 : i32, i32, i32
  }
  func.func @transform_2(%arg0: i32) -> (i32, i32, i32) {
    %c0_i32 = arith.constant 0 : i32
    %c0_i32_0 = arith.constant 0 : i32
    %c0_i32_1 = arith.constant 0 : i32
    %c0_i32_2 = arith.constant 0 : i32
    return %c0_i32, %c0_i32_0, %c0_i32_1 : i32, i32, i32
  }
  func.func @transform_3(%arg0: i32) -> (i32, i32, i32) {
    %c0_i32 = arith.constant 0 : i32
    %c0_i32_0 = arith.constant 0 : i32
    %c0_i32_1 = arith.constant 0 : i32
    return %arg0, %c0_i32, %c0_i32_0 : i32, i32, i32
  }
}

</mosaic_0001>

<llo_original>
// kernel: tpu_custom_call.1
$region0: #{tpu_custom_call.1}
  #allocation0 [shape = 'u32[]', space=smem, size = 0x4, offset = 0x4, fixed_abs, tag = 'smem constant byte address 0x4 - core index']
  #allocation1 [shape = 'u32[144,128]{1,0:T(1,128)}', space=vmem, size = 0x12000, scoped, tag = 'internal scratch']
  #allocation2 [shape = 'f32[8,290]{1,0:T(8,128)}', space=vmem, size = 0x3000, scoped, tag = 'scratch operand']
  #allocation3 [shape = 'f32[8,256]{1,0:T(8,128)}', space=vmem, size = 0x2000, scoped, tag = 'scratch operand']
  %s0 = inlined_call_operand.hbm [shape: f32[1,8,256], index: 0, kind: input, shape index: {}]
  %s1 = inlined_call_operand.vmem [shape: f32[4,8,36], index: 1, kind: input, shape index: {}]
  %s2 = inlined_call_operand.vmem [shape: f32[4,8,1], index: 2, kind: input, shape index: {}]
  %s3 = inlined_call_operand.hbm [shape: f32[1,8,256], index: 3, kind: output, shape index: {}]
  %s4 = sld [smem:[#allocation0]]
  $region26: #{tpu_custom_call.1} parent=0
    _
  %s6 = ssub.s32 1, %s4
  %s7 = scalar_select 0, %s6, %s4
  $region1: #{tpu_custom_call.1} parent=0
    #allocation4 [shape = 'u8[8192]{0}', space=vmem, size = 0x2000, scoped, tag = 'input window, operand 0, single buffered']
    #allocation5 [shape = 's32[1]{0}', space=sflag, size = 0x4, scoped, tag = 'scoped memory for tpu_custom_call.1']
    #allocation6 [shape = 's32[1]{0}', space=sflag, size = 0x4, scoped, tag = 'scoped memory for tpu_custom_call.1']
    #allocation7 [shape = 'u8[8192]{0}', space=vmem, size = 0x2000, scoped, tag = 'output window, operand 0, single buffered']
    %8 = vsyncpa [#allocation5], 0
    %9 = vsyncpa [#allocation6], 0
    // Predicated region
    $region2: #{tpu_custom_call.1} parent=1 // pred_check
      _
    $region3: #{tpu_custom_call.1} parent=1 // pred_check_branch
      %11 = sbr.rel (0) target = $region5
    $region4: #{tpu_custom_call.1} parent=1 // pred_region
      %s13 = ssub.s32 256, 256
      %14 = vsyncadd [#allocation5], %s13
      %s16 = sshll.u32 [#allocation4], 4
      %s17 = int_to_ptr.vmem [resolvable:$true] %s16
      %19 = dma.hbm_to_vmem [thread:$0]  %s0, 256, %s17, [#allocation5]
    $region5: #{tpu_custom_call.1} parent=1 // pred_fallthru
      _
    // Predicated region
    $region6: #{tpu_custom_call.1} parent=1 // pred_check
      _
    $region7: #{tpu_custom_call.1} parent=1 // pred_check_branch
      %21 = sbr.rel (0) target = $region9
    $region8: #{tpu_custom_call.1} parent=1 // pred_region
      _
    $region9: #{tpu_custom_call.1} parent=1 // pred_fallthru
      _
    // Predicated region
    $region10: #{tpu_custom_call.1} parent=1 // pred_check
      _
    $region11: #{tpu_custom_call.1} parent=1 // pred_check_branch
      %23 = sbr.rel (0) target = $region13
    $region12: #{tpu_custom_call.1} parent=1 // pred_region
      _
    $region13: #{tpu_custom_call.1} parent=1 // pred_fallthru
      _
    // Predicated region
    $region14: #{tpu_custom_call.1} parent=1 // pred_check
      _
    $region15: #{tpu_custom_call.1} parent=1 // pred_check_branch
      %25 = sbr.rel (0) target = $region17
    $region16: #{tpu_custom_call.1} parent=1 // pred_region
      %26 = dma.done [#allocation5], 256
    $region17: #{tpu_custom_call.1} parent=1 // pred_fallthru
      _
    %v27 = vlaneseq
    %v28 = vand.u32 %v27, 127
    %v29 = vadd.s32 %v28, 128
    %v30 = vand.u32 %v28, 15
    %v31 = vand.u32 %v29, 15
    %vm32 = vcmp.eq.s32.totalorder %v30, 0
    %vm33 = vcmp.eq.s32.totalorder %v31, 0
    %vm34 = vcmp.eq.s32.totalorder %v30, 15
    %vm35 = vcmp.eq.s32.totalorder %v31, 15
    %vm36 = vcmp.lt.s32.totalorder %v28, 16
    %vm37 = vcmp.lt.s32.totalorder %v29, 16
    %vm38 = vcmp.ge.s32.totalorder %v28, 240
    %vm39 = vcmp.ge.s32.totalorder %v29, 240
    %40 = vst [vmem:[#allocation2] sm:$0xff] 0.0
    %41 = vst [vmem:[#allocation2 + $0x8] sm:$0xff] 0.0
    %vm42 = vcmask 277504
    %43 = vst.msk [vmem:[#allocation2 + $0x10] sm:$0xff] %vm42, 0.0
    %v44 = vld [vmem:[#allocation4] sm:$0xff]
    %v45 = vld [vmem:[#allocation4 + $0x8] sm:$0xff]
    %48 = vrot.lane.b32.xlu0 %v44, 17
    %v49 = vpop.permute.xlu0 %48
    %50 = vrot.lane.b32.xlu0 %v45, 17
    %v51 = vpop.permute.xlu0 %50
    %vm52 = vcmask 138240
    %v53 = vsel %vm52, %v49, %v51
    %vm57 = vcmask 1047688
    %58 = vst.msk [vmem:[#allocation2] sm:$0xff] %vm57, %v49
    %59 = vst [vmem:[#allocation2 + $0x8] sm:$0xff] %v53
    %60 = vst.msk [vmem:[#allocation2 + $0x10] sm:$0xff] %vm52, %v51
    %v61 = vld [vmem:[#allocation2] sm:$0xff]
    %v62 = vld [vmem:[#allocation2 + $0x8] sm:$0xff]
    %v63 = vld [vmem:[#allocation2 + $0x10] sm:$0xff]
    %67 = vrot.lane.b32.xlu0 %v61, 126
    %v68 = vpop.permute.xlu0 %67
    %69 = vrot.lane.b32.xlu0 %v62, 126
    %v70 = vpop.permute.xlu0 %69
    %71 = vrot.lane.b32.xlu0 %v63, 126
    %v72 = vpop.permute.xlu0 %71
    %vm73 = vcmask 1031168
    %v74 = vsel %vm73, %v68, %v70
    %v75 = vsel %vm73, %v70, %v72
    %v78 = vsel %vm32, %v74, %v61
    %v79 = vsel %vm33, %v75, %v62
    %80 = vrot.lane.b32.xlu0 %v61, 94
    %v81 = vpop.permute.xlu0 %80
    %82 = vrot.lane.b32.xlu0 %v62, 94
    %v83 = vpop.permute.xlu0 %82
    %84 = vrot.lane.b32.xlu0 %v63, 94
    %v85 = vpop.permute.xlu0 %84
    %vm86 = vcmask 769024
    %v87 = vsel %vm86, %v81, %v83
    %v88 = vsel %vm86, %v83, %v85
    %91 = vrot.lane.b32.xlu0 %v61, 96
    %v92 = vpop.permute.xlu0 %91
    %93 = vrot.lane.b32.xlu0 %v62, 96
    %v94 = vpop.permute.xlu0 %93
    %95 = vrot.lane.b32.xlu0 %v63, 96
    %v96 = vpop.permute.xlu0 %95
    %vm97 = vcmask 785408
    %v98 = vsel %vm97, %v92, %v94
    %v99 = vsel %vm97, %v94, %v96
    %v102 = vsel %vm32, %v87, %v98
    %v103 = vsel %vm33, %v88, %v99
    %v104 = vsel %vm36, %v102, %v78
    %v105 = vsel %vm37, %v103, %v79
    %106 = vrot.lane.b32.xlu0 %v61, 95
    %v107 = vpop.permute.xlu0 %106
    %108 = vrot.lane.b32.xlu0 %v62, 95
    %v109 = vpop.permute.xlu0 %108
    %110 = vrot.lane.b32.xlu0 %v63, 95
    %v111 = vpop.permute.xlu0 %110
    %vm112 = vcmask 777216
    %v113 = vsel %vm112, %v107, %v109
    %v114 = vsel %vm112, %v109, %v111
    %117 = vrot.lane.b32.xlu0 %v61, 127
    %v118 = vpop.permute.xlu0 %117
    %119 = vrot.lane.b32.xlu0 %v62, 127
    %v120 = vpop.permute.xlu0 %119
    %121 = vrot.lane.b32.xlu0 %v63, 127
    %v122 = vpop.permute.xlu0 %121
    %vm123 = vcmask 1039360
    %v124 = vsel %vm123, %v118, %v120
    %v125 = vsel %vm123, %v120, %v122
    %v128 = vsel %vm36, %v113, %v124
    %v129 = vsel %vm37, %v114, %v125
    %v130 = vsel %vm34, %v61, %v74
    %v131 = vsel %vm35, %v62, %v75
    %v132 = vsel %vm34, %v98, %v87
    %v133 = vsel %vm35, %v99, %v88
    %v134 = vsel %vm36, %v132, %v130
    %v135 = vsel %vm37, %v133, %v131
    %136 = vrot.lane.b32.xlu0 %v61, 110
    %v137 = vpop.permute.xlu0 %136
    %138 = vrot.lane.b32.xlu0 %v62, 110
    %v139 = vpop.permute.xlu0 %138
    %140 = vrot.lane.b32.xlu0 %v63, 110
    %v141 = vpop.permute.xlu0 %140
    %vm142 = vcmask 900096
    %v143 = vsel %vm142, %v137, %v139
    %v144 = vsel %vm142, %v139, %v141
    %147 = vrot.lane.b32.xlu0 %v61, 112
    %v148 = vpop.permute.xlu0 %147
    %149 = vrot.lane.b32.xlu0 %v62, 112
    %v150 = vpop.permute.xlu0 %149
    %151 = vrot.lane.b32.xlu0 %v63, 112
    %v152 = vpop.permute.xlu0 %151
    %vm153 = vcmask 916480
    %v154 = vsel %vm153, %v148, %v150
    %v155 = vsel %vm153, %v150, %v152
    %v158 = vsel %vm32, %v143, %v154
    %v159 = vsel %vm33, %v144, %v155
    %v160 = vsel %vm34, %v154, %v143
    %v161 = vsel %vm35, %v155, %v144
    %v162 = vsel %vm38, %v78, %v102
    %v163 = vsel %vm39, %v79, %v103
    %v164 = vsel %vm38, %v124, %v113
    %v165 = vsel %vm39, %v125, %v114
    %v166 = vsel %vm38, %v130, %v132
    %v167 = vsel %vm39, %v131, %v133
    %v168 = vld [vmem:[%s1] sm:$0xff]
    %170 = vset.pattern.permute.xlu0 0
    %171 = vperm.xlu0 %170, %v168
    %v172 = vpop.permute.xlu0 %171
    %v174 = vmul.f32 %v172, %v104
    %v175 = vmul.f32 %v172, %v105
    %176 = vset.pattern.permute.xlu0 1
    %177 = vperm.xlu0 %176, %v168
    %v178 = vpop.permute.xlu0 %177
    %v180 = vmul.f32 %v178, %v128
    %v181 = vmul.f32 %v178, %v129
    %v182 = vadd.f32 %v174, %v180
    %v183 = vadd.f32 %v175, %v181
    %184 = vset.pattern.permute.xlu0 2
    %185 = vperm.xlu0 %184, %v168
    %v186 = vpop.permute.xlu0 %185
    %v188 = vmul.f32 %v186, %v134
    %v189 = vmul.f32 %v186, %v135
    %v190 = vadd.f32 %v182, %v188
    %v191 = vadd.f32 %v183, %v189
    %192 = vset.pattern.permute.xlu0 3
    %193 = vperm.xlu0 %192, %v168
    %v194 = vpop.permute.xlu0 %193
    %v196 = vmul.f32 %v194, %v158
    %v197 = vmul.f32 %v194, %v159
    %v198 = vadd.f32 %v190, %v196
    %v199 = vadd.f32 %v191, %v197
    %200 = vset.pattern.permute.xlu0 4
    %201 = vperm.xlu0 %200, %v168
    %v202 = vpop.permute.xlu0 %201
    %v204 = vmul.f32 %v202, %v61
    %v205 = vmul.f32 %v202, %v62
    %v206 = vmul.f32 %v202, %v63
    %210 = vrot.lane.b32.xlu0 %v204, 111
    %v211 = vpop.permute.xlu0 %210
    %212 = vrot.lane.b32.xlu0 %v205, 111
    %v213 = vpop.permute.xlu0 %212
    %214 = vrot.lane.b32.xlu0 %v206, 111
    %v215 = vpop.permute.xlu0 %214
    %vm216 = vcmask 908288
    %v217 = vsel %vm216, %v211, %v213
    %v218 = vsel %vm216, %v213, %v215
    %v221 = vadd.f32 %v198, %v217
    %v222 = vadd.f32 %v199, %v218
    %223 = vset.pattern.permute.xlu0 5
    %224 = vperm.xlu0 %223, %v168
    %v225 = vpop.permute.xlu0 %224
    %v227 = vmul.f32 %v225, %v160
    %v228 = vmul.f32 %v225, %v161
    %v229 = vadd.f32 %v221, %v227
    %v230 = vadd.f32 %v222, %v228
    %231 = vset.pattern.permute.xlu0 6
    %232 = vperm.xlu0 %231, %v168
    %v233 = vpop.permute.xlu0 %232
    %v235 = vmul.f32 %v233, %v162
    %v236 = vmul.f32 %v233, %v163
    %v237 = vadd.f32 %v229, %v235
    %v238 = vadd.f32 %v230, %v236
    %239 = vset.pattern.permute.xlu0 7
    %240 = vperm.xlu0 %239, %v168
    %v241 = vpop.permute.xlu0 %240
    %v243 = vmul.f32 %v241, %v164
    %v244 = vmul.f32 %v241, %v165
    %v245 = vadd.f32 %v237, %v243
    %v246 = vadd.f32 %v238, %v244
    %247 = vset.pattern.permute.xlu0 8
    %248 = vperm.xlu0 %247, %v168
    %v249 = vpop.permute.xlu0 %248
    %v251 = vmul.f32 %v249, %v166
    %v252 = vmul.f32 %v249, %v167
    %v253 = vadd.f32 %v245, %v251
    %v254 = vadd.f32 %v246, %v252
    %vm255 = vcmask 1043456
    %v256 = vsel %vm255, %v253, 0.0
    %v257 = vrot.slane %v256, 4
    %v258 = vadd.f32 %v256, %v257
    %v259 = vrot.slane %v258, 2
    %v260 = vadd.f32 %v258, %v259
    %v261 = vrot.slane %v260, 1
    %v262 = vadd.f32 %v260, %v261
    %v263 = vsel %vm255, %v254, 0.0
    %v264 = vrot.slane %v263, 4
    %v265 = vadd.f32 %v263, %v264
    %v266 = vrot.slane %v265, 2
    %v267 = vadd.f32 %v265, %v266
    %v268 = vrot.slane %v267, 1
    %v269 = vadd.f32 %v267, %v268
    %v272 = vcombine.low %v262, %v269
    %v274 = vunpack.c.l.s4 1966171168
    %v275 = vunpack.c.0.s8 %v274
    %v276 = vlaneseq
    %v277 = vshrl.u32 %v276, 7
    %v278 = vsub.s32 %v275, %v277
    %v279 = vrot.slane %v272, %v278
    %v281 = vunpack.c.l.s4 1966171168
    %v282 = vunpack.c.0.s8 %v281
    %v283 = vlaneseq
    %v284 = vshrl.u32 %v283, 7
    %v285 = vsub.s32 %v282, %v284
    %v286 = vrot.slane %v279, %v285
    %v288 = vlaneseq
    %vm289 = vcmp.ge.s32.totalorder %v288, 0
    %vm290 = vcmp.lt.s32.totalorder %v288, 256
    %vm291 = vmand %vm289, %vm290
    %292 = vst.msk [vmem:[#allocation3] ss:$8 sm:$0x3] %vm291, %v286
    %293 = vst.msk [vmem:[#allocation3] ss:$8 sm:$0x0] %vm291, %v286
    %v296 = vrot.slane %v253, 4
    %v297 = vrot.slane %v254, 4
    %v300 = vsel %vm255, %v296, 0.0
    %v301 = vrot.slane %v300, 4
    %v302 = vadd.f32 %v300, %v301
    %v303 = vrot.slane %v302, 2
    %v304 = vadd.f32 %v302, %v303
    %v305 = vrot.slane %v304, 1
    %v306 = vadd.f32 %v304, %v305
    %v307 = vsel %vm255, %v297, 0.0
    %v308 = vrot.slane %v307, 4
    %v309 = vadd.f32 %v307, %v308
    %v310 = vrot.slane %v309, 2
    %v311 = vadd.f32 %v309, %v310
    %v312 = vrot.slane %v311, 1
    %v313 = vadd.f32 %v311, %v312
    %v316 = vcombine.low %v306, %v313
    %v318 = vunpack.c.l.s4 1966171168
    %v319 = vunpack.c.0.s8 %v318
    %v320 = vlaneseq
    %v321 = vshrl.u32 %v320, 7
    %v322 = vsub.s32 %v319, %v321
    %v323 = vrot.slane %v316, %v322
    %v325 = vunpack.c.l.s4 1966171168
    %v326 = vunpack.c.0.s8 %v325
    %v327 = vlaneseq
    %v328 = vshrl.u32 %v327, 7
    %v329 = vsub.s32 %v326, %v328
    %v330 = vrot.slane %v323, %v329
    %s332 = scalar_lea.vmem [#allocation3], 4
    %333 = vst.msk [vmem:[%s332] ss:$8 sm:$0x3] %vm291, %v330
    %334 = vst.msk [vmem:[%s332] ss:$8 sm:$0x0] %vm291, %v330
    %v335 = vld [vmem:[%s1] sm:$0xff]
    %337 = vset.pattern.permute.xlu0 9
    %338 = vperm.xlu0 %337, %v335
    %v339 = vpop.permute.xlu0 %338
    %v341 = vmul.f32 %v339, %v104
    %v342 = vmul.f32 %v339, %v105
    %343 = vset.pattern.permute.xlu0 10
    %344 = vperm.xlu0 %343, %v335
    %v345 = vpop.permute.xlu0 %344
    %v347 = vmul.f32 %v345, %v128
    %v348 = vmul.f32 %v345, %v129
    %v349 = vadd.f32 %v341, %v347
    %v350 = vadd.f32 %v342, %v348
    %351 = vset.pattern.permute.xlu0 11
    %352 = vperm.xlu0 %351, %v335
    %v353 = vpop.permute.xlu0 %352
    %v355 = vmul.f32 %v353, %v134
    %v356 = vmul.f32 %v353, %v135
    %v357 = vadd.f32 %v349, %v355
    %v358 = vadd.f32 %v350, %v356
    %359 = vset.pattern.permute.xlu0 12
    %360 = vperm.xlu0 %359, %v335
    %v361 = vpop.permute.xlu0 %360
    %v363 = vmul.f32 %v361, %v158
    %v364 = vmul.f32 %v361, %v159
    %v365 = vadd.f32 %v357, %v363
    %v366 = vadd.f32 %v358, %v364
    %367 = vset.pattern.permute.xlu0 13
    %368 = vperm.xlu0 %367, %v335
    %v369 = vpop.permute.xlu0 %368
    %v371 = vmul.f32 %v369, %v61
    %v372 = vmul.f32 %v369, %v62
    %v373 = vmul.f32 %v369, %v63
    %377 = vrot.lane.b32.xlu0 %v371, 111
    %v378 = vpop.permute.xlu0 %377
    %379 = vrot.lane.b32.xlu0 %v372, 111
    %v380 = vpop.permute.xlu0 %379
    %381 = vrot.lane.b32.xlu0 %v373, 111
    %v382 = vpop.permute.xlu0 %381
    %v383 = vsel %vm216, %v378, %v380
    %v384 = vsel %vm216, %v380, %v382
    %v387 = vadd.f32 %v365, %v383
    %v388 = vadd.f32 %v366, %v384
    %389 = vset.pattern.permute.xlu0 14
    %390 = vperm.xlu0 %389, %v335
    %v391 = vpop.permute.xlu0 %390
    %v393 = vmul.f32 %v391, %v160
    %v394 = vmul.f32 %v391, %v161
    %v395 = vadd.f32 %v387, %v393
    %v396 = vadd.f32 %v388, %v394
    %397 = vset.pattern.permute.xlu0 15
    %398 = vperm.xlu0 %397, %v335
    %v399 = vpop.permute.xlu0 %398
    %v401 = vmul.f32 %v399, %v162
    %v402 = vmul.f32 %v399, %v163
    %v403 = vadd.f32 %v395, %v401
    %v404 = vadd.f32 %v396, %v402
    %405 = vset.pattern.permute.xlu0 16
    %406 = vperm.xlu0 %405, %v335
    %v407 = vpop.permute.xlu0 %406
    %v409 = vmul.f32 %v407, %v164
    %v410 = vmul.f32 %v407, %v165
    %v411 = vadd.f32 %v403, %v409
    %v412 = vadd.f32 %v404, %v410
    %413 = vset.pattern.permute.xlu0 17
    %414 = vperm.xlu0 %413, %v335
    %v415 = vpop.permute.xlu0 %414
    %v417 = vmul.f32 %v415, %v166
    %v418 = vmul.f32 %v415, %v167
    %v419 = vadd.f32 %v411, %v417
    %v420 = vadd.f32 %v412, %v418
    %v421 = vsel %vm255, %v419, 0.0
    %v422 = vrot.slane %v421, 4
    %v423 = vadd.f32 %v421, %v422
    %v424 = vrot.slane %v423, 2
    %v425 = vadd.f32 %v423, %v424
    %v426 = vrot.slane %v425, 1
    %v427 = vadd.f32 %v425, %v426
    %v428 = vsel %vm255, %v420, 0.0
    %v429 = vrot.slane %v428, 4
    %v430 = vadd.f32 %v428, %v429
    %v431 = vrot.slane %v430, 2
    %v432 = vadd.f32 %v430, %v431
    %v433 = vrot.slane %v432, 1
    %v434 = vadd.f32 %v432, %v433
    %v437 = vcombine.low %v427, %v434
    %v439 = vunpack.c.l.s4 1966171168
    %v440 = vunpack.c.0.s8 %v439
    %v441 = vlaneseq
    %v442 = vshrl.u32 %v441, 7
    %v443 = vsub.s32 %v440, %v442
    %v444 = vrot.slane %v437, %v443
    %v446 = vunpack.c.l.s4 1966171168
    %v447 = vunpack.c.0.s8 %v446
    %v448 = vlaneseq
    %v449 = vshrl.u32 %v448, 7
    %v450 = vsub.s32 %v447, %v449
    %v451 = vrot.slane %v444, %v450
    %s453 = scalar_lea.vmem [#allocation3], 1
    %454 = vst.msk [vmem:[%s453] ss:$8 sm:$0x3] %vm291, %v451
    %455 = vst.msk [vmem:[%s453] ss:$8 sm:$0x0] %vm291, %v451
    %v458 = vrot.slane %v419, 4
    %v459 = vrot.slane %v420, 4
    %v462 = vsel %vm255, %v458, 0.0
    %v463 = vrot.slane %v462, 4
    %v464 = vadd.f32 %v462, %v463
    %v465 = vrot.slane %v464, 2
    %v466 = vadd.f32 %v464, %v465
    %v467 = vrot.slane %v466, 1
    %v468 = vadd.f32 %v466, %v467
    %v469 = vsel %vm255, %v459, 0.0
    %v470 = vrot.slane %v469, 4
    %v471 = vadd.f32 %v469, %v470
    %v472 = vrot.slane %v471, 2
    %v473 = vadd.f32 %v471, %v472
    %v474 = vrot.slane %v473, 1
    %v475 = vadd.f32 %v473, %v474
    %v478 = vcombine.low %v468, %v475
    %v480 = vunpack.c.l.s4 1966171168
    %v481 = vunpack.c.0.s8 %v480
    %v482 = vlaneseq
    %v483 = vshrl.u32 %v482, 7
    %v484 = vsub.s32 %v481, %v483
    %v485 = vrot.slane %v478, %v484
    %v487 = vunpack.c.l.s4 1966171168
    %v488 = vunpack.c.0.s8 %v487
    %v489 = vlaneseq
    %v490 = vshrl.u32 %v489, 7
    %v491 = vsub.s32 %v488, %v490
    %v492 = vrot.slane %v485, %v491
    %s494 = scalar_lea.vmem [#allocation3], 5
    %495 = vst.msk [vmem:[%s494] ss:$8 sm:$0x3] %vm291, %v492
    %496 = vst.msk [vmem:[%s494] ss:$8 sm:$0x0] %vm291, %v492
    %v497 = vld [vmem:[%s1] sm:$0xff]
    %499 = vset.pattern.permute.xlu0 18
    %500 = vperm.xlu0 %499, %v497
    %v501 = vpop.permute.xlu0 %500
    %v503 = vmul.f32 %v501, %v104
    %v504 = vmul.f32 %v501, %v105
    %505 = vset.pattern.permute.xlu0 19
    %506 = vperm.xlu0 %505, %v497
    %v507 = vpop.permute.xlu0 %506
    %v509 = vmul.f32 %v507, %v128
    %v510 = vmul.f32 %v507, %v129
    %v511 = vadd.f32 %v503, %v509
    %v512 = vadd.f32 %v504, %v510
    %513 = vset.pattern.permute.xlu0 20
    %514 = vperm.xlu0 %513, %v497
    %v515 = vpop.permute.xlu0 %514
    %v517 = vmul.f32 %v515, %v134
    %v518 = vmul.f32 %v515, %v135
    %v519 = vadd.f32 %v511, %v517
    %v520 = vadd.f32 %v512, %v518
    %521 = vset.pattern.permute.xlu0 21
    %522 = vperm.xlu0 %521, %v497
    %v523 = vpop.permute.xlu0 %522
    %v525 = vmul.f32 %v523, %v158
    %v526 = vmul.f32 %v523, %v159
    %v527 = vadd.f32 %v519, %v525
    %v528 = vadd.f32 %v520, %v526
    %529 = vset.pattern.permute.xlu0 22
    %530 = vperm.xlu0 %529, %v497
    %v531 = vpop.permute.xlu0 %530
    %v533 = vmul.f32 %v531, %v61
    %v534 = vmul.f32 %v531, %v62
    %v535 = vmul.f32 %v531, %v63
    %539 = vrot.lane.b32.xlu0 %v533, 111
    %v540 = vpop.permute.xlu0 %539
    %541 = vrot.lane.b32.xlu0 %v534, 111
    %v542 = vpop.permute.xlu0 %541
    %543 = vrot.lane.b32.xlu0 %v535, 111
    %v544 = vpop.permute.xlu0 %543
    %v545 = vsel %vm216, %v540, %v542
    %v546 = vsel %vm216, %v542, %v544
    %v549 = vadd.f32 %v527, %v545
    %v550 = vadd.f32 %v528, %v546
    %551 = vset.pattern.permute.xlu0 23
    %552 = vperm.xlu0 %551, %v497
    %v553 = vpop.permute.xlu0 %552
    %v555 = vmul.f32 %v553, %v160
    %v556 = vmul.f32 %v553, %v161
    %v557 = vadd.f32 %v549, %v555
    %v558 = vadd.f32 %v550, %v556
    %559 = vset.pattern.permute.xlu0 24
    %560 = vperm.xlu0 %559, %v497
    %v561 = vpop.permute.xlu0 %560
    %v563 = vmul.f32 %v561, %v162
    %v564 = vmul.f32 %v561, %v163
    %v565 = vadd.f32 %v557, %v563
    %v566 = vadd.f32 %v558, %v564
    %567 = vset.pattern.permute.xlu0 25
    %568 = vperm.xlu0 %567, %v497
    %v569 = vpop.permute.xlu0 %568
    %v571 = vmul.f32 %v569, %v164
    %v572 = vmul.f32 %v569, %v165
    %v573 = vadd.f32 %v565, %v571
    %v574 = vadd.f32 %v566, %v572
    %575 = vset.pattern.permute.xlu0 26
    %576 = vperm.xlu0 %575, %v497
    %v577 = vpop.permute.xlu0 %576
    %v579 = vmul.f32 %v577, %v166
    %v580 = vmul.f32 %v577, %v167
    %v581 = vadd.f32 %v573, %v579
    %v582 = vadd.f32 %v574, %v580
    %v583 = vsel %vm255, %v581, 0.0
    %v584 = vrot.slane %v583, 4
    %v585 = vadd.f32 %v583, %v584
    %v586 = vrot.slane %v585, 2
    %v587 = vadd.f32 %v585, %v586
    %v588 = vrot.slane %v587, 1
    %v589 = vadd.f32 %v587, %v588
    %v590 = vsel %vm255, %v582, 0.0
    %v591 = vrot.slane %v590, 4
    %v592 = vadd.f32 %v590, %v591
    %v593 = vrot.slane %v592, 2
    %v594 = vadd.f32 %v592, %v593
    %v595 = vrot.slane %v594, 1
    %v596 = vadd.f32 %v594, %v595
    %v599 = vcombine.low %v589, %v596
    %v601 = vunpack.c.l.s4 1966171168
    %v602 = vunpack.c.0.s8 %v601
    %v603 = vlaneseq
    %v604 = vshrl.u32 %v603, 7
    %v605 = vsub.s32 %v602, %v604
    %v606 = vrot.slane %v599, %v605
    %v608 = vunpack.c.l.s4 1966171168
    %v609 = vunpack.c.0.s8 %v608
    %v610 = vlaneseq
    %v611 = vshrl.u32 %v610, 7
    %v612 = vsub.s32 %v609, %v611
    %v613 = vrot.slane %v606, %v612
    %s615 = scalar_lea.vmem [#allocation3], 2
    %616 = vst.msk [vmem:[%s615] ss:$8 sm:$0x3] %vm291, %v613
    %617 = vst.msk [vmem:[%s615] ss:$8 sm:$0x0] %vm291, %v613
    %v620 = vrot.slane %v581, 4
    %v621 = vrot.slane %v582, 4
    %v624 = vsel %vm255, %v620, 0.0
    %v625 = vrot.slane %v624, 4
    %v626 = vadd.f32 %v624, %v625
    %v627 = vrot.slane %v626, 2
    %v628 = vadd.f32 %v626, %v627
    %v629 = vrot.slane %v628, 1
    %v630 = vadd.f32 %v628, %v629
    %v631 = vsel %vm255, %v621, 0.0
    %v632 = vrot.slane %v631, 4
    %v633 = vadd.f32 %v631, %v632
    %v634 = vrot.slane %v633, 2
    %v635 = vadd.f32 %v633, %v634
    %v636 = vrot.slane %v635, 1
    %v637 = vadd.f32 %v635, %v636
    %v640 = vcombine.low %v630, %v637
    %v642 = vunpack.c.l.s4 1966171168
    %v643 = vunpack.c.0.s8 %v642
    %v644 = vlaneseq
    %v645 = vshrl.u32 %v644, 7
    %v646 = vsub.s32 %v643, %v645
    %v647 = vrot.slane %v640, %v646
    %v649 = vunpack.c.l.s4 1966171168
    %v650 = vunpack.c.0.s8 %v649
    %v651 = vlaneseq
    %v652 = vshrl.u32 %v651, 7
    %v653 = vsub.s32 %v650, %v652
    %v654 = vrot.slane %v647, %v653
    %s656 = scalar_lea.vmem [#allocation3], 6
    %657 = vst.msk [vmem:[%s656] ss:$8 sm:$0x3] %vm291, %v654
    %658 = vst.msk [vmem:[%s656] ss:$8 sm:$0x0] %vm291, %v654
    %v659 = vld [vmem:[%s1] sm:$0xff]
    %661 = vset.pattern.permute.xlu0 27
    %662 = vperm.xlu0 %661, %v659
    %v663 = vpop.permute.xlu0 %662
    %v665 = vmul.f32 %v663, %v104
    %v666 = vmul.f32 %v663, %v105
    %667 = vset.pattern.permute.xlu0 28
    %668 = vperm.xlu0 %667, %v659
    %v669 = vpop.permute.xlu0 %668
    %v671 = vmul.f32 %v669, %v128
    %v672 = vmul.f32 %v669, %v129
    %v673 = vadd.f32 %v665, %v671
    %v674 = vadd.f32 %v666, %v672
    %675 = vset.pattern.permute.xlu0 29
    %676 = vperm.xlu0 %675, %v659
    %v677 = vpop.permute.xlu0 %676
    %v679 = vmul.f32 %v677, %v134
    %v680 = vmul.f32 %v677, %v135
    %v681 = vadd.f32 %v673, %v679
    %v682 = vadd.f32 %v674, %v680
    %683 = vset.pattern.permute.xlu0 30
    %684 = vperm.xlu0 %683, %v659
    %v685 = vpop.permute.xlu0 %684
    %v687 = vmul.f32 %v685, %v158
    %v688 = vmul.f32 %v685, %v159
    %v689 = vadd.f32 %v681, %v687
    %v690 = vadd.f32 %v682, %v688
    %691 = vset.pattern.permute.xlu0 31
    %692 = vperm.xlu0 %691, %v659
    %v693 = vpop.permute.xlu0 %692
    %v695 = vmul.f32 %v693, %v61
    %v696 = vmul.f32 %v693, %v62
    %v697 = vmul.f32 %v693, %v63
    %701 = vrot.lane.b32.xlu0 %v695, 111
    %v702 = vpop.permute.xlu0 %701
    %703 = vrot.lane.b32.xlu0 %v696, 111
    %v704 = vpop.permute.xlu0 %703
    %705 = vrot.lane.b32.xlu0 %v697, 111
    %v706 = vpop.permute.xlu0 %705
    %v707 = vsel %vm216, %v702, %v704
    %v708 = vsel %vm216, %v704, %v706
    %v711 = vadd.f32 %v689, %v707
    %v712 = vadd.f32 %v690, %v708
    %713 = vset.pattern.permute.xlu0 32
    %714 = vperm.xlu0 %713, %v659
    %v715 = vpop.permute.xlu0 %714
    %v717 = vmul.f32 %v715, %v160
    %v718 = vmul.f32 %v715, %v161
    %v719 = vadd.f32 %v711, %v717
    %v720 = vadd.f32 %v712, %v718
    %721 = vset.pattern.permute.xlu0 33
    %722 = vperm.xlu0 %721, %v659
    %v723 = vpop.permute.xlu0 %722
    %v725 = vmul.f32 %v723, %v162
    %v726 = vmul.f32 %v723, %v163
    %v727 = vadd.f32 %v719, %v725
    %v728 = vadd.f32 %v720, %v726
    %729 = vset.pattern.permute.xlu0 34
    %730 = vperm.xlu0 %729, %v659
    %v731 = vpop.permute.xlu0 %730
    %v733 = vmul.f32 %v731, %v164
    %v734 = vmul.f32 %v731, %v165
    %v735 = vadd.f32 %v727, %v733
    %v736 = vadd.f32 %v728, %v734
    %737 = vset.pattern.permute.xlu0 35
    %738 = vperm.xlu0 %737, %v659
    %v739 = vpop.permute.xlu0 %738
    %v741 = vmul.f32 %v739, %v166
    %v742 = vmul.f32 %v739, %v167
    %v743 = vadd.f32 %v735, %v741
    %v744 = vadd.f32 %v736, %v742
    %v745 = vsel %vm255, %v743, 0.0
    %v746 = vrot.slane %v745, 4
    %v747 = vadd.f32 %v745, %v746
    %v748 = vrot.slane %v747, 2
    %v749 = vadd.f32 %v747, %v748
    %v750 = vrot.slane %v749, 1
    %v751 = vadd.f32 %v749, %v750
    %v752 = vsel %vm255, %v744, 0.0
    %v753 = vrot.slane %v752, 4
    %v754 = vadd.f32 %v752, %v753
    %v755 = vrot.slane %v754, 2
    %v756 = vadd.f32 %v754, %v755
    %v757 = vrot.slane %v756, 1
    %v758 = vadd.f32 %v756, %v757
    %v761 = vcombine.low %v751, %v758
    %v763 = vunpack.c.l.s4 1966171168
    %v764 = vunpack.c.0.s8 %v763
    %v765 = vlaneseq
    %v766 = vshrl.u32 %v765, 7
    %v767 = vsub.s32 %v764, %v766
    %v768 = vrot.slane %v761, %v767
    %v770 = vunpack.c.l.s4 1966171168
    %v771 = vunpack.c.0.s8 %v770
    %v772 = vlaneseq
    %v773 = vshrl.u32 %v772, 7
    %v774 = vsub.s32 %v771, %v773
    %v775 = vrot.slane %v768, %v774
    %s777 = scalar_lea.vmem [#allocation3], 3
    %778 = vst.msk [vmem:[%s777] ss:$8 sm:$0x3] %vm291, %v775
    %779 = vst.msk [vmem:[%s777] ss:$8 sm:$0x0] %vm291, %v775
    %v782 = vrot.slane %v743, 4
    %v783 = vrot.slane %v744, 4
    %v786 = vsel %vm255, %v782, 0.0
    %v787 = vrot.slane %v786, 4
    %v788 = vadd.f32 %v786, %v787
    %v789 = vrot.slane %v788, 2
    %v790 = vadd.f32 %v788, %v789
    %v791 = vrot.slane %v790, 1
    %v792 = vadd.f32 %v790, %v791
    %v793 = vsel %vm255, %v783, 0.0
    %v794 = vrot.slane %v793, 4
    %v795 = vadd.f32 %v793, %v794
    %v796 = vrot.slane %v795, 2
    %v797 = vadd.f32 %v795, %v796
    %v798 = vrot.slane %v797, 1
    %v799 = vadd.f32 %v797, %v798
    %v802 = vcombine.low %v792, %v799
    %v804 = vunpack.c.l.s4 1966171168
    %v805 = vunpack.c.0.s8 %v804
    %v806 = vlaneseq
    %v807 = vshrl.u32 %v806, 7
    %v808 = vsub.s32 %v805, %v807
    %v809 = vrot.slane %v802, %v808
    %v811 = vunpack.c.l.s4 1966171168
    %v812 = vunpack.c.0.s8 %v811
    %v813 = vlaneseq
    %v814 = vshrl.u32 %v813, 7
    %v815 = vsub.s32 %v812, %v814
    %v816 = vrot.slane %v809, %v815
    %s818 = scalar_lea.vmem [#allocation3], 7
    %819 = vst.msk [vmem:[%s818] ss:$8 sm:$0x3] %vm291, %v816
    %820 = vst.msk [vmem:[%s818] ss:$8 sm:$0x0] %vm291, %v816
    %v821 = vld [vmem:[#allocation3] sm:$0xff]
    %v822 = vld [vmem:[#allocation3 + $0x8] sm:$0xff]
    %v823 = vld [vmem:[%s2] sm:$0xff]
    %825 = vset.pattern.permute.xlu0 0
    %826 = vperm.xlu0 %825, %v823
    %v827 = vpop.permute.xlu0 %826
    %v829 = vadd.f32 %v821, %v827
    %v830 = vadd.f32 %v822, %v827
    %v831 = vadd.f32 %v829, %v830
    %832 = vadd.xlane.f32.xlu0 %v831
    %v833 = vpop.xlane.xlu0 %832
    %v834 = vmul.f32 %v833, 0.00390625
    %v835 = vsub.f32 %v829, %v834
    %v836 = vsub.f32 %v830, %v834
    %v837 = vmul.f32 %v835, %v835
    %v838 = vmul.f32 %v836, %v836
    %v839 = vadd.f32 %v837, %v838
    %840 = vadd.xlane.f32.xlu0 %v839
    %v841 = vpop.xlane.xlu0 %840
    %v842 = vmul.f32 %v841, 0.00390625
    %v843 = vadd.f32 %v842, 1e-05
    %v844 = vrsqrt.pop %v843
    %v845 = vmul.f32 %v835, %v844
    %v846 = vmul.f32 %v836, %v844
    %v847 = vmax.f32 %v845, 0.0
    %v848 = vmax.f32 %v846, 0.0
    %851 = vrot.lane.b32.xlu0 %v847, 17
    %v852 = vpop.permute.xlu0 %851
    %853 = vrot.lane.b32.xlu0 %v848, 17
    %v854 = vpop.permute.xlu0 %853
    %v855 = vsel %vm52, %v852, %v854
    %859 = vst.msk [vmem:[#allocation2] sm:$0xff] %vm57, %v852
    %860 = vst [vmem:[#allocation2 + $0x8] sm:$0xff] %v855
    %861 = vst.msk [vmem:[#allocation2 + $0x10] sm:$0xff] %vm52, %v854
    %v862 = vld [vmem:[#allocation2] sm:$0xff]
    %v863 = vld [vmem:[#allocation2 + $0x8] sm:$0xff]
    %v864 = vld [vmem:[#allocation2 + $0x10] sm:$0xff]
    %868 = vrot.lane.b32.xlu0 %v862, 126
    %v869 = vpop.permute.xlu0 %868
    %870 = vrot.lane.b32.xlu0 %v863, 126
    %v871 = vpop.permute.xlu0 %870
    %872 = vrot.lane.b32.xlu0 %v864, 126
    %v873 = vpop.permute.xlu0 %872
    %v874 = vsel %vm73, %v869, %v871
    %v875 = vsel %vm73, %v871, %v873
    %v878 = vsel %vm32, %v874, %v862
    %v879 = vsel %vm33, %v875, %v863
    %880 = vrot.lane.b32.xlu0 %v862, 94
    %v881 = vpop.permute.xlu0 %880
    %882 = vrot.lane.b32.xlu0 %v863, 94
    %v883 = vpop.permute.xlu0 %882
    %884 = vrot.lane.b32.xlu0 %v864, 94
    %v885 = vpop.permute.xlu0 %884
    %v886 = vsel %vm86, %v881, %v883
    %v887 = vsel %vm86, %v883, %v885
    %890 = vrot.lane.b32.xlu0 %v862, 96
    %v891 = vpop.permute.xlu0 %890
    %892 = vrot.lane.b32.xlu0 %v863, 96
    %v893 = vpop.permute.xlu0 %892
    %894 = vrot.lane.b32.xlu0 %v864, 96
    %v895 = vpop.permute.xlu0 %894
    %v896 = vsel %vm97, %v891, %v893
    %v897 = vsel %vm97, %v893, %v895
    %v900 = vsel %vm32, %v886, %v896
    %v901 = vsel %vm33, %v887, %v897
    %v902 = vsel %vm36, %v900, %v878
    %v903 = vsel %vm37, %v901, %v879
    %904 = vrot.lane.b32.xlu0 %v862, 95
    %v905 = vpop.permute.xlu0 %904
    %906 = vrot.lane.b32.xlu0 %v863, 95
    %v907 = vpop.permute.xlu0 %906
    %908 = vrot.lane.b32.xlu0 %v864, 95
    %v909 = vpop.permute.xlu0 %908
    %v910 = vsel %vm112, %v905, %v907
    %v911 = vsel %vm112, %v907, %v909
    %914 = vrot.lane.b32.xlu0 %v862, 127
    %v915 = vpop.permute.xlu0 %914
    %916 = vrot.lane.b32.xlu0 %v863, 127
    %v917 = vpop.permute.xlu0 %916
    %918 = vrot.lane.b32.xlu0 %v864, 127
    %v919 = vpop.permute.xlu0 %918
    %v920 = vsel %vm123, %v915, %v917
    %v921 = vsel %vm123, %v917, %v919
    %v924 = vsel %vm36, %v910, %v920
    %v925 = vsel %vm37, %v911, %v921
    %v926 = vsel %vm34, %v862, %v874
    %v927 = vsel %vm35, %v863, %v875
    %v928 = vsel %vm34, %v896, %v886
    %v929 = vsel %vm35, %v897, %v887
    %v930 = vsel %vm36, %v928, %v926
    %v931 = vsel %vm37, %v929, %v927
    %932 = vrot.lane.b32.xlu0 %v862, 110
    %v933 = vpop.permute.xlu0 %932
    %934 = vrot.lane.b32.xlu0 %v863, 110
    %v935 = vpop.permute.xlu0 %934
    %936 = vrot.lane.b32.xlu0 %v864, 110
    %v937 = vpop.permute.xlu0 %936
    %v938 = vsel %vm142, %v933, %v935
    %v939 = vsel %vm142, %v935, %v937
    %942 = vrot.lane.b32.xlu0 %v862, 112
    %v943 = vpop.permute.xlu0 %942
    %944 = vrot.lane.b32.xlu0 %v863, 112
    %v945 = vpop.permute.xlu0 %944
    %946 = vrot.lane.b32.xlu0 %v864, 112
    %v947 = vpop.permute.xlu0 %946
    %v948 = vsel %vm153, %v943, %v945
    %v949 = vsel %vm153, %v945, %v947
    %v952 = vsel %vm32, %v938, %v948
    %v953 = vsel %vm33, %v939, %v949
    %v954 = vsel %vm34, %v948, %v938
    %v955 = vsel %vm35, %v949, %v939
    %v956 = vsel %vm38, %v878, %v900
    %v957 = vsel %vm39, %v879, %v901
    %v958 = vsel %vm38, %v920, %v910
    %v959 = vsel %vm39, %v921, %v911
    %v960 = vsel %vm38, %v926, %v928
    %v961 = vsel %vm39, %v927, %v929
    %s962 = scalar_lea.vmem %s1, 8
    %v963 = vld [vmem:[%s962] sm:$0xff]
    %965 = vset.pattern.permute.xlu0 0
    %966 = vperm.xlu0 %965, %v963
    %v967 = vpop.permute.xlu0 %966
    %v969 = vmul.f32 %v967, %v902
    %v970 = vmul.f32 %v967, %v903
    %971 = vset.pattern.permute.xlu0 1
    %972 = vperm.xlu0 %971, %v963
    %v973 = vpop.permute.xlu0 %972
    %v975 = vmul.f32 %v973, %v924
    %v976 = vmul.f32 %v973, %v925
    %v977 = vadd.f32 %v969, %v975
    %v978 = vadd.f32 %v970, %v976
    %979 = vset.pattern.permute.xlu0 2
    %980 = vperm.xlu0 %979, %v963
    %v981 = vpop.permute.xlu0 %980
    %v983 = vmul.f32 %v981, %v930
    %v984 = vmul.f32 %v981, %v931
    %v985 = vadd.f32 %v977, %v983
    %v986 = vadd.f32 %v978, %v984
    %987 = vset.pattern.permute.xlu0 3
    %988 = vperm.xlu0 %987, %v963
    %v989 = vpop.permute.xlu0 %988
    %v991 = vmul.f32 %v989, %v952
    %v992 = vmul.f32 %v989, %v953
    %v993 = vadd.f32 %v985, %v991
    %v994 = vadd.f32 %v986, %v992
    %995 = vset.pattern.permute.xlu0 4
    %996 = vperm.xlu0 %995, %v963
    %v997 = vpop.permute.xlu0 %996
    %v999 = vmul.f32 %v997, %v862
    %v1000 = vmul.f32 %v997, %v863
    %v1001 = vmul.f32 %v997, %v864
    %1005 = vrot.lane.b32.xlu0 %v999, 111
    %v1006 = vpop.permute.xlu0 %1005
    %1007 = vrot.lane.b32.xlu0 %v1000, 111
    %v1008 = vpop.permute.xlu0 %1007
    %1009 = vrot.lane.b32.xlu0 %v1001, 111
    %v1010 = vpop.permute.xlu0 %1009
    %v1011 = vsel %vm216, %v1006, %v1008
    %v1012 = vsel %vm216, %v1008, %v1010
    %v1015 = vadd.f32 %v993, %v1011
    %v1016 = vadd.f32 %v994, %v1012
    %1017 = vset.pattern.permute.xlu0 5
    %1018 = vperm.xlu0 %1017, %v963
    %v1019 = vpop.permute.xlu0 %1018
    %v1021 = vmul.f32 %v1019, %v954
    %v1022 = vmul.f32 %v1019, %v955
    %v1023 = vadd.f32 %v1015, %v1021
    %v1024 = vadd.f32 %v1016, %v1022
    %1025 = vset.pattern.permute.xlu0 6
    %1026 = vperm.xlu0 %1025, %v963
    %v1027 = vpop.permute.xlu0 %1026
    %v1029 = vmul.f32 %v1027, %v956
    %v1030 = vmul.f32 %v1027, %v957
    %v1031 = vadd.f32 %v1023, %v1029
    %v1032 = vadd.f32 %v1024, %v1030
    %1033 = vset.pattern.permute.xlu0 7
    %1034 = vperm.xlu0 %1033, %v963
    %v1035 = vpop.permute.xlu0 %1034
    %v1037 = vmul.f32 %v1035, %v958
    %v1038 = vmul.f32 %v1035, %v959
    %v1039 = vadd.f32 %v1031, %v1037
    %v1040 = vadd.f32 %v1032, %v1038
    %1041 = vset.pattern.permute.xlu0 8
    %1042 = vperm.xlu0 %1041, %v963
    %v1043 = vpop.permute.xlu0 %1042
    %v1045 = vmul.f32 %v1043, %v960
    %v1046 = vmul.f32 %v1043, %v961
    %v1047 = vadd.f32 %v1039, %v1045
    %v1048 = vadd.f32 %v1040, %v1046
    %v1049 = vsel %vm255, %v1047, 0.0
    %v1050 = vrot.slane %v1049, 4
    %v1051 = vadd.f32 %v1049, %v1050
    %v1052 = vrot.slane %v1051, 2
    %v1053 = vadd.f32 %v1051, %v1052
    %v1054 = vrot.slane %v1053, 1
    %v1055 = vadd.f32 %v1053, %v1054
    %v1056 = vsel %vm255, %v1048, 0.0
    %v1057 = vrot.slane %v1056, 4
    %v1058 = vadd.f32 %v1056, %v1057
    %v1059 = vrot.slane %v1058, 2
    %v1060 = vadd.f32 %v1058, %v1059
    %v1061 = vrot.slane %v1060, 1
    %v1062 = vadd.f32 %v1060, %v1061
    %v1065 = vcombine.low %v1055, %v1062
    %v1067 = vunpack.c.l.s4 1966171168
    %v1068 = vunpack.c.0.s8 %v1067
    %v1069 = vlaneseq
    %v1070 = vshrl.u32 %v1069, 7
    %v1071 = vsub.s32 %v1068, %v1070
    %v1072 = vrot.slane %v1065, %v1071
    %v1074 = vunpack.c.l.s4 1966171168
    %v1075 = vunpack.c.0.s8 %v1074
    %v1076 = vlaneseq
    %v1077 = vshrl.u32 %v1076, 7
    %v1078 = vsub.s32 %v1075, %v1077
    %v1079 = vrot.slane %v1072, %v1078
    %1081 = vst.msk [vmem:[#allocation3] ss:$8 sm:$0x3] %vm291, %v1079
    %1082 = vst.msk [vmem:[#allocation3] ss:$8 sm:$0x0] %vm291, %v1079
    %v1085 = vrot.slane %v1047, 4
    %v1086 = vrot.slane %v1048, 4
    %v1089 = vsel %vm255, %v1085, 0.0
    %v1090 = vrot.slane %v1089, 4
    %v1091 = vadd.f32 %v1089, %v1090
    %v1092 = vrot.slane %v1091, 2
    %v1093 = vadd.f32 %v1091, %v1092
    %v1094 = vrot.slane %v1093, 1
    %v1095 = vadd.f32 %v1093, %v1094
    %v1096 = vsel %vm255, %v1086, 0.0
    %v1097 = vrot.slane %v1096, 4
    %v1098 = vadd.f32 %v1096, %v1097
    %v1099 = vrot.slane %v1098, 2
    %v1100 = vadd.f32 %v1098, %v1099
    %v1101 = vrot.slane %v1100, 1
    %v1102 = vadd.f32 %v1100, %v1101
    %v1105 = vcombine.low %v1095, %v1102
    %v1107 = vunpack.c.l.s4 1966171168
    %v1108 = vunpack.c.0.s8 %v1107
    %v1109 = vlaneseq
    %v1110 = vshrl.u32 %v1109, 7
    %v1111 = vsub.s32 %v1108, %v1110
    %v1112 = vrot.slane %v1105, %v1111
    %v1114 = vunpack.c.l.s4 1966171168
    %v1115 = vunpack.c.0.s8 %v1114
    %v1116 = vlaneseq
    %v1117 = vshrl.u32 %v1116, 7
    %v1118 = vsub.s32 %v1115, %v1117
    %v1119 = vrot.slane %v1112, %v1118
    %1121 = vst.msk [vmem:[%s332] ss:$8 sm:$0x3] %vm291, %v1119
    %1122 = vst.msk [vmem:[%s332] ss:$8 sm:$0x0] %vm291, %v1119
    %v1123 = vld [vmem:[%s962] sm:$0xff]
    %1125 = vset.pattern.permute.xlu0 9
    %1126 = vperm.xlu0 %1125, %v1123
    %v1127 = vpop.permute.xlu0 %1126
    %v1129 = vmul.f32 %v1127, %v902
    %v1130 = vmul.f32 %v1127, %v903
    %1131 = vset.pattern.permute.xlu0 10
    %1132 = vperm.xlu0 %1131, %v1123
    %v1133 = vpop.permute.xlu0 %1132
    %v1135 = vmul.f32 %v1133, %v924
    %v1136 = vmul.f32 %v1133, %v925
    %v1137 = vadd.f32 %v1129, %v1135
    %v1138 = vadd.f32 %v1130, %v1136
    %1139 = vset.pattern.permute.xlu0 11
    %1140 = vperm.xlu0 %1139, %v1123
    %v1141 = vpop.permute.xlu0 %1140
    %v1143 = vmul.f32 %v1141, %v930
    %v1144 = vmul.f32 %v1141, %v931
    %v1145 = vadd.f32 %v1137, %v1143
    %v1146 = vadd.f32 %v1138, %v1144
    %1147 = vset.pattern.permute.xlu0 12
    %1148 = vperm.xlu0 %1147, %v1123
    %v1149 = vpop.permute.xlu0 %1148
    %v1151 = vmul.f32 %v1149, %v952
    %v1152 = vmul.f32 %v1149, %v953
    %v1153 = vadd.f32 %v1145, %v1151
    %v1154 = vadd.f32 %v1146, %v1152
    %1155 = vset.pattern.permute.xlu0 13
    %1156 = vperm.xlu0 %1155, %v1123
    %v1157 = vpop.permute.xlu0 %1156
    %v1159 = vmul.f32 %v1157, %v862
    %v1160 = vmul.f32 %v1157, %v863
    %v1161 = vmul.f32 %v1157, %v864
    %1165 = vrot.lane.b32.xlu0 %v1159, 111
    %v1166 = vpop.permute.xlu0 %1165
    %1167 = vrot.lane.b32.xlu0 %v1160, 111
    %v1168 = vpop.permute.xlu0 %1167
    %1169 = vrot.lane.b32.xlu0 %v1161, 111
    %v1170 = vpop.permute.xlu0 %1169
    %v1171 = vsel %vm216, %v1166, %v1168
    %v1172 = vsel %vm216, %v1168, %v1170
    %v1175 = vadd.f32 %v1153, %v1171
    %v1176 = vadd.f32 %v1154, %v1172
    %1177 = vset.pattern.permute.xlu0 14
    %1178 = vperm.xlu0 %1177, %v1123
    %v1179 = vpop.permute.xlu0 %1178
    %v1181 = vmul.f32 %v1179, %v954
    %v1182 = vmul.f32 %v1179, %v955
    %v1183 = vadd.f32 %v1175, %v1181
    %v1184 = vadd.f32 %v1176, %v1182
    %1185 = vset.pattern.permute.xlu0 15
    %1186 = vperm.xlu0 %1185, %v1123
    %v1187 = vpop.permute.xlu0 %1186
    %v1189 = vmul.f32 %v1187, %v956
    %v1190 = vmul.f32 %v1187, %v957
    %v1191 = vadd.f32 %v1183, %v1189
    %v1192 = vadd.f32 %v1184, %v1190
    %1193 = vset.pattern.permute.xlu0 16
    %1194 = vperm.xlu0 %1193, %v1123
    %v1195 = vpop.permute.xlu0 %1194
    %v1197 = vmul.f32 %v1195, %v958
    %v1198 = vmul.f32 %v1195, %v959
    %v1199 = vadd.f32 %v1191, %v1197
    %v1200 = vadd.f32 %v1192, %v1198
    %1201 = vset.pattern.permute.xlu0 17
    %1202 = vperm.xlu0 %1201, %v1123
    %v1203 = vpop.permute.xlu0 %1202
    %v1205 = vmul.f32 %v1203, %v960
    %v1206 = vmul.f32 %v1203, %v961
    %v1207 = vadd.f32 %v1199, %v1205
    %v1208 = vadd.f32 %v1200, %v1206
    %v1209 = vsel %vm255, %v1207, 0.0
    %v1210 = vrot.slane %v1209, 4
    %v1211 = vadd.f32 %v1209, %v1210
    %v1212 = vrot.slane %v1211, 2
    %v1213 = vadd.f32 %v1211, %v1212
    %v1214 = vrot.slane %v1213, 1
    %v1215 = vadd.f32 %v1213, %v1214
    %v1216 = vsel %vm255, %v1208, 0.0
    %v1217 = vrot.slane %v1216, 4
    %v1218 = vadd.f32 %v1216, %v1217
    %v1219 = vrot.slane %v1218, 2
    %v1220 = vadd.f32 %v1218, %v1219
    %v1221 = vrot.slane %v1220, 1
    %v1222 = vadd.f32 %v1220, %v1221
    %v1225 = vcombine.low %v1215, %v1222
    %v1227 = vunpack.c.l.s4 1966171168
    %v1228 = vunpack.c.0.s8 %v1227
    %v1229 = vlaneseq
    %v1230 = vshrl.u32 %v1229, 7
    %v1231 = vsub.s32 %v1228, %v1230
    %v1232 = vrot.slane %v1225, %v1231
    %v1234 = vunpack.c.l.s4 1966171168
    %v1235 = vunpack.c.0.s8 %v1234
    %v1236 = vlaneseq
    %v1237 = vshrl.u32 %v1236, 7
    %v1238 = vsub.s32 %v1235, %v1237
    %v1239 = vrot.slane %v1232, %v1238
    %1241 = vst.msk [vmem:[%s453] ss:$8 sm:$0x3] %vm291, %v1239
    %1242 = vst.msk [vmem:[%s453] ss:$8 sm:$0x0] %vm291, %v1239
    %v1245 = vrot.slane %v1207, 4
    %v1246 = vrot.slane %v1208, 4
    %v1249 = vsel %vm255, %v1245, 0.0
    %v1250 = vrot.slane %v1249, 4
    %v1251 = vadd.f32 %v1249, %v1250
    %v1252 = vrot.slane %v1251, 2
    %v1253 = vadd.f32 %v1251, %v1252
    %v1254 = vrot.slane %v1253, 1
    %v1255 = vadd.f32 %v1253, %v1254
    %v1256 = vsel %vm255, %v1246, 0.0
    %v1257 = vrot.slane %v1256, 4
    %v1258 = vadd.f32 %v1256, %v1257
    %v1259 = vrot.slane %v1258, 2
    %v1260 = vadd.f32 %v1258, %v1259
    %v1261 = vrot.slane %v1260, 1
    %v1262 = vadd.f32 %v1260, %v1261
    %v1265 = vcombine.low %v1255, %v1262
    %v1267 = vunpack.c.l.s4 1966171168
    %v1268 = vunpack.c.0.s8 %v1267
    %v1269 = vlaneseq
    %v1270 = vshrl.u32 %v1269, 7
    %v1271 = vsub.s32 %v1268, %v1270
    %v1272 = vrot.slane %v1265, %v1271
    %v1274 = vunpack.c.l.s4 1966171168
    %v1275 = vunpack.c.0.s8 %v1274
    %v1276 = vlaneseq
    %v1277 = vshrl.u32 %v1276, 7
    %v1278 = vsub.s32 %v1275, %v1277
    %v1279 = vrot.slane %v1272, %v1278
    %1281 = vst.msk [vmem:[%s494] ss:$8 sm:$0x3] %vm291, %v1279
    %1282 = vst.msk [vmem:[%s494] ss:$8 sm:$0x0] %vm291, %v1279
    %v1283 = vld [vmem:[%s962] sm:$0xff]
    %1285 = vset.pattern.permute.xlu0 18
    %1286 = vperm.xlu0 %1285, %v1283
    %v1287 = vpop.permute.xlu0 %1286
    %v1289 = vmul.f32 %v1287, %v902
    %v1290 = vmul.f32 %v1287, %v903
    %1291 = vset.pattern.permute.xlu0 19
    %1292 = vperm.xlu0 %1291, %v1283
    %v1293 = vpop.permute.xlu0 %1292
    %v1295 = vmul.f32 %v1293, %v924
    %v1296 = vmul.f32 %v1293, %v925
    %v1297 = vadd.f32 %v1289, %v1295
    %v1298 = vadd.f32 %v1290, %v1296
    %1299 = vset.pattern.permute.xlu0 20
    %1300 = vperm.xlu0 %1299, %v1283
    %v1301 = vpop.permute.xlu0 %1300
    %v1303 = vmul.f32 %v1301, %v930
    %v1304 = vmul.f32 %v1301, %v931
    %v1305 = vadd.f32 %v1297, %v1303
    %v1306 = vadd.f32 %v1298, %v1304
    %1307 = vset.pattern.permute.xlu0 21
    %1308 = vperm.xlu0 %1307, %v1283
    %v1309 = vpop.permute.xlu0 %1308
    %v1311 = vmul.f32 %v1309, %v952
    %v1312 = vmul.f32 %v1309, %v953
    %v1313 = vadd.f32 %v1305, %v1311
    %v1314 = vadd.f32 %v1306, %v1312
    %1315 = vset.pattern.permute.xlu0 22
    %1316 = vperm.xlu0 %1315, %v1283
    %v1317 = vpop.permute.xlu0 %1316
    %v1319 = vmul.f32 %v1317, %v862
    %v1320 = vmul.f32 %v1317, %v863
    %v1321 = vmul.f32 %v1317, %v864
    %1325 = vrot.lane.b32.xlu0 %v1319, 111
    %v1326 = vpop.permute.xlu0 %1325
    %1327 = vrot.lane.b32.xlu0 %v1320, 111
    %v1328 = vpop.permute.xlu0 %1327
    %1329 = vrot.lane.b32.xlu0 %v1321, 111
    %v1330 = vpop.permute.xlu0 %1329
    %v1331 = vsel %vm216, %v1326, %v1328
    %v1332 = vsel %vm216, %v1328, %v1330
    %v1335 = vadd.f32 %v1313, %v1331
    %v1336 = vadd.f32 %v1314, %v1332
    %1337 = vset.pattern.permute.xlu0 23
    %1338 = vperm.xlu0 %1337, %v1283
    %v1339 = vpop.permute.xlu0 %1338
    %v1341 = vmul.f32 %v1339, %v954
    %v1342 = vmul.f32 %v1339, %v955
    %v1343 = vadd.f32 %v1335, %v1341
    %v1344 = vadd.f32 %v1336, %v1342
    %1345 = vset.pattern.permute.xlu0 24
    %1346 = vperm.xlu0 %1345, %v1283
    %v1347 = vpop.permute.xlu0 %1346
    %v1349 = vmul.f32 %v1347, %v956
    %v1350 = vmul.f32 %v1347, %v957
    %v1351 = vadd.f32 %v1343, %v1349
    %v1352 = vadd.f32 %v1344, %v1350
    %1353 = vset.pattern.permute.xlu0 25
    %1354 = vperm.xlu0 %1353, %v1283
    %v1355 = vpop.permute.xlu0 %1354
    %v1357 = vmul.f32 %v1355, %v958
    %v1358 = vmul.f32 %v1355, %v959
    %v1359 = vadd.f32 %v1351, %v1357
    %v1360 = vadd.f32 %v1352, %v1358
    %1361 = vset.pattern.permute.xlu0 26
    %1362 = vperm.xlu0 %1361, %v1283
    %v1363 = vpop.permute.xlu0 %1362
    %v1365 = vmul.f32 %v1363, %v960
    %v1366 = vmul.f32 %v1363, %v961
    %v1367 = vadd.f32 %v1359, %v1365
    %v1368 = vadd.f32 %v1360, %v1366
    %v1369 = vsel %vm255, %v1367, 0.0
    %v1370 = vrot.slane %v1369, 4
    %v1371 = vadd.f32 %v1369, %v1370
    %v1372 = vrot.slane %v1371, 2
    %v1373 = vadd.f32 %v1371, %v1372
    %v1374 = vrot.slane %v1373, 1
    %v1375 = vadd.f32 %v1373, %v1374
    %v1376 = vsel %vm255, %v1368, 0.0
    %v1377 = vrot.slane %v1376, 4
    %v1378 = vadd.f32 %v1376, %v1377
    %v1379 = vrot.slane %v1378, 2
    %v1380 = vadd.f32 %v1378, %v1379
    %v1381 = vrot.slane %v1380, 1
    %v1382 = vadd.f32 %v1380, %v1381
    %v1385 = vcombine.low %v1375, %v1382
    %v1387 = vunpack.c.l.s4 1966171168
    %v1388 = vunpack.c.0.s8 %v1387
    %v1389 = vlaneseq
    %v1390 = vshrl.u32 %v1389, 7
    %v1391 = vsub.s32 %v1388, %v1390
    %v1392 = vrot.slane %v1385, %v1391
    %v1394 = vunpack.c.l.s4 1966171168
    %v1395 = vunpack.c.0.s8 %v1394
    %v1396 = vlaneseq
    %v1397 = vshrl.u32 %v1396, 7
    %v1398 = vsub.s32 %v1395, %v1397
    %v1399 = vrot.slane %v1392, %v1398
    %1401 = vst.msk [vmem:[%s615] ss:$8 sm:$0x3] %vm291, %v1399
    %1402 = vst.msk [vmem:[%s615] ss:$8 sm:$0x0] %vm291, %v1399
    %v1405 = vrot.slane %v1367, 4
    %v1406 = vrot.slane %v1368, 4
    %v1409 = vsel %vm255, %v1405, 0.0
    %v1410 = vrot.slane %v1409, 4
    %v1411 = vadd.f32 %v1409, %v1410
    %v1412 = vrot.slane %v1411, 2
    %v1413 = vadd.f32 %v1411, %v1412
    %v1414 = vrot.slane %v1413, 1
    %v1415 = vadd.f32 %v1413, %v1414
    %v1416 = vsel %vm255, %v1406, 0.0
    %v1417 = vrot.slane %v1416, 4
    %v1418 = vadd.f32 %v1416, %v1417
    %v1419 = vrot.slane %v1418, 2
    %v1420 = vadd.f32 %v1418, %v1419
    %v1421 = vrot.slane %v1420, 1
    %v1422 = vadd.f32 %v1420, %v1421
    %v1425 = vcombine.low %v1415, %v1422
    %v1427 = vunpack.c.l.s4 1966171168
    %v1428 = vunpack.c.0.s8 %v1427
    %v1429 = vlaneseq
    %v1430 = vshrl.u32 %v1429, 7
    %v1431 = vsub.s32 %v1428, %v1430
    %v1432 = vrot.slane %v1425, %v1431
    %v1434 = vunpack.c.l.s4 1966171168
    %v1435 = vunpack.c.0.s8 %v1434
    %v1436 = vlaneseq
    %v1437 = vshrl.u32 %v1436, 7
    %v1438 = vsub.s32 %v1435, %v1437
    %v1439 = vrot.slane %v1432, %v1438
    %1441 = vst.msk [vmem:[%s656] ss:$8 sm:$0x3] %vm291, %v1439
    %1442 = vst.msk [vmem:[%s656] ss:$8 sm:$0x0] %vm291, %v1439
    %v1443 = vld [vmem:[%s962] sm:$0xff]
    %1445 = vset.pattern.permute.xlu0 27
    %1446 = vperm.xlu0 %1445, %v1443
    %v1447 = vpop.permute.xlu0 %1446
    %v1449 = vmul.f32 %v1447, %v902
    %v1450 = vmul.f32 %v1447, %v903
    %1451 = vset.pattern.permute.xlu0 28
    %1452 = vperm.xlu0 %1451, %v1443
    %v1453 = vpop.permute.xlu0 %1452
    %v1455 = vmul.f32 %v1453, %v924
    %v1456 = vmul.f32 %v1453, %v925
    %v1457 = vadd.f32 %v1449, %v1455
    %v1458 = vadd.f32 %v1450, %v1456
    %1459 = vset.pattern.permute.xlu0 29
    %1460 = vperm.xlu0 %1459, %v1443
    %v1461 = vpop.permute.xlu0 %1460
    %v1463 = vmul.f32 %v1461, %v930
    %v1464 = vmul.f32 %v1461, %v931
    %v1465 = vadd.f32 %v1457, %v1463
    %v1466 = vadd.f32 %v1458, %v1464
    %1467 = vset.pattern.permute.xlu0 30
    %1468 = vperm.xlu0 %1467, %v1443
    %v1469 = vpop.permute.xlu0 %1468
    %v1471 = vmul.f32 %v1469, %v952
    %v1472 = vmul.f32 %v1469, %v953
    %v1473 = vadd.f32 %v1465, %v1471
    %v1474 = vadd.f32 %v1466, %v1472
    %1475 = vset.pattern.permute.xlu0 31
    %1476 = vperm.xlu0 %1475, %v1443
    %v1477 = vpop.permute.xlu0 %1476
    %v1479 = vmul.f32 %v1477, %v862
    %v1480 = vmul.f32 %v1477, %v863
    %v1481 = vmul.f32 %v1477, %v864
    %1485 = vrot.lane.b32.xlu0 %v1479, 111
    %v1486 = vpop.permute.xlu0 %1485
    %1487 = vrot.lane.b32.xlu0 %v1480, 111
    %v1488 = vpop.permute.xlu0 %1487
    %1489 = vrot.lane.b32.xlu0 %v1481, 111
    %v1490 = vpop.permute.xlu0 %1489
    %v1491 = vsel %vm216, %v1486, %v1488
    %v1492 = vsel %vm216, %v1488, %v1490
    %v1495 = vadd.f32 %v1473, %v1491
    %v1496 = vadd.f32 %v1474, %v1492
    %1497 = vset.pattern.permute.xlu0 32
    %1498 = vperm.xlu0 %1497, %v1443
    %v1499 = vpop.permute.xlu0 %1498
    %v1501 = vmul.f32 %v1499, %v954
    %v1502 = vmul.f32 %v1499, %v955
    %v1503 = vadd.f32 %v1495, %v1501
    %v1504 = vadd.f32 %v1496, %v1502
    %1505 = vset.pattern.permute.xlu0 33
    %1506 = vperm.xlu0 %1505, %v1443
    %v1507 = vpop.permute.xlu0 %1506
    %v1509 = vmul.f32 %v1507, %v956
    %v1510 = vmul.f32 %v1507, %v957
    %v1511 = vadd.f32 %v1503, %v1509
    %v1512 = vadd.f32 %v1504, %v1510
    %1513 = vset.pattern.permute.xlu0 34
    %1514 = vperm.xlu0 %1513, %v1443
    %v1515 = vpop.permute.xlu0 %1514
    %v1517 = vmul.f32 %v1515, %v958
    %v1518 = vmul.f32 %v1515, %v959
    %v1519 = vadd.f32 %v1511, %v1517
    %v1520 = vadd.f32 %v1512, %v1518
    %1521 = vset.pattern.permute.xlu0 35
    %1522 = vperm.xlu0 %1521, %v1443
    %v1523 = vpop.permute.xlu0 %1522
    %v1525 = vmul.f32 %v1523, %v960
    %v1526 = vmul.f32 %v1523, %v961
    %v1527 = vadd.f32 %v1519, %v1525
    %v1528 = vadd.f32 %v1520, %v1526
    %v1529 = vsel %vm255, %v1527, 0.0
    %v1530 = vrot.slane %v1529, 4
    %v1531 = vadd.f32 %v1529, %v1530
    %v1532 = vrot.slane %v1531, 2
    %v1533 = vadd.f32 %v1531, %v1532
    %v1534 = vrot.slane %v1533, 1
    %v1535 = vadd.f32 %v1533, %v1534
    %v1536 = vsel %vm255, %v1528, 0.0
    %v1537 = vrot.slane %v1536, 4
    %v1538 = vadd.f32 %v1536, %v1537
    %v1539 = vrot.slane %v1538, 2
    %v1540 = vadd.f32 %v1538, %v1539
    %v1541 = vrot.slane %v1540, 1
    %v1542 = vadd.f32 %v1540, %v1541
    %v1545 = vcombine.low %v1535, %v1542
    %v1547 = vunpack.c.l.s4 1966171168
    %v1548 = vunpack.c.0.s8 %v1547
    %v1549 = vlaneseq
    %v1550 = vshrl.u32 %v1549, 7
    %v1551 = vsub.s32 %v1548, %v1550
    %v1552 = vrot.slane %v1545, %v1551
    %v1554 = vunpack.c.l.s4 1966171168
    %v1555 = vunpack.c.0.s8 %v1554
    %v1556 = vlaneseq
    %v1557 = vshrl.u32 %v1556, 7
    %v1558 = vsub.s32 %v1555, %v1557
    %v1559 = vrot.slane %v1552, %v1558
    %1561 = vst.msk [vmem:[%s777] ss:$8 sm:$0x3] %vm291, %v1559
    %1562 = vst.msk [vmem:[%s777] ss:$8 sm:$0x0] %vm291, %v1559
    %v1565 = vrot.slane %v1527, 4
    %v1566 = vrot.slane %v1528, 4
    %v1569 = vsel %vm255, %v1565, 0.0
    %v1570 = vrot.slane %v1569, 4
    %v1571 = vadd.f32 %v1569, %v1570
    %v1572 = vrot.slane %v1571, 2
    %v1573 = vadd.f32 %v1571, %v1572
    %v1574 = vrot.slane %v1573, 1
    %v1575 = vadd.f32 %v1573, %v1574
    %v1576 = vsel %vm255, %v1566, 0.0
    %v1577 = vrot.slane %v1576, 4
    %v1578 = vadd.f32 %v1576, %v1577
    %v1579 = vrot.slane %v1578, 2
    %v1580 = vadd.f32 %v1578, %v1579
    %v1581 = vrot.slane %v1580, 1
    %v1582 = vadd.f32 %v1580, %v1581
    %v1585 = vcombine.low %v1575, %v1582
    %v1587 = vunpack.c.l.s4 1966171168
    %v1588 = vunpack.c.0.s8 %v1587
    %v1589 = vlaneseq
    %v1590 = vshrl.u32 %v1589, 7
    %v1591 = vsub.s32 %v1588, %v1590
    %v1592 = vrot.slane %v1585, %v1591
    %v1594 = vunpack.c.l.s4 1966171168
    %v1595 = vunpack.c.0.s8 %v1594
    %v1596 = vlaneseq
    %v1597 = vshrl.u32 %v1596, 7
    %v1598 = vsub.s32 %v1595, %v1597
    %v1599 = vrot.slane %v1592, %v1598
    %1601 = vst.msk [vmem:[%s818] ss:$8 sm:$0x3] %vm291, %v1599
    %1602 = vst.msk [vmem:[%s818] ss:$8 sm:$0x0] %vm291, %v1599
    %v1603 = vld [vmem:[#allocation3] sm:$0xff]
    %v1604 = vld [vmem:[#allocation3 + $0x8] sm:$0xff]
    %s1605 = scalar_lea.vmem %s2, 8
    %v1606 = vld [vmem:[%s1605] sm:$0xff]
    %1608 = vset.pattern.permute.xlu0 0
    %1609 = vperm.xlu0 %1608, %v1606
    %v1610 = vpop.permute.xlu0 %1609
    %v1612 = vadd.f32 %v1603, %v1610
    %v1613 = vadd.f32 %v1604, %v1610
    %v1614 = vadd.f32 %v1612, %v1613
    %1615 = vadd.xlane.f32.xlu0 %v1614
    %v1616 = vpop.xlane.xlu0 %1615
    %v1617 = vmul.f32 %v1616, 0.00390625
    %v1618 = vsub.f32 %v1612, %v1617
    %v1619 = vsub.f32 %v1613, %v1617
    %v1620 = vmul.f32 %v1618, %v1618
    %v1621 = vmul.f32 %v1619, %v1619
    %v1622 = vadd.f32 %v1620, %v1621
    %1623 = vadd.xlane.f32.xlu0 %v1622
    %v1624 = vpop.xlane.xlu0 %1623
    %v1625 = vmul.f32 %v1624, 0.00390625
    %v1626 = vadd.f32 %v1625, 1e-05
    %v1627 = vrsqrt.pop %v1626
    %v1628 = vmul.f32 %v1618, %v1627
    %v1629 = vmul.f32 %v1619, %v1627
    %v1630 = vadd.f32 %v1628, %v44
    %v1631 = vadd.f32 %v1629, %v45
    %1634 = vrot.lane.b32.xlu0 %v1630, 17
    %v1635 = vpop.permute.xlu0 %1634
    %1636 = vrot.lane.b32.xlu0 %v1631, 17
    %v1637 = vpop.permute.xlu0 %1636
    %v1638 = vsel %vm52, %v1635, %v1637
    %1642 = vst.msk [vmem:[#allocation2] sm:$0xff] %vm57, %v1635
    %1643 = vst [vmem:[#allocation2 + $0x8] sm:$0xff] %v1638
    %1644 = vst.msk [vmem:[#allocation2 + $0x10] sm:$0xff] %vm52, %v1637
    %v1645 = vld [vmem:[#allocation2] sm:$0xff]
    %v1646 = vld [vmem:[#allocation2 + $0x8] sm:$0xff]
    %v1647 = vld [vmem:[#allocation2 + $0x10] sm:$0xff]
    %1651 = vrot.lane.b32.xlu0 %v1645, 126
    %v1652 = vpop.permute.xlu0 %1651
    %1653 = vrot.lane.b32.xlu0 %v1646, 126
    %v1654 = vpop.permute.xlu0 %1653
    %1655 = vrot.lane.b32.xlu0 %v1647, 126
    %v1656 = vpop.permute.xlu0 %1655
    %v1657 = vsel %vm73, %v1652, %v1654
    %v1658 = vsel %vm73, %v1654, %v1656
    %v1661 = vsel %vm32, %v1657, %v1645
    %v1662 = vsel %vm33, %v1658, %v1646
    %1663 = vrot.lane.b32.xlu0 %v1645, 94
    %v1664 = vpop.permute.xlu0 %1663
    %1665 = vrot.lane.b32.xlu0 %v1646, 94
    %v1666 = vpop.permute.xlu0 %1665
    %1667 = vrot.lane.b32.xlu0 %v1647, 94
    %v1668 = vpop.permute.xlu0 %1667
    %v1669 = vsel %vm86, %v1664, %v1666
    %v1670 = vsel %vm86, %v1666, %v1668
    %1673 = vrot.lane.b32.xlu0 %v1645, 96
    %v1674 = vpop.permute.xlu0 %1673
    %1675 = vrot.lane.b32.xlu0 %v1646, 96
    %v1676 = vpop.permute.xlu0 %1675
    %1677 = vrot.lane.b32.xlu0 %v1647, 96
    %v1678 = vpop.permute.xlu0 %1677
    %v1679 = vsel %vm97, %v1674, %v1676
    %v1680 = vsel %vm97, %v1676, %v1678
    %v1683 = vsel %vm32, %v1669, %v1679
    %v1684 = vsel %vm33, %v1670, %v1680
    %v1685 = vsel %vm36, %v1683, %v1661
    %v1686 = vsel %vm37, %v1684, %v1662
    %1687 = vrot.lane.b32.xlu0 %v1645, 95
    %v1688 = vpop.permute.xlu0 %1687
    %1689 = vrot.lane.b32.xlu0 %v1646, 95
    %v1690 = vpop.permute.xlu0 %1689
    %1691 = vrot.lane.b32.xlu0 %v1647, 95
    %v1692 = vpop.permute.xlu0 %1691
    %v1693 = vsel %vm112, %v1688, %v1690
    %v1694 = vsel %vm112, %v1690, %v1692
    %1697 = vrot.lane.b32.xlu0 %v1645, 127
    %v1698 = vpop.permute.xlu0 %1697
    %1699 = vrot.lane.b32.xlu0 %v1646, 127
    %v1700 = vpop.permute.xlu0 %1699
    %1701 = vrot.lane.b32.xlu0 %v1647, 127
    %v1702 = vpop.permute.xlu0 %1701
    %v1703 = vsel %vm123, %v1698, %v1700
    %v1704 = vsel %vm123, %v1700, %v1702
    %v1707 = vsel %vm36, %v1693, %v1703
    %v1708 = vsel %vm37, %v1694, %v1704
    %v1709 = vsel %vm34, %v1645, %v1657
    %v1710 = vsel %vm35, %v1646, %v1658
    %v1711 = vsel %vm34, %v1679, %v1669
    %v1712 = vsel %vm35, %v1680, %v1670
    %v1713 = vsel %vm36, %v1711, %v1709
    %v1714 = vsel %vm37, %v1712, %v1710
    %1715 = vrot.lane.b32.xlu0 %v1645, 110
    %v1716 = vpop.permute.xlu0 %1715
    %1717 = vrot.lane.b32.xlu0 %v1646, 110
    %v1718 = vpop.permute.xlu0 %1717
    %1719 = vrot.lane.b32.xlu0 %v1647, 110
    %v1720 = vpop.permute.xlu0 %1719
    %v1721 = vsel %vm142, %v1716, %v1718
    %v1722 = vsel %vm142, %v1718, %v1720
    %1725 = vrot.lane.b32.xlu0 %v1645, 112
    %v1726 = vpop.permute.xlu0 %1725
    %1727 = vrot.lane.b32.xlu0 %v1646, 112
    %v1728 = vpop.permute.xlu0 %1727
    %1729 = vrot.lane.b32.xlu0 %v1647, 112
    %v1730 = vpop.permute.xlu0 %1729
    %v1731 = vsel %vm153, %v1726, %v1728
    %v1732 = vsel %vm153, %v1728, %v1730
    %v1735 = vsel %vm32, %v1721, %v1731
    %v1736 = vsel %vm33, %v1722, %v1732
    %v1737 = vsel %vm34, %v1731, %v1721
    %v1738 = vsel %vm35, %v1732, %v1722
    %v1739 = vsel %vm38, %v1661, %v1683
    %v1740 = vsel %vm39, %v1662, %v1684
    %v1741 = vsel %vm38, %v1703, %v1693
    %v1742 = vsel %vm39, %v1704, %v1694
    %v1743 = vsel %vm38, %v1709, %v1711
    %v1744 = vsel %vm39, %v1710, %v1712
    %s1745 = scalar_lea.vmem %s1, 16
    %v1746 = vld [vmem:[%s1745] sm:$0xff]
    %1748 = vset.pattern.permute.xlu0 0
    %1749 = vperm.xlu0 %1748, %v1746
    %v1750 = vpop.permute.xlu0 %1749
    %v1752 = vmul.f32 %v1750, %v1685
    %v1753 = vmul.f32 %v1750, %v1686
    %1754 = vset.pattern.permute.xlu0 1
    %1755 = vperm.xlu0 %1754, %v1746
    %v1756 = vpop.permute.xlu0 %1755
    %v1758 = vmul.f32 %v1756, %v1707
    %v1759 = vmul.f32 %v1756, %v1708
    %v1760 = vadd.f32 %v1752, %v1758
    %v1761 = vadd.f32 %v1753, %v1759
    %1762 = vset.pattern.permute.xlu0 2
    %1763 = vperm.xlu0 %1762, %v1746
    %v1764 = vpop.permute.xlu0 %1763
    %v1766 = vmul.f32 %v1764, %v1713
    %v1767 = vmul.f32 %v1764, %v1714
    %v1768 = vadd.f32 %v1760, %v1766
    %v1769 = vadd.f32 %v1761, %v1767
    %1770 = vset.pattern.permute.xlu0 3
    %1771 = vperm.xlu0 %1770, %v1746
    %v1772 = vpop.permute.xlu0 %1771
    %v1774 = vmul.f32 %v1772, %v1735
    %v1775 = vmul.f32 %v1772, %v1736
    %v1776 = vadd.f32 %v1768, %v1774
    %v1777 = vadd.f32 %v1769, %v1775
    %1778 = vset.pattern.permute.xlu0 4
    %1779 = vperm.xlu0 %1778, %v1746
    %v1780 = vpop.permute.xlu0 %1779
    %v1782 = vmul.f32 %v1780, %v1645
    %v1783 = vmul.f32 %v1780, %v1646
    %v1784 = vmul.f32 %v1780, %v1647
    %1788 = vrot.lane.b32.xlu0 %v1782, 111
    %v1789 = vpop.permute.xlu0 %1788
    %1790 = vrot.lane.b32.xlu0 %v1783, 111
    %v1791 = vpop.permute.xlu0 %1790
    %1792 = vrot.lane.b32.xlu0 %v1784, 111
    %v1793 = vpop.permute.xlu0 %1792
    %v1794 = vsel %vm216, %v1789, %v1791
    %v1795 = vsel %vm216, %v1791, %v1793
    %v1798 = vadd.f32 %v1776, %v1794
    %v1799 = vadd.f32 %v1777, %v1795
    %1800 = vset.pattern.permute.xlu0 5
    %1801 = vperm.xlu0 %1800, %v1746
    %v1802 = vpop.permute.xlu0 %1801
    %v1804 = vmul.f32 %v1802, %v1737
    %v1805 = vmul.f32 %v1802, %v1738
    %v1806 = vadd.f32 %v1798, %v1804
    %v1807 = vadd.f32 %v1799, %v1805
    %1808 = vset.pattern.permute.xlu0 6
    %1809 = vperm.xlu0 %1808, %v1746
    %v1810 = vpop.permute.xlu0 %1809
    %v1812 = vmul.f32 %v1810, %v1739
    %v1813 = vmul.f32 %v1810, %v1740
    %v1814 = vadd.f32 %v1806, %v1812
    %v1815 = vadd.f32 %v1807, %v1813
    %1816 = vset.pattern.permute.xlu0 7
    %1817 = vperm.xlu0 %1816, %v1746
    %v1818 = vpop.permute.xlu0 %1817
    %v1820 = vmul.f32 %v1818, %v1741
    %v1821 = vmul.f32 %v1818, %v1742
    %v1822 = vadd.f32 %v1814, %v1820
    %v1823 = vadd.f32 %v1815, %v1821
    %1824 = vset.pattern.permute.xlu0 8
    %1825 = vperm.xlu0 %1824, %v1746
    %v1826 = vpop.permute.xlu0 %1825
    %v1828 = vmul.f32 %v1826, %v1743
    %v1829 = vmul.f32 %v1826, %v1744
    %v1830 = vadd.f32 %v1822, %v1828
    %v1831 = vadd.f32 %v1823, %v1829
    %v1832 = vsel %vm255, %v1830, 0.0
    %v1833 = vrot.slane %v1832, 4
    %v1834 = vadd.f32 %v1832, %v1833
    %v1835 = vrot.slane %v1834, 2
    %v1836 = vadd.f32 %v1834, %v1835
    %v1837 = vrot.slane %v1836, 1
    %v1838 = vadd.f32 %v1836, %v1837
    %v1839 = vsel %vm255, %v1831, 0.0
    %v1840 = vrot.slane %v1839, 4
    %v1841 = vadd.f32 %v1839, %v1840
    %v1842 = vrot.slane %v1841, 2
    %v1843 = vadd.f32 %v1841, %v1842
    %v1844 = vrot.slane %v1843, 1
    %v1845 = vadd.f32 %v1843, %v1844
    %v1848 = vcombine.low %v1838, %v1845
    %v1850 = vunpack.c.l.s4 1966171168
    %v1851 = vunpack.c.0.s8 %v1850
    %v1852 = vlaneseq
    %v1853 = vshrl.u32 %v1852, 7
    %v1854 = vsub.s32 %v1851, %v1853
    %v1855 = vrot.slane %v1848, %v1854
    %v1857 = vunpack.c.l.s4 1966171168
    %v1858 = vunpack.c.0.s8 %v1857
    %v1859 = vlaneseq
    %v1860 = vshrl.u32 %v1859, 7
    %v1861 = vsub.s32 %v1858, %v1860
    %v1862 = vrot.slane %v1855, %v1861
    %1864 = vst.msk [vmem:[#allocation3] ss:$8 sm:$0x3] %vm291, %v1862
    %1865 = vst.msk [vmem:[#allocation3] ss:$8 sm:$0x0] %vm291, %v1862
    %v1868 = vrot.slane %v1830, 4
    %v1869 = vrot.slane %v1831, 4
    %v1872 = vsel %vm255, %v1868, 0.0
    %v1873 = vrot.slane %v1872, 4
    %v1874 = vadd.f32 %v1872, %v1873
    %v1875 = vrot.slane %v1874, 2
    %v1876 = vadd.f32 %v1874, %v1875
    %v1877 = vrot.slane %v1876, 1
    %v1878 = vadd.f32 %v1876, %v1877
    %v1879 = vsel %vm255, %v1869, 0.0
    %v1880 = vrot.slane %v1879, 4
    %v1881 = vadd.f32 %v1879, %v1880
    %v1882 = vrot.slane %v1881, 2
    %v1883 = vadd.f32 %v1881, %v1882
    %v1884 = vrot.slane %v1883, 1
    %v1885 = vadd.f32 %v1883, %v1884
    %v1888 = vcombine.low %v1878, %v1885
    %v1890 = vunpack.c.l.s4 1966171168
    %v1891 = vunpack.c.0.s8 %v1890
    %v1892 = vlaneseq
    %v1893 = vshrl.u32 %v1892, 7
    %v1894 = vsub.s32 %v1891, %v1893
    %v1895 = vrot.slane %v1888, %v1894
    %v1897 = vunpack.c.l.s4 1966171168
    %v1898 = vunpack.c.0.s8 %v1897
    %v1899 = vlaneseq
    %v1900 = vshrl.u32 %v1899, 7
    %v1901 = vsub.s32 %v1898, %v1900
    %v1902 = vrot.slane %v1895, %v1901
    %1904 = vst.msk [vmem:[%s332] ss:$8 sm:$0x3] %vm291, %v1902
    %1905 = vst.msk [vmem:[%s332] ss:$8 sm:$0x0] %vm291, %v1902
    %v1906 = vld [vmem:[%s1745] sm:$0xff]
    %1908 = vset.pattern.permute.xlu0 9
    %1909 = vperm.xlu0 %1908, %v1906
    %v1910 = vpop.permute.xlu0 %1909
    %v1912 = vmul.f32 %v1910, %v1685
    %v1913 = vmul.f32 %v1910, %v1686
    %1914 = vset.pattern.permute.xlu0 10
    %1915 = vperm.xlu0 %1914, %v1906
    %v1916 = vpop.permute.xlu0 %1915
    %v1918 = vmul.f32 %v1916, %v1707
    %v1919 = vmul.f32 %v1916, %v1708
    %v1920 = vadd.f32 %v1912, %v1918
    %v1921 = vadd.f32 %v1913, %v1919
    %1922 = vset.pattern.permute.xlu0 11
    %1923 = vperm.xlu0 %1922, %v1906
    %v1924 = vpop.permute.xlu0 %1923
    %v1926 = vmul.f32 %v1924, %v1713
    %v1927 = vmul.f32 %v1924, %v1714
    %v1928 = vadd.f32 %v1920, %v1926
    %v1929 = vadd.f32 %v1921, %v1927
    %1930 = vset.pattern.permute.xlu0 12
    %1931 = vperm.xlu0 %1930, %v1906
    %v1932 = vpop.permute.xlu0 %1931
    %v1934 = vmul.f32 %v1932, %v1735
    %v1935 = vmul.f32 %v1932, %v1736
    %v1936 = vadd.f32 %v1928, %v1934
    %v1937 = vadd.f32 %v1929, %v1935
    %1938 = vset.pattern.permute.xlu0 13
    %1939 = vperm.xlu0 %1938, %v1906
    %v1940 = vpop.permute.xlu0 %1939
    %v1942 = vmul.f32 %v1940, %v1645
    %v1943 = vmul.f32 %v1940, %v1646
    %v1944 = vmul.f32 %v1940, %v1647
    %1948 = vrot.lane.b32.xlu0 %v1942, 111
    %v1949 = vpop.permute.xlu0 %1948
    %1950 = vrot.lane.b32.xlu0 %v1943, 111
    %v1951 = vpop.permute.xlu0 %1950
    %1952 = vrot.lane.b32.xlu0 %v1944, 111
    %v1953 = vpop.permute.xlu0 %1952
    %v1954 = vsel %vm216, %v1949, %v1951
    %v1955 = vsel %vm216, %v1951, %v1953
    %v1958 = vadd.f32 %v1936, %v1954
    %v1959 = vadd.f32 %v1937, %v1955
    %1960 = vset.pattern.permute.xlu0 14
    %1961 = vperm.xlu0 %1960, %v1906
    %v1962 = vpop.permute.xlu0 %1961
    %v1964 = vmul.f32 %v1962, %v1737
    %v1965 = vmul.f32 %v1962, %v1738
    %v1966 = vadd.f32 %v1958, %v1964
    %v1967 = vadd.f32 %v1959, %v1965
    %1968 = vset.pattern.permute.xlu0 15
    %1969 = vperm.xlu0 %1968, %v1906
    %v1970 = vpop.permute.xlu0 %1969
    %v1972 = vmul.f32 %v1970, %v1739
    %v1973 = vmul.f32 %v1970, %v1740
    %v1974 = vadd.f32 %v1966, %v1972
    %v1975 = vadd.f32 %v1967, %v1973
    %1976 = vset.pattern.permute.xlu0 16
    %1977 = vperm.xlu0 %1976, %v1906
    %v1978 = vpop.permute.xlu0 %1977
    %v1980 = vmul.f32 %v1978, %v1741
    %v1981 = vmul.f32 %v1978, %v1742
    %v1982 = vadd.f32 %v1974, %v1980
    %v1983 = vadd.f32 %v1975, %v1981
    %1984 = vset.pattern.permute.xlu0 17
    %1985 = vperm.xlu0 %1984, %v1906
    %v1986 = vpop.permute.xlu0 %1985
    %v1988 = vmul.f32 %v1986, %v1743
    %v1989 = vmul.f32 %v1986, %v1744
    %v1990 = vadd.f32 %v1982, %v1988
    %v1991 = vadd.f32 %v1983, %v1989
    %v1992 = vsel %vm255, %v1990, 0.0
    %v1993 = vrot.slane %v1992, 4
    %v1994 = vadd.f32 %v1992, %v1993
    %v1995 = vrot.slane %v1994, 2
    %v1996 = vadd.f32 %v1994, %v1995
    %v1997 = vrot.slane %v1996, 1
    %v1998 = vadd.f32 %v1996, %v1997
    %v1999 = vsel %vm255, %v1991, 0.0
    %v2000 = vrot.slane %v1999, 4
    %v2001 = vadd.f32 %v1999, %v2000
    %v2002 = vrot.slane %v2001, 2
    %v2003 = vadd.f32 %v2001, %v2002
    %v2004 = vrot.slane %v2003, 1
    %v2005 = vadd.f32 %v2003, %v2004
    %v2008 = vcombine.low %v1998, %v2005
    %v2010 = vunpack.c.l.s4 1966171168
    %v2011 = vunpack.c.0.s8 %v2010
    %v2012 = vlaneseq
    %v2013 = vshrl.u32 %v2012, 7
    %v2014 = vsub.s32 %v2011, %v2013
    %v2015 = vrot.slane %v2008, %v2014
    %v2017 = vunpack.c.l.s4 1966171168
    %v2018 = vunpack.c.0.s8 %v2017
    %v2019 = vlaneseq
    %v2020 = vshrl.u32 %v2019, 7
    %v2021 = vsub.s32 %v2018, %v2020
    %v2022 = vrot.slane %v2015, %v2021
    %2024 = vst.msk [vmem:[%s453] ss:$8 sm:$0x3] %vm291, %v2022
    %2025 = vst.msk [vmem:[%s453] ss:$8 sm:$0x0] %vm291, %v2022
    %v2028 = vrot.slane %v1990, 4
    %v2029 = vrot.slane %v1991, 4
    %v2032 = vsel %vm255, %v2028, 0.0
    %v2033 = vrot.slane %v2032, 4
    %v2034 = vadd.f32 %v2032, %v2033
    %v2035 = vrot.slane %v2034, 2
    %v2036 = vadd.f32 %v2034, %v2035
    %v2037 = vrot.slane %v2036, 1
    %v2038 = vadd.f32 %v2036, %v2037
    %v2039 = vsel %vm255, %v2029, 0.0
    %v2040 = vrot.slane %v2039, 4
    %v2041 = vadd.f32 %v2039, %v2040
    %v2042 = vrot.slane %v2041, 2
    %v2043 = vadd.f32 %v2041, %v2042
    %v2044 = vrot.slane %v2043, 1
    %v2045 = vadd.f32 %v2043, %v2044
    %v2048 = vcombine.low %v2038, %v2045
    %v2050 = vunpack.c.l.s4 1966171168
    %v2051 = vunpack.c.0.s8 %v2050
    %v2052 = vlaneseq
    %v2053 = vshrl.u32 %v2052, 7
    %v2054 = vsub.s32 %v2051, %v2053
    %v2055 = vrot.slane %v2048, %v2054
    %v2057 = vunpack.c.l.s4 1966171168
    %v2058 = vunpack.c.0.s8 %v2057
    %v2059 = vlaneseq
    %v2060 = vshrl.u32 %v2059, 7
    %v2061 = vsub.s32 %v2058, %v2060
    %v2062 = vrot.slane %v2055, %v2061
    %2064 = vst.msk [vmem:[%s494] ss:$8 sm:$0x3] %vm291, %v2062
    %2065 = vst.msk [vmem:[%s494] ss:$8 sm:$0x0] %vm291, %v2062
    %v2066 = vld [vmem:[%s1745] sm:$0xff]
    %2068 = vset.pattern.permute.xlu0 18
    %2069 = vperm.xlu0 %2068, %v2066
    %v2070 = vpop.permute.xlu0 %2069
    %v2072 = vmul.f32 %v2070, %v1685
    %v2073 = vmul.f32 %v2070, %v1686
    %2074 = vset.pattern.permute.xlu0 19
    %2075 = vperm.xlu0 %2074, %v2066
    %v2076 = vpop.permute.xlu0 %2075
    %v2078 = vmul.f32 %v2076, %v1707
    %v2079 = vmul.f32 %v2076, %v1708
    %v2080 = vadd.f32 %v2072, %v2078
    %v2081 = vadd.f32 %v2073, %v2079
    %2082 = vset.pattern.permute.xlu0 20
    %2083 = vperm.xlu0 %2082, %v2066
    %v2084 = vpop.permute.xlu0 %2083
    %v2086 = vmul.f32 %v2084, %v1713
    %v2087 = vmul.f32 %v2084, %v1714
    %v2088 = vadd.f32 %v2080, %v2086
    %v2089 = vadd.f32 %v2081, %v2087
    %2090 = vset.pattern.permute.xlu0 21
    %2091 = vperm.xlu0 %2090, %v2066
    %v2092 = vpop.permute.xlu0 %2091
    %v2094 = vmul.f32 %v2092, %v1735
    %v2095 = vmul.f32 %v2092, %v1736
    %v2096 = vadd.f32 %v2088, %v2094
    %v2097 = vadd.f32 %v2089, %v2095
    %2098 = vset.pattern.permute.xlu0 22
    %2099 = vperm.xlu0 %2098, %v2066
    %v2100 = vpop.permute.xlu0 %2099
    %v2102 = vmul.f32 %v2100, %v1645
    %v2103 = vmul.f32 %v2100, %v1646
    %v2104 = vmul.f32 %v2100, %v1647
    %2108 = vrot.lane.b32.xlu0 %v2102, 111
    %v2109 = vpop.permute.xlu0 %2108
    %2110 = vrot.lane.b32.xlu0 %v2103, 111
    %v2111 = vpop.permute.xlu0 %2110
    %2112 = vrot.lane.b32.xlu0 %v2104, 111
    %v2113 = vpop.permute.xlu0 %2112
    %v2114 = vsel %vm216, %v2109, %v2111
    %v2115 = vsel %vm216, %v2111, %v2113
    %v2118 = vadd.f32 %v2096, %v2114
    %v2119 = vadd.f32 %v2097, %v2115
    %2120 = vset.pattern.permute.xlu0 23
    %2121 = vperm.xlu0 %2120, %v2066
    %v2122 = vpop.permute.xlu0 %2121
    %v2124 = vmul.f32 %v2122, %v1737
    %v2125 = vmul.f32 %v2122, %v1738
    %v2126 = vadd.f32 %v2118, %v2124
    %v2127 = vadd.f32 %v2119, %v2125
    %2128 = vset.pattern.permute.xlu0 24
    %2129 = vperm.xlu0 %2128, %v2066
    %v2130 = vpop.permute.xlu0 %2129
    %v2132 = vmul.f32 %v2130, %v1739
    %v2133 = vmul.f32 %v2130, %v1740
    %v2134 = vadd.f32 %v2126, %v2132
    %v2135 = vadd.f32 %v2127, %v2133
    %2136 = vset.pattern.permute.xlu0 25
    %2137 = vperm.xlu0 %2136, %v2066
    %v2138 = vpop.permute.xlu0 %2137
    %v2140 = vmul.f32 %v2138, %v1741
    %v2141 = vmul.f32 %v2138, %v1742
    %v2142 = vadd.f32 %v2134, %v2140
    %v2143 = vadd.f32 %v2135, %v2141
    %2144 = vset.pattern.permute.xlu0 26
    %2145 = vperm.xlu0 %2144, %v2066
    %v2146 = vpop.permute.xlu0 %2145
    %v2148 = vmul.f32 %v2146, %v1743
    %v2149 = vmul.f32 %v2146, %v1744
    %v2150 = vadd.f32 %v2142, %v2148
    %v2151 = vadd.f32 %v2143, %v2149
    %v2152 = vsel %vm255, %v2150, 0.0
    %v2153 = vrot.slane %v2152, 4
    %v2154 = vadd.f32 %v2152, %v2153
    %v2155 = vrot.slane %v2154, 2
    %v2156 = vadd.f32 %v2154, %v2155
    %v2157 = vrot.slane %v2156, 1
    %v2158 = vadd.f32 %v2156, %v2157
    %v2159 = vsel %vm255, %v2151, 0.0
    %v2160 = vrot.slane %v2159, 4
    %v2161 = vadd.f32 %v2159, %v2160
    %v2162 = vrot.slane %v2161, 2
    %v2163 = vadd.f32 %v2161, %v2162
    %v2164 = vrot.slane %v2163, 1
    %v2165 = vadd.f32 %v2163, %v2164
    %v2168 = vcombine.low %v2158, %v2165
    %v2170 = vunpack.c.l.s4 1966171168
    %v2171 = vunpack.c.0.s8 %v2170
    %v2172 = vlaneseq
    %v2173 = vshrl.u32 %v2172, 7
    %v2174 = vsub.s32 %v2171, %v2173
    %v2175 = vrot.slane %v2168, %v2174
    %v2177 = vunpack.c.l.s4 1966171168
    %v2178 = vunpack.c.0.s8 %v2177
    %v2179 = vlaneseq
    %v2180 = vshrl.u32 %v2179, 7
    %v2181 = vsub.s32 %v2178, %v2180
    %v2182 = vrot.slane %v2175, %v2181
    %2184 = vst.msk [vmem:[%s615] ss:$8 sm:$0x3] %vm291, %v2182
    %2185 = vst.msk [vmem:[%s615] ss:$8 sm:$0x0] %vm291, %v2182
    %v2188 = vrot.slane %v2150, 4
    %v2189 = vrot.slane %v2151, 4
    %v2192 = vsel %vm255, %v2188, 0.0
    %v2193 = vrot.slane %v2192, 4
    %v2194 = vadd.f32 %v2192, %v2193
    %v2195 = vrot.slane %v2194, 2
    %v2196 = vadd.f32 %v2194, %v2195
    %v2197 = vrot.slane %v2196, 1
    %v2198 = vadd.f32 %v2196, %v2197
    %v2199 = vsel %vm255, %v2189, 0.0
    %v2200 = vrot.slane %v2199, 4
    %v2201 = vadd.f32 %v2199, %v2200
    %v2202 = vrot.slane %v2201, 2
    %v2203 = vadd.f32 %v2201, %v2202
    %v2204 = vrot.slane %v2203, 1
    %v2205 = vadd.f32 %v2203, %v2204
    %v2208 = vcombine.low %v2198, %v2205
    %v2210 = vunpack.c.l.s4 1966171168
    %v2211 = vunpack.c.0.s8 %v2210
    %v2212 = vlaneseq
    %v2213 = vshrl.u32 %v2212, 7
    %v2214 = vsub.s32 %v2211, %v2213
    %v2215 = vrot.slane %v2208, %v2214
    %v2217 = vunpack.c.l.s4 1966171168
    %v2218 = vunpack.c.0.s8 %v2217
    %v2219 = vlaneseq
    %v2220 = vshrl.u32 %v2219, 7
    %v2221 = vsub.s32 %v2218, %v2220
    %v2222 = vrot.slane %v2215, %v2221
    %2224 = vst.msk [vmem:[%s656] ss:$8 sm:$0x3] %vm291, %v2222
    %2225 = vst.msk [vmem:[%s656] ss:$8 sm:$0x0] %vm291, %v2222
    %v2226 = vld [vmem:[%s1745] sm:$0xff]
    %2228 = vset.pattern.permute.xlu0 27
    %2229 = vperm.xlu0 %2228, %v2226
    %v2230 = vpop.permute.xlu0 %2229
    %v2232 = vmul.f32 %v2230, %v1685
    %v2233 = vmul.f32 %v2230, %v1686
    %2234 = vset.pattern.permute.xlu0 28
    %2235 = vperm.xlu0 %2234, %v2226
    %v2236 = vpop.permute.xlu0 %2235
    %v2238 = vmul.f32 %v2236, %v1707
    %v2239 = vmul.f32 %v2236, %v1708
    %v2240 = vadd.f32 %v2232, %v2238
    %v2241 = vadd.f32 %v2233, %v2239
    %2242 = vset.pattern.permute.xlu0 29
    %2243 = vperm.xlu0 %2242, %v2226
    %v2244 = vpop.permute.xlu0 %2243
    %v2246 = vmul.f32 %v2244, %v1713
    %v2247 = vmul.f32 %v2244, %v1714
    %v2248 = vadd.f32 %v2240, %v2246
    %v2249 = vadd.f32 %v2241, %v2247
    %2250 = vset.pattern.permute.xlu0 30
    %2251 = vperm.xlu0 %2250, %v2226
    %v2252 = vpop.permute.xlu0 %2251
    %v2254 = vmul.f32 %v2252, %v1735
    %v2255 = vmul.f32 %v2252, %v1736
    %v2256 = vadd.f32 %v2248, %v2254
    %v2257 = vadd.f32 %v2249, %v2255
    %2258 = vset.pattern.permute.xlu0 31
    %2259 = vperm.xlu0 %2258, %v2226
    %v2260 = vpop.permute.xlu0 %2259
    %v2262 = vmul.f32 %v2260, %v1645
    %v2263 = vmul.f32 %v2260, %v1646
    %v2264 = vmul.f32 %v2260, %v1647
    %2268 = vrot.lane.b32.xlu0 %v2262, 111
    %v2269 = vpop.permute.xlu0 %2268
    %2270 = vrot.lane.b32.xlu0 %v2263, 111
    %v2271 = vpop.permute.xlu0 %2270
    %2272 = vrot.lane.b32.xlu0 %v2264, 111
    %v2273 = vpop.permute.xlu0 %2272
    %v2274 = vsel %vm216, %v2269, %v2271
    %v2275 = vsel %vm216, %v2271, %v2273
    %v2278 = vadd.f32 %v2256, %v2274
    %v2279 = vadd.f32 %v2257, %v2275
    %2280 = vset.pattern.permute.xlu0 32
    %2281 = vperm.xlu0 %2280, %v2226
    %v2282 = vpop.permute.xlu0 %2281
    %v2284 = vmul.f32 %v2282, %v1737
    %v2285 = vmul.f32 %v2282, %v1738
    %v2286 = vadd.f32 %v2278, %v2284
    %v2287 = vadd.f32 %v2279, %v2285
    %2288 = vset.pattern.permute.xlu0 33
    %2289 = vperm.xlu0 %2288, %v2226
    %v2290 = vpop.permute.xlu0 %2289
    %v2292 = vmul.f32 %v2290, %v1739
    %v2293 = vmul.f32 %v2290, %v1740
    %v2294 = vadd.f32 %v2286, %v2292
    %v2295 = vadd.f32 %v2287, %v2293
    %2296 = vset.pattern.permute.xlu0 34
    %2297 = vperm.xlu0 %2296, %v2226
    %v2298 = vpop.permute.xlu0 %2297
    %v2300 = vmul.f32 %v2298, %v1741
    %v2301 = vmul.f32 %v2298, %v1742
    %v2302 = vadd.f32 %v2294, %v2300
    %v2303 = vadd.f32 %v2295, %v2301
    %2304 = vset.pattern.permute.xlu0 35
    %2305 = vperm.xlu0 %2304, %v2226
    %v2306 = vpop.permute.xlu0 %2305
    %v2308 = vmul.f32 %v2306, %v1743
    %v2309 = vmul.f32 %v2306, %v1744
    %v2310 = vadd.f32 %v2302, %v2308
    %v2311 = vadd.f32 %v2303, %v2309
    %v2312 = vsel %vm255, %v2310, 0.0
    %v2313 = vrot.slane %v2312, 4
    %v2314 = vadd.f32 %v2312, %v2313
    %v2315 = vrot.slane %v2314, 2
    %v2316 = vadd.f32 %v2314, %v2315
    %v2317 = vrot.slane %v2316, 1
    %v2318 = vadd.f32 %v2316, %v2317
    %v2319 = vsel %vm255, %v2311, 0.0
    %v2320 = vrot.slane %v2319, 4
    %v2321 = vadd.f32 %v2319, %v2320
    %v2322 = vrot.slane %v2321, 2
    %v2323 = vadd.f32 %v2321, %v2322
    %v2324 = vrot.slane %v2323, 1
    %v2325 = vadd.f32 %v2323, %v2324
    %v2328 = vcombine.low %v2318, %v2325
    %v2330 = vunpack.c.l.s4 1966171168
    %v2331 = vunpack.c.0.s8 %v2330
    %v2332 = vlaneseq
    %v2333 = vshrl.u32 %v2332, 7
    %v2334 = vsub.s32 %v2331, %v2333
    %v2335 = vrot.slane %v2328, %v2334
    %v2337 = vunpack.c.l.s4 1966171168
    %v2338 = vunpack.c.0.s8 %v2337
    %v2339 = vlaneseq
    %v2340 = vshrl.u32 %v2339, 7
    %v2341 = vsub.s32 %v2338, %v2340
    %v2342 = vrot.slane %v2335, %v2341
    %2344 = vst.msk [vmem:[%s777] ss:$8 sm:$0x3] %vm291, %v2342
    %2345 = vst.msk [vmem:[%s777] ss:$8 sm:$0x0] %vm291, %v2342
    %v2348 = vrot.slane %v2310, 4
    %v2349 = vrot.slane %v2311, 4
    %v2352 = vsel %vm255, %v2348, 0.0
    %v2353 = vrot.slane %v2352, 4
    %v2354 = vadd.f32 %v2352, %v2353
    %v2355 = vrot.slane %v2354, 2
    %v2356 = vadd.f32 %v2354, %v2355
    %v2357 = vrot.slane %v2356, 1
    %v2358 = vadd.f32 %v2356, %v2357
    %v2359 = vsel %vm255, %v2349, 0.0
    %v2360 = vrot.slane %v2359, 4
    %v2361 = vadd.f32 %v2359, %v2360
    %v2362 = vrot.slane %v2361, 2
    %v2363 = vadd.f32 %v2361, %v2362
    %v2364 = vrot.slane %v2363, 1
    %v2365 = vadd.f32 %v2363, %v2364
    %v2368 = vcombine.low %v2358, %v2365
    %v2370 = vunpack.c.l.s4 1966171168
    %v2371 = vunpack.c.0.s8 %v2370
    %v2372 = vlaneseq
    %v2373 = vshrl.u32 %v2372, 7
    %v2374 = vsub.s32 %v2371, %v2373
    %v2375 = vrot.slane %v2368, %v2374
    %v2377 = vunpack.c.l.s4 1966171168
    %v2378 = vunpack.c.0.s8 %v2377
    %v2379 = vlaneseq
    %v2380 = vshrl.u32 %v2379, 7
    %v2381 = vsub.s32 %v2378, %v2380
    %v2382 = vrot.slane %v2375, %v2381
    %2384 = vst.msk [vmem:[%s818] ss:$8 sm:$0x3] %vm291, %v2382
    %2385 = vst.msk [vmem:[%s818] ss:$8 sm:$0x0] %vm291, %v2382
    %v2386 = vld [vmem:[#allocation3] sm:$0xff]
    %v2387 = vld [vmem:[#allocation3 + $0x8] sm:$0xff]
    %s2388 = scalar_lea.vmem %s2, 16
    %v2389 = vld [vmem:[%s2388] sm:$0xff]
    %2391 = vset.pattern.permute.xlu0 0
    %2392 = vperm.xlu0 %2391, %v2389
    %v2393 = vpop.permute.xlu0 %2392
    %v2395 = vadd.f32 %v2386, %v2393
    %v2396 = vadd.f32 %v2387, %v2393
    %v2397 = vadd.f32 %v2395, %v2396
    %2398 = vadd.xlane.f32.xlu0 %v2397
    %v2399 = vpop.xlane.xlu0 %2398
    %v2400 = vmul.f32 %v2399, 0.00390625
    %v2401 = vsub.f32 %v2395, %v2400
    %v2402 = vsub.f32 %v2396, %v2400
    %v2403 = vmul.f32 %v2401, %v2401
    %v2404 = vmul.f32 %v2402, %v2402
    %v2405 = vadd.f32 %v2403, %v2404
    %2406 = vadd.xlane.f32.xlu0 %v2405
    %v2407 = vpop.xlane.xlu0 %2406
    %v2408 = vmul.f32 %v2407, 0.00390625
    %v2409 = vadd.f32 %v2408, 1e-05
    %v2410 = vrsqrt.pop %v2409
    %v2411 = vmul.f32 %v2401, %v2410
    %v2412 = vmul.f32 %v2402, %v2410
    %v2413 = vmax.f32 %v2411, 0.0
    %v2414 = vmax.f32 %v2412, 0.0
    %2417 = vrot.lane.b32.xlu0 %v2413, 17
    %v2418 = vpop.permute.xlu0 %2417
    %2419 = vrot.lane.b32.xlu0 %v2414, 17
    %v2420 = vpop.permute.xlu0 %2419
    %v2421 = vsel %vm52, %v2418, %v2420
    %2425 = vst.msk [vmem:[#allocation2] sm:$0xff] %vm57, %v2418
    %2426 = vst [vmem:[#allocation2 + $0x8] sm:$0xff] %v2421
    %2427 = vst.msk [vmem:[#allocation2 + $0x10] sm:$0xff] %vm52, %v2420
    %v2428 = vld [vmem:[#allocation2] sm:$0xff]
    %v2429 = vld [vmem:[#allocation2 + $0x8] sm:$0xff]
    %v2430 = vld [vmem:[#allocation2 + $0x10] sm:$0xff]
    %2434 = vrot.lane.b32.xlu0 %v2428, 126
    %v2435 = vpop.permute.xlu0 %2434
    %2436 = vrot.lane.b32.xlu0 %v2429, 126
    %v2437 = vpop.permute.xlu0 %2436
    %2438 = vrot.lane.b32.xlu0 %v2430, 126
    %v2439 = vpop.permute.xlu0 %2438
    %v2440 = vsel %vm73, %v2435, %v2437
    %v2441 = vsel %vm73, %v2437, %v2439
    %v2444 = vsel %vm32, %v2440, %v2428
    %v2445 = vsel %vm33, %v2441, %v2429
    %2446 = vrot.lane.b32.xlu0 %v2428, 94
    %v2447 = vpop.permute.xlu0 %2446
    %2448 = vrot.lane.b32.xlu0 %v2429, 94
    %v2449 = vpop.permute.xlu0 %2448
    %2450 = vrot.lane.b32.xlu0 %v2430, 94
    %v2451 = vpop.permute.xlu0 %2450
    %v2452 = vsel %vm86, %v2447, %v2449
    %v2453 = vsel %vm86, %v2449, %v2451
    %2456 = vrot.lane.b32.xlu0 %v2428, 96
    %v2457 = vpop.permute.xlu0 %2456
    %2458 = vrot.lane.b32.xlu0 %v2429, 96
    %v2459 = vpop.permute.xlu0 %2458
    %2460 = vrot.lane.b32.xlu0 %v2430, 96
    %v2461 = vpop.permute.xlu0 %2460
    %v2462 = vsel %vm97, %v2457, %v2459
    %v2463 = vsel %vm97, %v2459, %v2461
    %v2466 = vsel %vm32, %v2452, %v2462
    %v2467 = vsel %vm33, %v2453, %v2463
    %v2468 = vsel %vm36, %v2466, %v2444
    %v2469 = vsel %vm37, %v2467, %v2445
    %2470 = vrot.lane.b32.xlu0 %v2428, 95
    %v2471 = vpop.permute.xlu0 %2470
    %2472 = vrot.lane.b32.xlu0 %v2429, 95
    %v2473 = vpop.permute.xlu0 %2472
    %2474 = vrot.lane.b32.xlu0 %v2430, 95
    %v2475 = vpop.permute.xlu0 %2474
    %v2476 = vsel %vm112, %v2471, %v2473
    %v2477 = vsel %vm112, %v2473, %v2475
    %2480 = vrot.lane.b32.xlu0 %v2428, 127
    %v2481 = vpop.permute.xlu0 %2480
    %2482 = vrot.lane.b32.xlu0 %v2429, 127
    %v2483 = vpop.permute.xlu0 %2482
    %2484 = vrot.lane.b32.xlu0 %v2430, 127
    %v2485 = vpop.permute.xlu0 %2484
    %v2486 = vsel %vm123, %v2481, %v2483
    %v2487 = vsel %vm123, %v2483, %v2485
    %v2490 = vsel %vm36, %v2476, %v2486
    %v2491 = vsel %vm37, %v2477, %v2487
    %v2492 = vsel %vm34, %v2428, %v2440
    %v2493 = vsel %vm35, %v2429, %v2441
    %v2494 = vsel %vm34, %v2462, %v2452
    %v2495 = vsel %vm35, %v2463, %v2453
    %v2496 = vsel %vm36, %v2494, %v2492
    %v2497 = vsel %vm37, %v2495, %v2493
    %2498 = vrot.lane.b32.xlu0 %v2428, 110
    %v2499 = vpop.permute.xlu0 %2498
    %2500 = vrot.lane.b32.xlu0 %v2429, 110
    %v2501 = vpop.permute.xlu0 %2500
    %2502 = vrot.lane.b32.xlu0 %v2430, 110
    %v2503 = vpop.permute.xlu0 %2502
    %v2504 = vsel %vm142, %v2499, %v2501
    %v2505 = vsel %vm142, %v2501, %v2503
    %2508 = vrot.lane.b32.xlu0 %v2428, 112
    %v2509 = vpop.permute.xlu0 %2508
    %2510 = vrot.lane.b32.xlu0 %v2429, 112
    %v2511 = vpop.permute.xlu0 %2510
    %2512 = vrot.lane.b32.xlu0 %v2430, 112
    %v2513 = vpop.permute.xlu0 %2512
    %v2514 = vsel %vm153, %v2509, %v2511
    %v2515 = vsel %vm153, %v2511, %v2513
    %v2518 = vsel %vm32, %v2504, %v2514
    %v2519 = vsel %vm33, %v2505, %v2515
    %v2520 = vsel %vm34, %v2514, %v2504
    %v2521 = vsel %vm35, %v2515, %v2505
    %v2522 = vsel %vm38, %v2444, %v2466
    %v2523 = vsel %vm39, %v2445, %v2467
    %v2524 = vsel %vm38, %v2486, %v2476
    %v2525 = vsel %vm39, %v2487, %v2477
    %v2526 = vsel %vm38, %v2492, %v2494
    %v2527 = vsel %vm39, %v2493, %v2495
    %s2528 = scalar_lea.vmem %s1, 24
    %v2529 = vld [vmem:[%s2528] sm:$0xff]
    %2531 = vset.pattern.permute.xlu0 0
    %2532 = vperm.xlu0 %2531, %v2529
    %v2533 = vpop.permute.xlu0 %2532
    %v2535 = vmul.f32 %v2533, %v2468
    %v2536 = vmul.f32 %v2533, %v2469
    %2537 = vset.pattern.permute.xlu0 1
    %2538 = vperm.xlu0 %2537, %v2529
    %v2539 = vpop.permute.xlu0 %2538
    %v2541 = vmul.f32 %v2539, %v2490
    %v2542 = vmul.f32 %v2539, %v2491
    %v2543 = vadd.f32 %v2535, %v2541
    %v2544 = vadd.f32 %v2536, %v2542
    %2545 = vset.pattern.permute.xlu0 2
    %2546 = vperm.xlu0 %2545, %v2529
    %v2547 = vpop.permute.xlu0 %2546
    %v2549 = vmul.f32 %v2547, %v2496
    %v2550 = vmul.f32 %v2547, %v2497
    %v2551 = vadd.f32 %v2543, %v2549
    %v2552 = vadd.f32 %v2544, %v2550
    %2553 = vset.pattern.permute.xlu0 3
    %2554 = vperm.xlu0 %2553, %v2529
    %v2555 = vpop.permute.xlu0 %2554
    %v2557 = vmul.f32 %v2555, %v2518
    %v2558 = vmul.f32 %v2555, %v2519
    %v2559 = vadd.f32 %v2551, %v2557
    %v2560 = vadd.f32 %v2552, %v2558
    %2561 = vset.pattern.permute.xlu0 4
    %2562 = vperm.xlu0 %2561, %v2529
    %v2563 = vpop.permute.xlu0 %2562
    %v2565 = vmul.f32 %v2563, %v2428
    %v2566 = vmul.f32 %v2563, %v2429
    %v2567 = vmul.f32 %v2563, %v2430
    %2571 = vrot.lane.b32.xlu0 %v2565, 111
    %v2572 = vpop.permute.xlu0 %2571
    %2573 = vrot.lane.b32.xlu0 %v2566, 111
    %v2574 = vpop.permute.xlu0 %2573
    %2575 = vrot.lane.b32.xlu0 %v2567, 111
    %v2576 = vpop.permute.xlu0 %2575
    %v2577 = vsel %vm216, %v2572, %v2574
    %v2578 = vsel %vm216, %v2574, %v2576
    %v2581 = vadd.f32 %v2559, %v2577
    %v2582 = vadd.f32 %v2560, %v2578
    %2583 = vset.pattern.permute.xlu0 5
    %2584 = vperm.xlu0 %2583, %v2529
    %v2585 = vpop.permute.xlu0 %2584
    %v2587 = vmul.f32 %v2585, %v2520
    %v2588 = vmul.f32 %v2585, %v2521
    %v2589 = vadd.f32 %v2581, %v2587
    %v2590 = vadd.f32 %v2582, %v2588
    %2591 = vset.pattern.permute.xlu0 6
    %2592 = vperm.xlu0 %2591, %v2529
    %v2593 = vpop.permute.xlu0 %2592
    %v2595 = vmul.f32 %v2593, %v2522
    %v2596 = vmul.f32 %v2593, %v2523
    %v2597 = vadd.f32 %v2589, %v2595
    %v2598 = vadd.f32 %v2590, %v2596
    %2599 = vset.pattern.permute.xlu0 7
    %2600 = vperm.xlu0 %2599, %v2529
    %v2601 = vpop.permute.xlu0 %2600
    %v2603 = vmul.f32 %v2601, %v2524
    %v2604 = vmul.f32 %v2601, %v2525
    %v2605 = vadd.f32 %v2597, %v2603
    %v2606 = vadd.f32 %v2598, %v2604
    %2607 = vset.pattern.permute.xlu0 8
    %2608 = vperm.xlu0 %2607, %v2529
    %v2609 = vpop.permute.xlu0 %2608
    %v2611 = vmul.f32 %v2609, %v2526
    %v2612 = vmul.f32 %v2609, %v2527
    %v2613 = vadd.f32 %v2605, %v2611
    %v2614 = vadd.f32 %v2606, %v2612
    %v2615 = vsel %vm255, %v2613, 0.0
    %v2616 = vrot.slane %v2615, 4
    %v2617 = vadd.f32 %v2615, %v2616
    %v2618 = vrot.slane %v2617, 2
    %v2619 = vadd.f32 %v2617, %v2618
    %v2620 = vrot.slane %v2619, 1
    %v2621 = vadd.f32 %v2619, %v2620
    %v2622 = vsel %vm255, %v2614, 0.0
    %v2623 = vrot.slane %v2622, 4
    %v2624 = vadd.f32 %v2622, %v2623
    %v2625 = vrot.slane %v2624, 2
    %v2626 = vadd.f32 %v2624, %v2625
    %v2627 = vrot.slane %v2626, 1
    %v2628 = vadd.f32 %v2626, %v2627
    %v2631 = vcombine.low %v2621, %v2628
    %v2633 = vunpack.c.l.s4 1966171168
    %v2634 = vunpack.c.0.s8 %v2633
    %v2635 = vlaneseq
    %v2636 = vshrl.u32 %v2635, 7
    %v2637 = vsub.s32 %v2634, %v2636
    %v2638 = vrot.slane %v2631, %v2637
    %v2640 = vunpack.c.l.s4 1966171168
    %v2641 = vunpack.c.0.s8 %v2640
    %v2642 = vlaneseq
    %v2643 = vshrl.u32 %v2642, 7
    %v2644 = vsub.s32 %v2641, %v2643
    %v2645 = vrot.slane %v2638, %v2644
    %2647 = vst.msk [vmem:[#allocation3] ss:$8 sm:$0x3] %vm291, %v2645
    %2648 = vst.msk [vmem:[#allocation3] ss:$8 sm:$0x0] %vm291, %v2645
    %v2651 = vrot.slane %v2613, 4
    %v2652 = vrot.slane %v2614, 4
    %v2655 = vsel %vm255, %v2651, 0.0
    %v2656 = vrot.slane %v2655, 4
    %v2657 = vadd.f32 %v2655, %v2656
    %v2658 = vrot.slane %v2657, 2
    %v2659 = vadd.f32 %v2657, %v2658
    %v2660 = vrot.slane %v2659, 1
    %v2661 = vadd.f32 %v2659, %v2660
    %v2662 = vsel %vm255, %v2652, 0.0
    %v2663 = vrot.slane %v2662, 4
    %v2664 = vadd.f32 %v2662, %v2663
    %v2665 = vrot.slane %v2664, 2
    %v2666 = vadd.f32 %v2664, %v2665
    %v2667 = vrot.slane %v2666, 1
    %v2668 = vadd.f32 %v2666, %v2667
    %v2671 = vcombine.low %v2661, %v2668
    %v2673 = vunpack.c.l.s4 1966171168
    %v2674 = vunpack.c.0.s8 %v2673
    %v2675 = vlaneseq
    %v2676 = vshrl.u32 %v2675, 7
    %v2677 = vsub.s32 %v2674, %v2676
    %v2678 = vrot.slane %v2671, %v2677
    %v2680 = vunpack.c.l.s4 1966171168
    %v2681 = vunpack.c.0.s8 %v2680
    %v2682 = vlaneseq
    %v2683 = vshrl.u32 %v2682, 7
    %v2684 = vsub.s32 %v2681, %v2683
    %v2685 = vrot.slane %v2678, %v2684
    %2687 = vst.msk [vmem:[%s332] ss:$8 sm:$0x3] %vm291, %v2685
    %2688 = vst.msk [vmem:[%s332] ss:$8 sm:$0x0] %vm291, %v2685
    %v2689 = vld [vmem:[%s2528] sm:$0xff]
    %2691 = vset.pattern.permute.xlu0 9
    %2692 = vperm.xlu0 %2691, %v2689
    %v2693 = vpop.permute.xlu0 %2692
    %v2695 = vmul.f32 %v2693, %v2468
    %v2696 = vmul.f32 %v2693, %v2469
    %2697 = vset.pattern.permute.xlu0 10
    %2698 = vperm.xlu0 %2697, %v2689
    %v2699 = vpop.permute.xlu0 %2698
    %v2701 = vmul.f32 %v2699, %v2490
    %v2702 = vmul.f32 %v2699, %v2491
    %v2703 = vadd.f32 %v2695, %v2701
    %v2704 = vadd.f32 %v2696, %v2702
    %2705 = vset.pattern.permute.xlu0 11
    %2706 = vperm.xlu0 %2705, %v2689
    %v2707 = vpop.permute.xlu0 %2706
    %v2709 = vmul.f32 %v2707, %v2496
    %v2710 = vmul.f32 %v2707, %v2497
    %v2711 = vadd.f32 %v2703, %v2709
    %v2712 = vadd.f32 %v2704, %v2710
    %2713 = vset.pattern.permute.xlu0 12
    %2714 = vperm.xlu0 %2713, %v2689
    %v2715 = vpop.permute.xlu0 %2714
    %v2717 = vmul.f32 %v2715, %v2518
    %v2718 = vmul.f32 %v2715, %v2519
    %v2719 = vadd.f32 %v2711, %v2717
    %v2720 = vadd.f32 %v2712, %v2718
    %2721 = vset.pattern.permute.xlu0 13
    %2722 = vperm.xlu0 %2721, %v2689
    %v2723 = vpop.permute.xlu0 %2722
    %v2725 = vmul.f32 %v2723, %v2428
    %v2726 = vmul.f32 %v2723, %v2429
    %v2727 = vmul.f32 %v2723, %v2430
    %2731 = vrot.lane.b32.xlu0 %v2725, 111
    %v2732 = vpop.permute.xlu0 %2731
    %2733 = vrot.lane.b32.xlu0 %v2726, 111
    %v2734 = vpop.permute.xlu0 %2733
    %2735 = vrot.lane.b32.xlu0 %v2727, 111
    %v2736 = vpop.permute.xlu0 %2735
    %v2737 = vsel %vm216, %v2732, %v2734
    %v2738 = vsel %vm216, %v2734, %v2736
    %v2741 = vadd.f32 %v2719, %v2737
    %v2742 = vadd.f32 %v2720, %v2738
    %2743 = vset.pattern.permute.xlu0 14
    %2744 = vperm.xlu0 %2743, %v2689
    %v2745 = vpop.permute.xlu0 %2744
    %v2747 = vmul.f32 %v2745, %v2520
    %v2748 = vmul.f32 %v2745, %v2521
    %v2749 = vadd.f32 %v2741, %v2747
    %v2750 = vadd.f32 %v2742, %v2748
    %2751 = vset.pattern.permute.xlu0 15
    %2752 = vperm.xlu0 %2751, %v2689
    %v2753 = vpop.permute.xlu0 %2752
    %v2755 = vmul.f32 %v2753, %v2522
    %v2756 = vmul.f32 %v2753, %v2523
    %v2757 = vadd.f32 %v2749, %v2755
    %v2758 = vadd.f32 %v2750, %v2756
    %2759 = vset.pattern.permute.xlu0 16
    %2760 = vperm.xlu0 %2759, %v2689
    %v2761 = vpop.permute.xlu0 %2760
    %v2763 = vmul.f32 %v2761, %v2524
    %v2764 = vmul.f32 %v2761, %v2525
    %v2765 = vadd.f32 %v2757, %v2763
    %v2766 = vadd.f32 %v2758, %v2764
    %2767 = vset.pattern.permute.xlu0 17
    %2768 = vperm.xlu0 %2767, %v2689
    %v2769 = vpop.permute.xlu0 %2768
    %v2771 = vmul.f32 %v2769, %v2526
    %v2772 = vmul.f32 %v2769, %v2527
    %v2773 = vadd.f32 %v2765, %v2771
    %v2774 = vadd.f32 %v2766, %v2772
    %v2775 = vsel %vm255, %v2773, 0.0
    %v2776 = vrot.slane %v2775, 4
    %v2777 = vadd.f32 %v2775, %v2776
    %v2778 = vrot.slane %v2777, 2
    %v2779 = vadd.f32 %v2777, %v2778
    %v2780 = vrot.slane %v2779, 1
    %v2781 = vadd.f32 %v2779, %v2780
    %v2782 = vsel %vm255, %v2774, 0.0
    %v2783 = vrot.slane %v2782, 4
    %v2784 = vadd.f32 %v2782, %v2783
    %v2785 = vrot.slane %v2784, 2
    %v2786 = vadd.f32 %v2784, %v2785
    %v2787 = vrot.slane %v2786, 1
    %v2788 = vadd.f32 %v2786, %v2787
    %v2791 = vcombine.low %v2781, %v2788
    %v2793 = vunpack.c.l.s4 1966171168
    %v2794 = vunpack.c.0.s8 %v2793
    %v2795 = vlaneseq
    %v2796 = vshrl.u32 %v2795, 7
    %v2797 = vsub.s32 %v2794, %v2796
    %v2798 = vrot.slane %v2791, %v2797
    %v2800 = vunpack.c.l.s4 1966171168
    %v2801 = vunpack.c.0.s8 %v2800
    %v2802 = vlaneseq
    %v2803 = vshrl.u32 %v2802, 7
    %v2804 = vsub.s32 %v2801, %v2803
    %v2805 = vrot.slane %v2798, %v2804
    %2807 = vst.msk [vmem:[%s453] ss:$8 sm:$0x3] %vm291, %v2805
    %2808 = vst.msk [vmem:[%s453] ss:$8 sm:$0x0] %vm291, %v2805
    %v2811 = vrot.slane %v2773, 4
    %v2812 = vrot.slane %v2774, 4
    %v2815 = vsel %vm255, %v2811, 0.0
    %v2816 = vrot.slane %v2815, 4
    %v2817 = vadd.f32 %v2815, %v2816
    %v2818 = vrot.slane %v2817, 2
    %v2819 = vadd.f32 %v2817, %v2818
    %v2820 = vrot.slane %v2819, 1
    %v2821 = vadd.f32 %v2819, %v2820
    %v2822 = vsel %vm255, %v2812, 0.0
    %v2823 = vrot.slane %v2822, 4
    %v2824 = vadd.f32 %v2822, %v2823
    %v2825 = vrot.slane %v2824, 2
    %v2826 = vadd.f32 %v2824, %v2825
    %v2827 = vrot.slane %v2826, 1
    %v2828 = vadd.f32 %v2826, %v2827
    %v2831 = vcombine.low %v2821, %v2828
    %v2833 = vunpack.c.l.s4 1966171168
    %v2834 = vunpack.c.0.s8 %v2833
    %v2835 = vlaneseq
    %v2836 = vshrl.u32 %v2835, 7
    %v2837 = vsub.s32 %v2834, %v2836
    %v2838 = vrot.slane %v2831, %v2837
    %v2840 = vunpack.c.l.s4 1966171168
    %v2841 = vunpack.c.0.s8 %v2840
    %v2842 = vlaneseq
    %v2843 = vshrl.u32 %v2842, 7
    %v2844 = vsub.s32 %v2841, %v2843
    %v2845 = vrot.slane %v2838, %v2844
    %2847 = vst.msk [vmem:[%s494] ss:$8 sm:$0x3] %vm291, %v2845
    %2848 = vst.msk [vmem:[%s494] ss:$8 sm:$0x0] %vm291, %v2845
    %v2849 = vld [vmem:[%s2528] sm:$0xff]
    %2851 = vset.pattern.permute.xlu0 18
    %2852 = vperm.xlu0 %2851, %v2849
    %v2853 = vpop.permute.xlu0 %2852
    %v2855 = vmul.f32 %v2853, %v2468
    %v2856 = vmul.f32 %v2853, %v2469
    %2857 = vset.pattern.permute.xlu0 19
    %2858 = vperm.xlu0 %2857, %v2849
    %v2859 = vpop.permute.xlu0 %2858
    %v2861 = vmul.f32 %v2859, %v2490
    %v2862 = vmul.f32 %v2859, %v2491
    %v2863 = vadd.f32 %v2855, %v2861
    %v2864 = vadd.f32 %v2856, %v2862
    %2865 = vset.pattern.permute.xlu0 20
    %2866 = vperm.xlu0 %2865, %v2849
    %v2867 = vpop.permute.xlu0 %2866
    %v2869 = vmul.f32 %v2867, %v2496
    %v2870 = vmul.f32 %v2867, %v2497
    %v2871 = vadd.f32 %v2863, %v2869
    %v2872 = vadd.f32 %v2864, %v2870
    %2873 = vset.pattern.permute.xlu0 21
    %2874 = vperm.xlu0 %2873, %v2849
    %v2875 = vpop.permute.xlu0 %2874
    %v2877 = vmul.f32 %v2875, %v2518
    %v2878 = vmul.f32 %v2875, %v2519
    %v2879 = vadd.f32 %v2871, %v2877
    %v2880 = vadd.f32 %v2872, %v2878
    %2881 = vset.pattern.permute.xlu0 22
    %2882 = vperm.xlu0 %2881, %v2849
    %v2883 = vpop.permute.xlu0 %2882
    %v2885 = vmul.f32 %v2883, %v2428
    %v2886 = vmul.f32 %v2883, %v2429
    %v2887 = vmul.f32 %v2883, %v2430
    %2891 = vrot.lane.b32.xlu0 %v2885, 111
    %v2892 = vpop.permute.xlu0 %2891
    %2893 = vrot.lane.b32.xlu0 %v2886, 111
    %v2894 = vpop.permute.xlu0 %2893
    %2895 = vrot.lane.b32.xlu0 %v2887, 111
    %v2896 = vpop.permute.xlu0 %2895
    %v2897 = vsel %vm216, %v2892, %v2894
    %v2898 = vsel %vm216, %v2894, %v2896
    %v2901 = vadd.f32 %v2879, %v2897
    %v2902 = vadd.f32 %v2880, %v2898
    %2903 = vset.pattern.permute.xlu0 23
    %2904 = vperm.xlu0 %2903, %v2849
    %v2905 = vpop.permute.xlu0 %2904
    %v2907 = vmul.f32 %v2905, %v2520
    %v2908 = vmul.f32 %v2905, %v2521
    %v2909 = vadd.f32 %v2901, %v2907
    %v2910 = vadd.f32 %v2902, %v2908
    %2911 = vset.pattern.permute.xlu0 24
    %2912 = vperm.xlu0 %2911, %v2849
    %v2913 = vpop.permute.xlu0 %2912
    %v2915 = vmul.f32 %v2913, %v2522
    %v2916 = vmul.f32 %v2913, %v2523
    %v2917 = vadd.f32 %v2909, %v2915
    %v2918 = vadd.f32 %v2910, %v2916
    %2919 = vset.pattern.permute.xlu0 25
    %2920 = vperm.xlu0 %2919, %v2849
    %v2921 = vpop.permute.xlu0 %2920
    %v2923 = vmul.f32 %v2921, %v2524
    %v2924 = vmul.f32 %v2921, %v2525
    %v2925 = vadd.f32 %v2917, %v2923
    %v2926 = vadd.f32 %v2918, %v2924
    %2927 = vset.pattern.permute.xlu0 26
    %2928 = vperm.xlu0 %2927, %v2849
    %v2929 = vpop.permute.xlu0 %2928
    %v2931 = vmul.f32 %v2929, %v2526
    %v2932 = vmul.f32 %v2929, %v2527
    %v2933 = vadd.f32 %v2925, %v2931
    %v2934 = vadd.f32 %v2926, %v2932
    %v2935 = vsel %vm255, %v2933, 0.0
    %v2936 = vrot.slane %v2935, 4
    %v2937 = vadd.f32 %v2935, %v2936
    %v2938 = vrot.slane %v2937, 2
    %v2939 = vadd.f32 %v2937, %v2938
    %v2940 = vrot.slane %v2939, 1
    %v2941 = vadd.f32 %v2939, %v2940
    %v2942 = vsel %vm255, %v2934, 0.0
    %v2943 = vrot.slane %v2942, 4
    %v2944 = vadd.f32 %v2942, %v2943
    %v2945 = vrot.slane %v2944, 2
    %v2946 = vadd.f32 %v2944, %v2945
    %v2947 = vrot.slane %v2946, 1
    %v2948 = vadd.f32 %v2946, %v2947
    %v2951 = vcombine.low %v2941, %v2948
    %v2953 = vunpack.c.l.s4 1966171168
    %v2954 = vunpack.c.0.s8 %v2953
    %v2955 = vlaneseq
    %v2956 = vshrl.u32 %v2955, 7
    %v2957 = vsub.s32 %v2954, %v2956
    %v2958 = vrot.slane %v2951, %v2957
    %v2960 = vunpack.c.l.s4 1966171168
    %v2961 = vunpack.c.0.s8 %v2960
    %v2962 = vlaneseq
    %v2963 = vshrl.u32 %v2962, 7
    %v2964 = vsub.s32 %v2961, %v2963
    %v2965 = vrot.slane %v2958, %v2964
    %2967 = vst.msk [vmem:[%s615] ss:$8 sm:$0x3] %vm291, %v2965
    %2968 = vst.msk [vmem:[%s615] ss:$8 sm:$0x0] %vm291, %v2965
    %v2971 = vrot.slane %v2933, 4
    %v2972 = vrot.slane %v2934, 4
    %v2975 = vsel %vm255, %v2971, 0.0
    %v2976 = vrot.slane %v2975, 4
    %v2977 = vadd.f32 %v2975, %v2976
    %v2978 = vrot.slane %v2977, 2
    %v2979 = vadd.f32 %v2977, %v2978
    %v2980 = vrot.slane %v2979, 1
    %v2981 = vadd.f32 %v2979, %v2980
    %v2982 = vsel %vm255, %v2972, 0.0
    %v2983 = vrot.slane %v2982, 4
    %v2984 = vadd.f32 %v2982, %v2983
    %v2985 = vrot.slane %v2984, 2
    %v2986 = vadd.f32 %v2984, %v2985
    %v2987 = vrot.slane %v2986, 1
    %v2988 = vadd.f32 %v2986, %v2987
    %v2991 = vcombine.low %v2981, %v2988
    %v2993 = vunpack.c.l.s4 1966171168
    %v2994 = vunpack.c.0.s8 %v2993
    %v2995 = vlaneseq
    %v2996 = vshrl.u32 %v2995, 7
    %v2997 = vsub.s32 %v2994, %v2996
    %v2998 = vrot.slane %v2991, %v2997
    %v3000 = vunpack.c.l.s4 1966171168
    %v3001 = vunpack.c.0.s8 %v3000
    %v3002 = vlaneseq
    %v3003 = vshrl.u32 %v3002, 7
    %v3004 = vsub.s32 %v3001, %v3003
    %v3005 = vrot.slane %v2998, %v3004
    %3007 = vst.msk [vmem:[%s656] ss:$8 sm:$0x3] %vm291, %v3005
    %3008 = vst.msk [vmem:[%s656] ss:$8 sm:$0x0] %vm291, %v3005
    %v3009 = vld [vmem:[%s2528] sm:$0xff]
    %3011 = vset.pattern.permute.xlu0 27
    %3012 = vperm.xlu0 %3011, %v3009
    %v3013 = vpop.permute.xlu0 %3012
    %v3015 = vmul.f32 %v3013, %v2468
    %v3016 = vmul.f32 %v3013, %v2469
    %3017 = vset.pattern.permute.xlu0 28
    %3018 = vperm.xlu0 %3017, %v3009
    %v3019 = vpop.permute.xlu0 %3018
    %v3021 = vmul.f32 %v3019, %v2490
    %v3022 = vmul.f32 %v3019, %v2491
    %v3023 = vadd.f32 %v3015, %v3021
    %v3024 = vadd.f32 %v3016, %v3022
    %3025 = vset.pattern.permute.xlu0 29
    %3026 = vperm.xlu0 %3025, %v3009
    %v3027 = vpop.permute.xlu0 %3026
    %v3029 = vmul.f32 %v3027, %v2496
    %v3030 = vmul.f32 %v3027, %v2497
    %v3031 = vadd.f32 %v3023, %v3029
    %v3032 = vadd.f32 %v3024, %v3030
    %3033 = vset.pattern.permute.xlu0 30
    %3034 = vperm.xlu0 %3033, %v3009
    %v3035 = vpop.permute.xlu0 %3034
    %v3037 = vmul.f32 %v3035, %v2518
    %v3038 = vmul.f32 %v3035, %v2519
    %v3039 = vadd.f32 %v3031, %v3037
    %v3040 = vadd.f32 %v3032, %v3038
    %3041 = vset.pattern.permute.xlu0 31
    %3042 = vperm.xlu0 %3041, %v3009
    %v3043 = vpop.permute.xlu0 %3042
    %v3045 = vmul.f32 %v3043, %v2428
    %v3046 = vmul.f32 %v3043, %v2429
    %v3047 = vmul.f32 %v3043, %v2430
    %3051 = vrot.lane.b32.xlu0 %v3045, 111
    %v3052 = vpop.permute.xlu0 %3051
    %3053 = vrot.lane.b32.xlu0 %v3046, 111
    %v3054 = vpop.permute.xlu0 %3053
    %3055 = vrot.lane.b32.xlu0 %v3047, 111
    %v3056 = vpop.permute.xlu0 %3055
    %v3057 = vsel %vm216, %v3052, %v3054
    %v3058 = vsel %vm216, %v3054, %v3056
    %v3061 = vadd.f32 %v3039, %v3057
    %v3062 = vadd.f32 %v3040, %v3058
    %3063 = vset.pattern.permute.xlu0 32
    %3064 = vperm.xlu0 %3063, %v3009
    %v3065 = vpop.permute.xlu0 %3064
    %v3067 = vmul.f32 %v3065, %v2520
    %v3068 = vmul.f32 %v3065, %v2521
    %v3069 = vadd.f32 %v3061, %v3067
    %v3070 = vadd.f32 %v3062, %v3068
    %3071 = vset.pattern.permute.xlu0 33
    %3072 = vperm.xlu0 %3071, %v3009
    %v3073 = vpop.permute.xlu0 %3072
    %v3075 = vmul.f32 %v3073, %v2522
    %v3076 = vmul.f32 %v3073, %v2523
    %v3077 = vadd.f32 %v3069, %v3075
    %v3078 = vadd.f32 %v3070, %v3076
    %3079 = vset.pattern.permute.xlu0 34
    %3080 = vperm.xlu0 %3079, %v3009
    %v3081 = vpop.permute.xlu0 %3080
    %v3083 = vmul.f32 %v3081, %v2524
    %v3084 = vmul.f32 %v3081, %v2525
    %v3085 = vadd.f32 %v3077, %v3083
    %v3086 = vadd.f32 %v3078, %v3084
    %3087 = vset.pattern.permute.xlu0 35
    %3088 = vperm.xlu0 %3087, %v3009
    %v3089 = vpop.permute.xlu0 %3088
    %v3091 = vmul.f32 %v3089, %v2526
    %v3092 = vmul.f32 %v3089, %v2527
    %v3093 = vadd.f32 %v3085, %v3091
    %v3094 = vadd.f32 %v3086, %v3092
    %v3095 = vsel %vm255, %v3093, 0.0
    %v3096 = vrot.slane %v3095, 4
    %v3097 = vadd.f32 %v3095, %v3096
    %v3098 = vrot.slane %v3097, 2
    %v3099 = vadd.f32 %v3097, %v3098
    %v3100 = vrot.slane %v3099, 1
    %v3101 = vadd.f32 %v3099, %v3100
    %v3102 = vsel %vm255, %v3094, 0.0
    %v3103 = vrot.slane %v3102, 4
    %v3104 = vadd.f32 %v3102, %v3103
    %v3105 = vrot.slane %v3104, 2
    %v3106 = vadd.f32 %v3104, %v3105
    %v3107 = vrot.slane %v3106, 1
    %v3108 = vadd.f32 %v3106, %v3107
    %v3111 = vcombine.low %v3101, %v3108
    %v3113 = vunpack.c.l.s4 1966171168
    %v3114 = vunpack.c.0.s8 %v3113
    %v3115 = vlaneseq
    %v3116 = vshrl.u32 %v3115, 7
    %v3117 = vsub.s32 %v3114, %v3116
    %v3118 = vrot.slane %v3111, %v3117
    %v3120 = vunpack.c.l.s4 1966171168
    %v3121 = vunpack.c.0.s8 %v3120
    %v3122 = vlaneseq
    %v3123 = vshrl.u32 %v3122, 7
    %v3124 = vsub.s32 %v3121, %v3123
    %v3125 = vrot.slane %v3118, %v3124
    %3127 = vst.msk [vmem:[%s777] ss:$8 sm:$0x3] %vm291, %v3125
    %3128 = vst.msk [vmem:[%s777] ss:$8 sm:$0x0] %vm291, %v3125
    %v3131 = vrot.slane %v3093, 4
    %v3132 = vrot.slane %v3094, 4
    %v3135 = vsel %vm255, %v3131, 0.0
    %v3136 = vrot.slane %v3135, 4
    %v3137 = vadd.f32 %v3135, %v3136
    %v3138 = vrot.slane %v3137, 2
    %v3139 = vadd.f32 %v3137, %v3138
    %v3140 = vrot.slane %v3139, 1
    %v3141 = vadd.f32 %v3139, %v3140
    %v3142 = vsel %vm255, %v3132, 0.0
    %v3143 = vrot.slane %v3142, 4
    %v3144 = vadd.f32 %v3142, %v3143
    %v3145 = vrot.slane %v3144, 2
    %v3146 = vadd.f32 %v3144, %v3145
    %v3147 = vrot.slane %v3146, 1
    %v3148 = vadd.f32 %v3146, %v3147
    %v3151 = vcombine.low %v3141, %v3148
    %v3153 = vunpack.c.l.s4 1966171168
    %v3154 = vunpack.c.0.s8 %v3153
    %v3155 = vlaneseq
    %v3156 = vshrl.u32 %v3155, 7
    %v3157 = vsub.s32 %v3154, %v3156
    %v3158 = vrot.slane %v3151, %v3157
    %v3160 = vunpack.c.l.s4 1966171168
    %v3161 = vunpack.c.0.s8 %v3160
    %v3162 = vlaneseq
    %v3163 = vshrl.u32 %v3162, 7
    %v3164 = vsub.s32 %v3161, %v3163
    %v3165 = vrot.slane %v3158, %v3164
    %3167 = vst.msk [vmem:[%s818] ss:$8 sm:$0x3] %vm291, %v3165
    %3168 = vst.msk [vmem:[%s818] ss:$8 sm:$0x0] %vm291, %v3165
    %v3169 = vld [vmem:[#allocation3] sm:$0xff]
    %v3170 = vld [vmem:[#allocation3 + $0x8] sm:$0xff]
    %s3171 = scalar_lea.vmem %s2, 24
    %v3172 = vld [vmem:[%s3171] sm:$0xff]
    %3174 = vset.pattern.permute.xlu0 0
    %3175 = vperm.xlu0 %3174, %v3172
    %v3176 = vpop.permute.xlu0 %3175
    %v3178 = vadd.f32 %v3169, %v3176
    %v3179 = vadd.f32 %v3170, %v3176
    %v3180 = vadd.f32 %v3178, %v3179
    %3181 = vadd.xlane.f32.xlu0 %v3180
    %v3182 = vpop.xlane.xlu0 %3181
    %v3183 = vmul.f32 %v3182, 0.00390625
    %v3184 = vsub.f32 %v3178, %v3183
    %v3185 = vsub.f32 %v3179, %v3183
    %v3186 = vmul.f32 %v3184, %v3184
    %v3187 = vmul.f32 %v3185, %v3185
    %v3188 = vadd.f32 %v3186, %v3187
    %3189 = vadd.xlane.f32.xlu0 %v3188
    %v3190 = vpop.xlane.xlu0 %3189
    %v3191 = vmul.f32 %v3190, 0.00390625
    %v3192 = vadd.f32 %v3191, 1e-05
    %v3193 = vrsqrt.pop %v3192
    %v3194 = vmul.f32 %v3184, %v3193
    %v3195 = vmul.f32 %v3185, %v3193
    %v3196 = vadd.f32 %v3194, %v1630
    %v3197 = vadd.f32 %v3195, %v1631
    %3198 = vst [vmem:[#allocation7] sm:$0xff] %v3196
    %3199 = vst [vmem:[#allocation7 + $0x8] sm:$0xff] %v3197
    // Predicated region
    $region18: #{tpu_custom_call.1} parent=1 // pred_check
      _
    $region19: #{tpu_custom_call.1} parent=1 // pred_check_branch
      %3201 = sbr.rel (0) target = $region21
    $region20: #{tpu_custom_call.1} parent=1 // pred_region
      %s3203 = ssub.s32 256, 256
      %3204 = vsyncadd [#allocation6], %s3203
      %s3206 = sshll.u32 [#allocation7], 4
      %s3207 = int_to_ptr.vmem [resolvable:$true] %s3206
      %3209 = dma.vmem_to_hbm [thread:$0]  %s3207, 256, %s3, [#allocation6]
    $region21: #{tpu_custom_call.1} parent=1 // pred_fallthru
      _
    // Predicated region
    $region22: #{tpu_custom_call.1} parent=1 // pred_check
      _
    $region23: #{tpu_custom_call.1} parent=1 // pred_check_branch
      %3211 = sbr.rel (0) target = $region25
    $region24: #{tpu_custom_call.1} parent=1 // pred_region
      %3212 = dma.done [#allocation6], 256
    $region25: #{tpu_custom_call.1} parent=1 // pred_fallthru
      _
    %3213 = vsyncpa [#allocation5], 1
    %3214 = vsyncpa [#allocation6], 1

</llo_original>
